<compile_context>
chip_gen: v6e
topology: v6e:2x2x1
jax: 0.10.0
libtpu: 0.0.40
codegen_flags: <defaults>
</compile_context>

<pallas_src>
import functools

import jax
import jax.numpy as jnp
from jax.experimental import pallas as pl
from jax.experimental.pallas import tpu as pltpu


def _cross_attention_kernel(q_ref, kv_ref, wq_ref, wk_ref, wv_ref, wp_ref, bp_ref,
                            o_ref, *, compute_dtype, approx_recip):
    bb, nq, c = q_ref.shape            # block_b batches handled by this grid step
    _, nkv, _ = kv_ref.shape
    num_heads, _, hd = wq_ref.shape    # per-head weight slabs: (H, C, hd)

    # Fold the batch block into the matmul M dimension (free leading-dim merge).
    x_q = q_ref[...].reshape(bb * nq, c).astype(compute_dtype)      # (bb*nq,  C)
    x_kv = kv_ref[...].reshape(bb * nkv, c).astype(compute_dtype)   # (bb*nkv, C)

    out_acc = jnp.zeros((bb * nq, c), jnp.float32)

    # Static head loop. wX_ref[h] is a free leading-index view of a per-head weight
    # slab: no sub-(8,128) column slices, no transposes, no concatenation.
    for h in range(num_heads):
        qh = jnp.dot(x_q, wq_ref[h], preferred_element_type=jnp.float32)   # (bb*nq,  hd); scale pre-folded
        kh = jnp.dot(x_kv, wk_ref[h], preferred_element_type=jnp.float32)  # (bb*nkv, hd)
        vh = jnp.dot(x_kv, wv_ref[h], preferred_element_type=jnp.float32)  # (bb*nkv, hd)

        qh = qh.reshape(bb, nq, hd).astype(compute_dtype)
        kh = kh.reshape(bb, nkv, hd).astype(compute_dtype)
        vh = vh.reshape(bb, nkv, hd).astype(compute_dtype)

        # Scores via contracting-dim batched matmul -- no materialized k transpose.
        s = jnp.einsum("bqd,bkd->bqk", qh, kh,
                       preferred_element_type=jnp.float32)                 # (bb, nq, nkv)

        # Numerically-stable softmax over keys, kept in f32.
        s = s - jnp.max(s, axis=-1, keepdims=True)
        p = jnp.exp(s)
        p = p * pl.reciprocal(jnp.sum(p, axis=-1, keepdims=True), approx=approx_recip)

        ctx = jnp.einsum("bqk,bkd->bqd", p.astype(compute_dtype), vh,
                         preferred_element_type=jnp.float32)               # (bb, nq, hd)

        # Fuse the head-concat into the output projection: accumulate this head's
        # (ctx_h @ Wp_h) contribution into a single f32 accumulator.
        out_acc = out_acc + jnp.dot(
            ctx.reshape(bb * nq, hd).astype(compute_dtype), wp_ref[h],
            preferred_element_type=jnp.float32)                            # (bb*nq, C)

    out = out_acc + bp_ref[...]                                            # + bias (1, C)
    o_ref[...] = out.reshape(bb, nq, c).astype(o_ref.dtype)


def cross_attention(query, image_token, params, *, num_heads, block_b=None,
                    compute_dtype=jnp.bfloat16):
    """query: (B, Nq, C), image_token: (B, Nkv, C). Returns (B, Nq, C)."""
    B, Nq, C = query.shape
    _, Nkv, _ = image_token.shape
    assert C % num_heads == 0, "C must be divisible by num_heads"
    hd = C // num_heads
    scale = hd ** (-0.5)

    # --- one-time weight preparation (free XLA transforms, outside the kernel) ---
    # torch.nn.Linear stores weight as (out, in); the kernel wants (in, out).
    wq_t = params["wq"].T * scale          # (C, C); softmax scale folded in
    wk_t = params["wkv"][:C, :].T          # (C, C)  first C rows of kv -> K
    wv_t = params["wkv"][C:, :].T          # (C, C)  last  C rows of kv -> V
    wp_t = params["wproj"].T               # (C, C)

    # Per-head slabs: head h owns output columns [h*hd, (h+1)*hd) of q/k/v and
    # input rows [h*hd, (h+1)*hd) of the output projection.
    wq3 = wq_t.reshape(C, num_heads, hd).transpose(1, 0, 2).astype(compute_dtype)  # (H, C, hd)
    wk3 = wk_t.reshape(C, num_heads, hd).transpose(1, 0, 2).astype(compute_dtype)  # (H, C, hd)
    wv3 = wv_t.reshape(C, num_heads, hd).transpose(1, 0, 2).astype(compute_dtype)  # (H, C, hd)
    wp3 = wp_t.reshape(num_heads, hd, C).astype(compute_dtype)                     # (H, hd, C)
    bp = params["bproj"].reshape(1, C).astype(jnp.float32)                         # (1, C)

    # --- batch blocking ---
    if block_b is None:
        # Fold batches into the MXU M dimension. Keep >= 2 grid blocks when B is
        # large enough so both v7x TensorCores get work; on v5e/v6e the grid is a
        # serial loop, so fewer, fatter blocks are strictly better.
        block_b = B // 2 if (B >= 16 and B % 2 == 0) else B
    assert B % block_b == 0, "block_b must divide B"
    grid = (B // block_b,)

    kernel = functools.partial(
        _cross_attention_kernel,
        compute_dtype=compute_dtype,
        approx_recip=(jnp.dtype(compute_dtype) != jnp.dtype(jnp.float32)),
    )

    grid_spec = pltpu.PrefetchScalarGridSpec(
        num_scalar_prefetch=0,
        grid=grid,
        in_specs=[
            pl.BlockSpec((block_b, Nq, C), lambda b: (b, 0, 0)),
            pl.BlockSpec((block_b, Nkv, C), lambda b: (b, 0, 0)),
            pl.BlockSpec((num_heads, C, hd), lambda b: (0, 0, 0)),
            pl.BlockSpec((num_heads, C, hd), lambda b: (0, 0, 0)),
            pl.BlockSpec((num_heads, C, hd), lambda b: (0, 0, 0)),
            pl.BlockSpec((num_heads, hd, C), lambda b: (0, 0, 0)),
            pl.BlockSpec((1, C), lambda b: (0, 0)),
        ],
        out_specs=pl.BlockSpec((block_b, Nq, C), lambda b: (b, 0, 0)),
    )

    # Advisory cost estimate so XLA schedules the surrounding graph sensibly.
    w_bytes = jnp.dtype(compute_dtype).itemsize
    cost = pl.CostEstimate(
        flops=int(2 * B * (Nq + 2 * Nkv) * C * C        # q/k/v projections
                  + 4 * B * num_heads * Nq * Nkv * hd   # q@k^T and p@v
                  + 2 * B * Nq * C * C),                # output projection
        transcendentals=int(B * num_heads * Nq * Nkv),  # softmax exp
        bytes_accessed=int(4 * B * C * (2 * Nq + Nkv) + 4 * C * C * w_bytes + 4 * C),
    )

    # Rough per-step VMEM footprint (double-buffered activation blocks + resident
    # weights). Only raise the scoped-VMEM limit when blocks are genuinely large
    # (big production C/Nkv), and never beyond v7x's 64 MiB of physical VMEM.
    est_vmem = 2 * 2 * 4 * block_b * (2 * Nq + Nkv) * C + 4 * C * C * w_bytes
    vmem_limit = None
    if est_vmem > 24 * 1024 * 1024:
        vmem_limit = min(64 * 1024 * 1024, int(est_vmem * 1.5))

    return pl.pallas_call(
        kernel,
        out_shape=jax.ShapeDtypeStruct((B, Nq, C), query.dtype),
        grid_spec=grid_spec,
        compiler_params=pltpu.CompilerParams(
            dimension_semantics=("parallel",),
            vmem_limit_bytes=vmem_limit,
        ),
        cost_estimate=cost,
    )(query, image_token, wq3, wk3, wv3, wp3, bp)


def cross_attention_reference(query, image_token, params, *, num_heads):
    """Pure-JAX f32 reference mirroring the PyTorch forward."""
    B, Nkv, C = image_token.shape
    hd = C // num_heads
    scale = hd ** (-0.5)
    kv = image_token @ params["wkv"].T                       # (B, Nkv, 2C)
    kv = kv.reshape(B, Nkv, 2, num_heads, hd).transpose(2, 0, 3, 1, 4)
    k, v = kv[0], kv[1]                                      # (B, H, Nkv, hd)
    B, Nq, C = query.shape
    q = (query @ params["wq"].T).reshape(B, Nq, 1, num_heads, hd).transpose(2, 0, 3, 1, 4)[0]
    attn = (q @ jnp.swapaxes(k, -2, -1)) * scale
    attn = jax.nn.softmax(attn, axis=-1)
    x = (attn @ v).transpose(0, 2, 1, 3).reshape(B, Nq, C)
    return x @ params["wproj"].T + params["bproj"]


if __name__ == "__main__":
    B, Nq, Nkv, C, H = 2, 8, 16, 32, 8

    key = jax.random.PRNGKey(0)
    k1, k2, k3, k4, k5, k6 = jax.random.split(key, 6)

    params = {
        "wq": jax.random.normal(k1, (C, C), jnp.float32) * 0.05,
        "wkv": jax.random.normal(k2, (2 * C, C), jnp.float32) * 0.05,
        "wproj": jax.random.normal(k3, (C, C), jnp.float32) * 0.05,
        "bproj": jax.random.normal(k4, (C,), jnp.float32) * 0.05,
    }

    query = jax.random.normal(k5, (B, Nq, C), jnp.float32)
    image_token = jax.random.normal(k6, (B, Nkv, C), jnp.float32)

    ref = cross_attention_reference(query, image_token, params, num_heads=H)

    # Default fast path: bf16 MXU operands, f32 accumulation + f32 softmax.
    out = cross_attention(query, image_token, params, num_heads=H)
    out = jax.block_until_ready(out)
    assert out.shape == (B, Nq, C)
    assert jnp.allclose(out, ref, atol=5e-3, rtol=5e-2), "bf16 path mismatch vs reference"

    # Exact-math path (f32 MXU operands): matches the PyTorch forward tightly.
    out_f32 = cross_attention(query, image_token, params, num_heads=H,
                              compute_dtype=jnp.float32)
    out_f32 = jax.block_until_ready(out_f32)
    assert jnp.allclose(out_f32, ref, atol=1e-4, rtol=1e-4), "f32 path mismatch vs reference"

    print("KERNEL_OK")
</pallas_src>

<mosaic_0001>
module attributes {stable_mosaic.version = 11 : i64} {
  func.func @_cross_attention_kernel(%arg0: i32, %arg1: memref<2x8x32xf32, #tpu.memory_space<vmem>>, %arg2: memref<2x16x32xf32, #tpu.memory_space<vmem>>, %arg3: memref<8x32x4xbf16, #tpu.memory_space<vmem>>, %arg4: memref<8x32x4xbf16, #tpu.memory_space<vmem>>, %arg5: memref<8x32x4xbf16, #tpu.memory_space<vmem>>, %arg6: memref<8x4x32xbf16, #tpu.memory_space<vmem>>, %arg7: memref<1x32xf32, #tpu.memory_space<vmem>>, %arg8: memref<2x8x32xf32, #tpu.memory_space<vmem>>) attributes {dimension_semantics = [#tpu.dimension_semantics<parallel>], iteration_bounds = array<i64: 1>, scalar_prefetch = 0 : i64, scratch_operands = 0 : i64, tpu.core_type = #tpu.core_type<tc>, window_params = [{transform_indices = @transform_0, window_bounds = array<i64: 2, 8, 32>}, {transform_indices = @transform_1, window_bounds = array<i64: 2, 16, 32>}, {pipeline_mode = #tpu.pipeline_mode<synchronous>, transform_indices = @transform_2, window_bounds = array<i64: 8, 32, 4>}, {pipeline_mode = #tpu.pipeline_mode<synchronous>, transform_indices = @transform_3, window_bounds = array<i64: 8, 32, 4>}, {pipeline_mode = #tpu.pipeline_mode<synchronous>, transform_indices = @transform_4, window_bounds = array<i64: 8, 32, 4>}, {pipeline_mode = #tpu.pipeline_mode<synchronous>, transform_indices = @transform_5, window_bounds = array<i64: 8, 4, 32>}, {pipeline_mode = #tpu.pipeline_mode<synchronous>, transform_indices = @transform_6, window_bounds = array<i64: 1, 32>}, {transform_indices = @transform_7, window_bounds = array<i64: 2, 8, 32>}]} {
    %c0 = arith.constant 0 : index
    %c0_0 = arith.constant 0 : index
    %c0_1 = arith.constant 0 : index
    %0 = vector.load %arg1[%c0, %c0_0, %c0_1] : memref<2x8x32xf32, #tpu.memory_space<vmem>>, vector<2x8x32xf32>
    %1 = vector.shape_cast %0 : vector<2x8x32xf32> to vector<16x32xf32>
    %2 = arith.truncf %1 : vector<16x32xf32> to vector<16x32xbf16>
    %c0_2 = arith.constant 0 : index
    %c0_3 = arith.constant 0 : index
    %c0_4 = arith.constant 0 : index
    %3 = vector.load %arg2[%c0_2, %c0_3, %c0_4] : memref<2x16x32xf32, #tpu.memory_space<vmem>>, vector<2x16x32xf32>
    %4 = vector.shape_cast %3 : vector<2x16x32xf32> to vector<32x32xf32>
    %5 = arith.truncf %4 : vector<32x32xf32> to vector<32x32xbf16>
    %cst = arith.constant 0.000000e+00 : f32
    %6 = vector.broadcast %cst : f32 to vector<16x32xf32>
    %c0_5 = arith.constant 0 : index
    %c0_6 = arith.constant 0 : index
    %c0_7 = arith.constant 0 : index
    %7 = vector.load %arg3[%c0_5, %c0_6, %c0_7] : memref<8x32x4xbf16, #tpu.memory_space<vmem>>, vector<1x32x4xbf16>
    %8 = vector.shape_cast %7 : vector<1x32x4xbf16> to vector<32x4xbf16>
    %cst_8 = arith.constant dense<0.000000e+00> : vector<16x4xf32>
    %9 = tpu.matmul %2, %8, %cst_8 {dimension_numbers = #tpu.dot_dimension_numbers<[1], [0], [0], [1], [0, 0, 1, 1], [], []>} : vector<16x32xbf16>, vector<32x4xbf16>, vector<16x4xf32> -> vector<16x4xf32>
    %c0_9 = arith.constant 0 : index
    %c0_10 = arith.constant 0 : index
    %c0_11 = arith.constant 0 : index
    %10 = vector.load %arg4[%c0_9, %c0_10, %c0_11] : memref<8x32x4xbf16, #tpu.memory_space<vmem>>, vector<1x32x4xbf16>
    %11 = vector.shape_cast %10 : vector<1x32x4xbf16> to vector<32x4xbf16>
    %cst_12 = arith.constant dense<0.000000e+00> : vector<32x4xf32>
    %12 = tpu.matmul %5, %11, %cst_12 {dimension_numbers = #tpu.dot_dimension_numbers<[1], [0], [0], [1], [0, 0, 1, 1], [], []>} : vector<32x32xbf16>, vector<32x4xbf16>, vector<32x4xf32> -> vector<32x4xf32>
    %c0_13 = arith.constant 0 : index
    %c0_14 = arith.constant 0 : index
    %c0_15 = arith.constant 0 : index
    %13 = vector.load %arg5[%c0_13, %c0_14, %c0_15] : memref<8x32x4xbf16, #tpu.memory_space<vmem>>, vector<1x32x4xbf16>
    %14 = vector.shape_cast %13 : vector<1x32x4xbf16> to vector<32x4xbf16>
    %cst_16 = arith.constant dense<0.000000e+00> : vector<32x4xf32>
    %15 = tpu.matmul %5, %14, %cst_16 {dimension_numbers = #tpu.dot_dimension_numbers<[1], [0], [0], [1], [0, 0, 1, 1], [], []>} : vector<32x32xbf16>, vector<32x4xbf16>, vector<32x4xf32> -> vector<32x4xf32>
    %16 = vector.shape_cast %9 : vector<16x4xf32> to vector<2x8x4xf32>
    %17 = arith.truncf %16 : vector<2x8x4xf32> to vector<2x8x4xbf16>
    %18 = vector.shape_cast %12 : vector<32x4xf32> to vector<2x16x4xf32>
    %19 = arith.truncf %18 : vector<2x16x4xf32> to vector<2x16x4xbf16>
    %20 = vector.shape_cast %15 : vector<32x4xf32> to vector<2x16x4xf32>
    %21 = arith.truncf %20 : vector<2x16x4xf32> to vector<2x16x4xbf16>
    "tpu.trace_start"() <{level = 10 : i32, message = "bqd,bkd->bqk"}> : () -> ()
    %cst_17 = arith.constant dense<0.000000e+00> : vector<2x8x16xf32>
    %22 = tpu.matmul %17, %19, %cst_17 {dimension_numbers = #tpu.dot_dimension_numbers<[2], [2], [1], [1], [0, 0, 0, 1, 1, 1], [0], [0]>} : vector<2x8x4xbf16>, vector<2x16x4xbf16>, vector<2x8x16xf32> -> vector<2x8x16xf32>
    "tpu.trace_stop"() : () -> ()
    %cst_18 = arith.constant dense<0xFF800000> : vector<2x8xf32>
    %23 = vector.multi_reduction <maximumf>, %22, %cst_18 [2] : vector<2x8x16xf32> to vector<2x8xf32>
    %24 = vector.shape_cast %23 : vector<2x8xf32> to vector<2x8x1xf32>
    %25 = vector.broadcast %24 : vector<2x8x1xf32> to vector<2x8x16xf32>
    %26 = arith.subf %22, %25 : vector<2x8x16xf32>
    %27 = math.exp %26 : vector<2x8x16xf32>
    %cst_19 = arith.constant dense<0.000000e+00> : vector<2x8xf32>
    %28 = vector.multi_reduction <add>, %27, %cst_19 [2] : vector<2x8x16xf32> to vector<2x8xf32>
    %29 = vector.shape_cast %28 : vector<2x8xf32> to vector<2x8x1xf32>
    %30 = tpu.reciprocal %29 {approx = true} : vector<2x8x1xf32> -> vector<2x8x1xf32>
    %31 = vector.broadcast %30 : vector<2x8x1xf32> to vector<2x8x16xf32>
    %32 = arith.mulf %27, %31 : vector<2x8x16xf32>
    %33 = arith.truncf %32 : vector<2x8x16xf32> to vector<2x8x16xbf16>
    "tpu.trace_start"() <{level = 10 : i32, message = "bqk,bkd->bqd"}> : () -> ()
    %cst_20 = arith.constant dense<0.000000e+00> : vector<2x8x4xf32>
    %34 = tpu.matmul %33, %21, %cst_20 {dimension_numbers = #tpu.dot_dimension_numbers<[2], [1], [1], [2], [0, 0, 0, 1, 1, 2], [0], [0]>} : vector<2x8x16xbf16>, vector<2x16x4xbf16>, vector<2x8x4xf32> -> vector<2x8x4xf32>
    "tpu.trace_stop"() : () -> ()
    %35 = vector.shape_cast %34 : vector<2x8x4xf32> to vector<16x4xf32>
    %36 = arith.truncf %35 : vector<16x4xf32> to vector<16x4xbf16>
    %c0_21 = arith.constant 0 : index
    %c0_22 = arith.constant 0 : index
    %c0_23 = arith.constant 0 : index
    %37 = vector.load %arg6[%c0_21, %c0_22, %c0_23] : memref<8x4x32xbf16, #tpu.memory_space<vmem>>, vector<1x4x32xbf16>
    %38 = vector.shape_cast %37 : vector<1x4x32xbf16> to vector<4x32xbf16>
    %cst_24 = arith.constant dense<0.000000e+00> : vector<16x32xf32>
    %39 = tpu.matmul %36, %38, %cst_24 {dimension_numbers = #tpu.dot_dimension_numbers<[1], [0], [0], [1], [0, 0, 1, 1], [], []>} : vector<16x4xbf16>, vector<4x32xbf16>, vector<16x32xf32> -> vector<16x32xf32>
    %40 = arith.addf %6, %39 : vector<16x32xf32>
    %c1 = arith.constant 1 : index
    %c0_25 = arith.constant 0 : index
    %c0_26 = arith.constant 0 : index
    %41 = vector.load %arg3[%c1, %c0_25, %c0_26] : memref<8x32x4xbf16, #tpu.memory_space<vmem>>, vector<1x32x4xbf16>
    %42 = vector.shape_cast %41 : vector<1x32x4xbf16> to vector<32x4xbf16>
    %cst_27 = arith.constant dense<0.000000e+00> : vector<16x4xf32>
    %43 = tpu.matmul %2, %42, %cst_27 {dimension_numbers = #tpu.dot_dimension_numbers<[1], [0], [0], [1], [0, 0, 1, 1], [], []>} : vector<16x32xbf16>, vector<32x4xbf16>, vector<16x4xf32> -> vector<16x4xf32>
    %c1_28 = arith.constant 1 : index
    %c0_29 = arith.constant 0 : index
    %c0_30 = arith.constant 0 : index
    %44 = vector.load %arg4[%c1_28, %c0_29, %c0_30] : memref<8x32x4xbf16, #tpu.memory_space<vmem>>, vector<1x32x4xbf16>
    %45 = vector.shape_cast %44 : vector<1x32x4xbf16> to vector<32x4xbf16>
    %cst_31 = arith.constant dense<0.000000e+00> : vector<32x4xf32>
    %46 = tpu.matmul %5, %45, %cst_31 {dimension_numbers = #tpu.dot_dimension_numbers<[1], [0], [0], [1], [0, 0, 1, 1], [], []>} : vector<32x32xbf16>, vector<32x4xbf16>, vector<32x4xf32> -> vector<32x4xf32>
    %c1_32 = arith.constant 1 : index
    %c0_33 = arith.constant 0 : index
    %c0_34 = arith.constant 0 : index
    %47 = vector.load %arg5[%c1_32, %c0_33, %c0_34] : memref<8x32x4xbf16, #tpu.memory_space<vmem>>, vector<1x32x4xbf16>
    %48 = vector.shape_cast %47 : vector<1x32x4xbf16> to vector<32x4xbf16>
    %cst_35 = arith.constant dense<0.000000e+00> : vector<32x4xf32>
    %49 = tpu.matmul %5, %48, %cst_35 {dimension_numbers = #tpu.dot_dimension_numbers<[1], [0], [0], [1], [0, 0, 1, 1], [], []>} : vector<32x32xbf16>, vector<32x4xbf16>, vector<32x4xf32> -> vector<32x4xf32>
    %50 = vector.shape_cast %43 : vector<16x4xf32> to vector<2x8x4xf32>
    %51 = arith.truncf %50 : vector<2x8x4xf32> to vector<2x8x4xbf16>
    %52 = vector.shape_cast %46 : vector<32x4xf32> to vector<2x16x4xf32>
    %53 = arith.truncf %52 : vector<2x16x4xf32> to vector<2x16x4xbf16>
    %54 = vector.shape_cast %49 : vector<32x4xf32> to vector<2x16x4xf32>
    %55 = arith.truncf %54 : vector<2x16x4xf32> to vector<2x16x4xbf16>
    "tpu.trace_start"() <{level = 10 : i32, message = "bqd,bkd->bqk"}> : () -> ()
    %cst_36 = arith.constant dense<0.000000e+00> : vector<2x8x16xf32>
    %56 = tpu.matmul %51, %53, %cst_36 {dimension_numbers = #tpu.dot_dimension_numbers<[2], [2], [1], [1], [0, 0, 0, 1, 1, 1], [0], [0]>} : vector<2x8x4xbf16>, vector<2x16x4xbf16>, vector<2x8x16xf32> -> vector<2x8x16xf32>
    "tpu.trace_stop"() : () -> ()
    %cst_37 = arith.constant dense<0xFF800000> : vector<2x8xf32>
    %57 = vector.multi_reduction <maximumf>, %56, %cst_37 [2] : vector<2x8x16xf32> to vector<2x8xf32>
    %58 = vector.shape_cast %57 : vector<2x8xf32> to vector<2x8x1xf32>
    %59 = vector.broadcast %58 : vector<2x8x1xf32> to vector<2x8x16xf32>
    %60 = arith.subf %56, %59 : vector<2x8x16xf32>
    %61 = math.exp %60 : vector<2x8x16xf32>
    %cst_38 = arith.constant dense<0.000000e+00> : vector<2x8xf32>
    %62 = vector.multi_reduction <add>, %61, %cst_38 [2] : vector<2x8x16xf32> to vector<2x8xf32>
    %63 = vector.shape_cast %62 : vector<2x8xf32> to vector<2x8x1xf32>
    %64 = tpu.reciprocal %63 {approx = true} : vector<2x8x1xf32> -> vector<2x8x1xf32>
    %65 = vector.broadcast %64 : vector<2x8x1xf32> to vector<2x8x16xf32>
    %66 = arith.mulf %61, %65 : vector<2x8x16xf32>
    %67 = arith.truncf %66 : vector<2x8x16xf32> to vector<2x8x16xbf16>
    "tpu.trace_start"() <{level = 10 : i32, message = "bqk,bkd->bqd"}> : () -> ()
    %cst_39 = arith.constant dense<0.000000e+00> : vector<2x8x4xf32>
    %68 = tpu.matmul %67, %55, %cst_39 {dimension_numbers = #tpu.dot_dimension_numbers<[2], [1], [1], [2], [0, 0, 0, 1, 1, 2], [0], [0]>} : vector<2x8x16xbf16>, vector<2x16x4xbf16>, vector<2x8x4xf32> -> vector<2x8x4xf32>
    "tpu.trace_stop"() : () -> ()
    %69 = vector.shape_cast %68 : vector<2x8x4xf32> to vector<16x4xf32>
    %70 = arith.truncf %69 : vector<16x4xf32> to vector<16x4xbf16>
    %c1_40 = arith.constant 1 : index
    %c0_41 = arith.constant 0 : index
    %c0_42 = arith.constant 0 : index
    %71 = vector.load %arg6[%c1_40, %c0_41, %c0_42] : memref<8x4x32xbf16, #tpu.memory_space<vmem>>, vector<1x4x32xbf16>
    %72 = vector.shape_cast %71 : vector<1x4x32xbf16> to vector<4x32xbf16>
    %cst_43 = arith.constant dense<0.000000e+00> : vector<16x32xf32>
    %73 = tpu.matmul %70, %72, %cst_43 {dimension_numbers = #tpu.dot_dimension_numbers<[1], [0], [0], [1], [0, 0, 1, 1], [], []>} : vector<16x4xbf16>, vector<4x32xbf16>, vector<16x32xf32> -> vector<16x32xf32>
    %74 = arith.addf %40, %73 : vector<16x32xf32>
    %c2 = arith.constant 2 : index
    %c0_44 = arith.constant 0 : index
    %c0_45 = arith.constant 0 : index
    %75 = vector.load %arg3[%c2, %c0_44, %c0_45] : memref<8x32x4xbf16, #tpu.memory_space<vmem>>, vector<1x32x4xbf16>
    %76 = vector.shape_cast %75 : vector<1x32x4xbf16> to vector<32x4xbf16>
    %cst_46 = arith.constant dense<0.000000e+00> : vector<16x4xf32>
    %77 = tpu.matmul %2, %76, %cst_46 {dimension_numbers = #tpu.dot_dimension_numbers<[1], [0], [0], [1], [0, 0, 1, 1], [], []>} : vector<16x32xbf16>, vector<32x4xbf16>, vector<16x4xf32> -> vector<16x4xf32>
    %c2_47 = arith.constant 2 : index
    %c0_48 = arith.constant 0 : index
    %c0_49 = arith.constant 0 : index
    %78 = vector.load %arg4[%c2_47, %c0_48, %c0_49] : memref<8x32x4xbf16, #tpu.memory_space<vmem>>, vector<1x32x4xbf16>
    %79 = vector.shape_cast %78 : vector<1x32x4xbf16> to vector<32x4xbf16>
    %cst_50 = arith.constant dense<0.000000e+00> : vector<32x4xf32>
    %80 = tpu.matmul %5, %79, %cst_50 {dimension_numbers = #tpu.dot_dimension_numbers<[1], [0], [0], [1], [0, 0, 1, 1], [], []>} : vector<32x32xbf16>, vector<32x4xbf16>, vector<32x4xf32> -> vector<32x4xf32>
    %c2_51 = arith.constant 2 : index
    %c0_52 = arith.constant 0 : index
    %c0_53 = arith.constant 0 : index
    %81 = vector.load %arg5[%c2_51, %c0_52, %c0_53] : memref<8x32x4xbf16, #tpu.memory_space<vmem>>, vector<1x32x4xbf16>
    %82 = vector.shape_cast %81 : vector<1x32x4xbf16> to vector<32x4xbf16>
    %cst_54 = arith.constant dense<0.000000e+00> : vector<32x4xf32>
    %83 = tpu.matmul %5, %82, %cst_54 {dimension_numbers = #tpu.dot_dimension_numbers<[1], [0], [0], [1], [0, 0, 1, 1], [], []>} : vector<32x32xbf16>, vector<32x4xbf16>, vector<32x4xf32> -> vector<32x4xf32>
    %84 = vector.shape_cast %77 : vector<16x4xf32> to vector<2x8x4xf32>
    %85 = arith.truncf %84 : vector<2x8x4xf32> to vector<2x8x4xbf16>
    %86 = vector.shape_cast %80 : vector<32x4xf32> to vector<2x16x4xf32>
    %87 = arith.truncf %86 : vector<2x16x4xf32> to vector<2x16x4xbf16>
    %88 = vector.shape_cast %83 : vector<32x4xf32> to vector<2x16x4xf32>
    %89 = arith.truncf %88 : vector<2x16x4xf32> to vector<2x16x4xbf16>
    "tpu.trace_start"() <{level = 10 : i32, message = "bqd,bkd->bqk"}> : () -> ()
    %cst_55 = arith.constant dense<0.000000e+00> : vector<2x8x16xf32>
    %90 = tpu.matmul %85, %87, %cst_55 {dimension_numbers = #tpu.dot_dimension_numbers<[2], [2], [1], [1], [0, 0, 0, 1, 1, 1], [0], [0]>} : vector<2x8x4xbf16>, vector<2x16x4xbf16>, vector<2x8x16xf32> -> vector<2x8x16xf32>
    "tpu.trace_stop"() : () -> ()
    %cst_56 = arith.constant dense<0xFF800000> : vector<2x8xf32>
    %91 = vector.multi_reduction <maximumf>, %90, %cst_56 [2] : vector<2x8x16xf32> to vector<2x8xf32>
    %92 = vector.shape_cast %91 : vector<2x8xf32> to vector<2x8x1xf32>
    %93 = vector.broadcast %92 : vector<2x8x1xf32> to vector<2x8x16xf32>
    %94 = arith.subf %90, %93 : vector<2x8x16xf32>
    %95 = math.exp %94 : vector<2x8x16xf32>
    %cst_57 = arith.constant dense<0.000000e+00> : vector<2x8xf32>
    %96 = vector.multi_reduction <add>, %95, %cst_57 [2] : vector<2x8x16xf32> to vector<2x8xf32>
    %97 = vector.shape_cast %96 : vector<2x8xf32> to vector<2x8x1xf32>
    %98 = tpu.reciprocal %97 {approx = true} : vector<2x8x1xf32> -> vector<2x8x1xf32>
    %99 = vector.broadcast %98 : vector<2x8x1xf32> to vector<2x8x16xf32>
    %100 = arith.mulf %95, %99 : vector<2x8x16xf32>
    %101 = arith.truncf %100 : vector<2x8x16xf32> to vector<2x8x16xbf16>
    "tpu.trace_start"() <{level = 10 : i32, message = "bqk,bkd->bqd"}> : () -> ()
    %cst_58 = arith.constant dense<0.000000e+00> : vector<2x8x4xf32>
    %102 = tpu.matmul %101, %89, %cst_58 {dimension_numbers = #tpu.dot_dimension_numbers<[2], [1], [1], [2], [0, 0, 0, 1, 1, 2], [0], [0]>} : vector<2x8x16xbf16>, vector<2x16x4xbf16>, vector<2x8x4xf32> -> vector<2x8x4xf32>
    "tpu.trace_stop"() : () -> ()
    %103 = vector.shape_cast %102 : vector<2x8x4xf32> to vector<16x4xf32>
    %104 = arith.truncf %103 : vector<16x4xf32> to vector<16x4xbf16>
    %c2_59 = arith.constant 2 : index
    %c0_60 = arith.constant 0 : index
    %c0_61 = arith.constant 0 : index
    %105 = vector.load %arg6[%c2_59, %c0_60, %c0_61] : memref<8x4x32xbf16, #tpu.memory_space<vmem>>, vector<1x4x32xbf16>
    %106 = vector.shape_cast %105 : vector<1x4x32xbf16> to vector<4x32xbf16>
    %cst_62 = arith.constant dense<0.000000e+00> : vector<16x32xf32>
    %107 = tpu.matmul %104, %106, %cst_62 {dimension_numbers = #tpu.dot_dimension_numbers<[1], [0], [0], [1], [0, 0, 1, 1], [], []>} : vector<16x4xbf16>, vector<4x32xbf16>, vector<16x32xf32> -> vector<16x32xf32>
    %108 = arith.addf %74, %107 : vector<16x32xf32>
    %c3 = arith.constant 3 : index
    %c0_63 = arith.constant 0 : index
    %c0_64 = arith.constant 0 : index
    %109 = vector.load %arg3[%c3, %c0_63, %c0_64] : memref<8x32x4xbf16, #tpu.memory_space<vmem>>, vector<1x32x4xbf16>
    %110 = vector.shape_cast %109 : vector<1x32x4xbf16> to vector<32x4xbf16>
    %cst_65 = arith.constant dense<0.000000e+00> : vector<16x4xf32>
    %111 = tpu.matmul %2, %110, %cst_65 {dimension_numbers = #tpu.dot_dimension_numbers<[1], [0], [0], [1], [0, 0, 1, 1], [], []>} : vector<16x32xbf16>, vector<32x4xbf16>, vector<16x4xf32> -> vector<16x4xf32>
    %c3_66 = arith.constant 3 : index
    %c0_67 = arith.constant 0 : index
    %c0_68 = arith.constant 0 : index
    %112 = vector.load %arg4[%c3_66, %c0_67, %c0_68] : memref<8x32x4xbf16, #tpu.memory_space<vmem>>, vector<1x32x4xbf16>
    %113 = vector.shape_cast %112 : vector<1x32x4xbf16> to vector<32x4xbf16>
    %cst_69 = arith.constant dense<0.000000e+00> : vector<32x4xf32>
    %114 = tpu.matmul %5, %113, %cst_69 {dimension_numbers = #tpu.dot_dimension_numbers<[1], [0], [0], [1], [0, 0, 1, 1], [], []>} : vector<32x32xbf16>, vector<32x4xbf16>, vector<32x4xf32> -> vector<32x4xf32>
    %c3_70 = arith.constant 3 : index
    %c0_71 = arith.constant 0 : index
    %c0_72 = arith.constant 0 : index
    %115 = vector.load %arg5[%c3_70, %c0_71, %c0_72] : memref<8x32x4xbf16, #tpu.memory_space<vmem>>, vector<1x32x4xbf16>
    %116 = vector.shape_cast %115 : vector<1x32x4xbf16> to vector<32x4xbf16>
    %cst_73 = arith.constant dense<0.000000e+00> : vector<32x4xf32>
    %117 = tpu.matmul %5, %116, %cst_73 {dimension_numbers = #tpu.dot_dimension_numbers<[1], [0], [0], [1], [0, 0, 1, 1], [], []>} : vector<32x32xbf16>, vector<32x4xbf16>, vector<32x4xf32> -> vector<32x4xf32>
    %118 = vector.shape_cast %111 : vector<16x4xf32> to vector<2x8x4xf32>
    %119 = arith.truncf %118 : vector<2x8x4xf32> to vector<2x8x4xbf16>
    %120 = vector.shape_cast %114 : vector<32x4xf32> to vector<2x16x4xf32>
    %121 = arith.truncf %120 : vector<2x16x4xf32> to vector<2x16x4xbf16>
    %122 = vector.shape_cast %117 : vector<32x4xf32> to vector<2x16x4xf32>
    %123 = arith.truncf %122 : vector<2x16x4xf32> to vector<2x16x4xbf16>
    "tpu.trace_start"() <{level = 10 : i32, message = "bqd,bkd->bqk"}> : () -> ()
    %cst_74 = arith.constant dense<0.000000e+00> : vector<2x8x16xf32>
    %124 = tpu.matmul %119, %121, %cst_74 {dimension_numbers = #tpu.dot_dimension_numbers<[2], [2], [1], [1], [0, 0, 0, 1, 1, 1], [0], [0]>} : vector<2x8x4xbf16>, vector<2x16x4xbf16>, vector<2x8x16xf32> -> vector<2x8x16xf32>
    "tpu.trace_stop"() : () -> ()
    %cst_75 = arith.constant dense<0xFF800000> : vector<2x8xf32>
    %125 = vector.multi_reduction <maximumf>, %124, %cst_75 [2] : vector<2x8x16xf32> to vector<2x8xf32>
    %126 = vector.shape_cast %125 : vector<2x8xf32> to vector<2x8x1xf32>
    %127 = vector.broadcast %126 : vector<2x8x1xf32> to vector<2x8x16xf32>
    %128 = arith.subf %124, %127 : vector<2x8x16xf32>
    %129 = math.exp %128 : vector<2x8x16xf32>
    %cst_76 = arith.constant dense<0.000000e+00> : vector<2x8xf32>
    %130 = vector.multi_reduction <add>, %129, %cst_76 [2] : vector<2x8x16xf32> to vector<2x8xf32>
    %131 = vector.shape_cast %130 : vector<2x8xf32> to vector<2x8x1xf32>
    %132 = tpu.reciprocal %131 {approx = true} : vector<2x8x1xf32> -> vector<2x8x1xf32>
    %133 = vector.broadcast %132 : vector<2x8x1xf32> to vector<2x8x16xf32>
    %134 = arith.mulf %129, %133 : vector<2x8x16xf32>
    %135 = arith.truncf %134 : vector<2x8x16xf32> to vector<2x8x16xbf16>
    "tpu.trace_start"() <{level = 10 : i32, message = "bqk,bkd->bqd"}> : () -> ()
    %cst_77 = arith.constant dense<0.000000e+00> : vector<2x8x4xf32>
    %136 = tpu.matmul %135, %123, %cst_77 {dimension_numbers = #tpu.dot_dimension_numbers<[2], [1], [1], [2], [0, 0, 0, 1, 1, 2], [0], [0]>} : vector<2x8x16xbf16>, vector<2x16x4xbf16>, vector<2x8x4xf32> -> vector<2x8x4xf32>
    "tpu.trace_stop"() : () -> ()
    %137 = vector.shape_cast %136 : vector<2x8x4xf32> to vector<16x4xf32>
    %138 = arith.truncf %137 : vector<16x4xf32> to vector<16x4xbf16>
    %c3_78 = arith.constant 3 : index
    %c0_79 = arith.constant 0 : index
    %c0_80 = arith.constant 0 : index
    %139 = vector.load %arg6[%c3_78, %c0_79, %c0_80] : memref<8x4x32xbf16, #tpu.memory_space<vmem>>, vector<1x4x32xbf16>
    %140 = vector.shape_cast %139 : vector<1x4x32xbf16> to vector<4x32xbf16>
    %cst_81 = arith.constant dense<0.000000e+00> : vector<16x32xf32>
    %141 = tpu.matmul %138, %140, %cst_81 {dimension_numbers = #tpu.dot_dimension_numbers<[1], [0], [0], [1], [0, 0, 1, 1], [], []>} : vector<16x4xbf16>, vector<4x32xbf16>, vector<16x32xf32> -> vector<16x32xf32>
    %142 = arith.addf %108, %141 : vector<16x32xf32>
    %c4 = arith.constant 4 : index
    %c0_82 = arith.constant 0 : index
    %c0_83 = arith.constant 0 : index
    %143 = vector.load %arg3[%c4, %c0_82, %c0_83] : memref<8x32x4xbf16, #tpu.memory_space<vmem>>, vector<1x32x4xbf16>
    %144 = vector.shape_cast %143 : vector<1x32x4xbf16> to vector<32x4xbf16>
    %cst_84 = arith.constant dense<0.000000e+00> : vector<16x4xf32>
    %145 = tpu.matmul %2, %144, %cst_84 {dimension_numbers = #tpu.dot_dimension_numbers<[1], [0], [0], [1], [0, 0, 1, 1], [], []>} : vector<16x32xbf16>, vector<32x4xbf16>, vector<16x4xf32> -> vector<16x4xf32>
    %c4_85 = arith.constant 4 : index
    %c0_86 = arith.constant 0 : index
    %c0_87 = arith.constant 0 : index
    %146 = vector.load %arg4[%c4_85, %c0_86, %c0_87] : memref<8x32x4xbf16, #tpu.memory_space<vmem>>, vector<1x32x4xbf16>
    %147 = vector.shape_cast %146 : vector<1x32x4xbf16> to vector<32x4xbf16>
    %cst_88 = arith.constant dense<0.000000e+00> : vector<32x4xf32>
    %148 = tpu.matmul %5, %147, %cst_88 {dimension_numbers = #tpu.dot_dimension_numbers<[1], [0], [0], [1], [0, 0, 1, 1], [], []>} : vector<32x32xbf16>, vector<32x4xbf16>, vector<32x4xf32> -> vector<32x4xf32>
    %c4_89 = arith.constant 4 : index
    %c0_90 = arith.constant 0 : index
    %c0_91 = arith.constant 0 : index
    %149 = vector.load %arg5[%c4_89, %c0_90, %c0_91] : memref<8x32x4xbf16, #tpu.memory_space<vmem>>, vector<1x32x4xbf16>
    %150 = vector.shape_cast %149 : vector<1x32x4xbf16> to vector<32x4xbf16>
    %cst_92 = arith.constant dense<0.000000e+00> : vector<32x4xf32>
    %151 = tpu.matmul %5, %150, %cst_92 {dimension_numbers = #tpu.dot_dimension_numbers<[1], [0], [0], [1], [0, 0, 1, 1], [], []>} : vector<32x32xbf16>, vector<32x4xbf16>, vector<32x4xf32> -> vector<32x4xf32>
    %152 = vector.shape_cast %145 : vector<16x4xf32> to vector<2x8x4xf32>
    %153 = arith.truncf %152 : vector<2x8x4xf32> to vector<2x8x4xbf16>
    %154 = vector.shape_cast %148 : vector<32x4xf32> to vector<2x16x4xf32>
    %155 = arith.truncf %154 : vector<2x16x4xf32> to vector<2x16x4xbf16>
    %156 = vector.shape_cast %151 : vector<32x4xf32> to vector<2x16x4xf32>
    %157 = arith.truncf %156 : vector<2x16x4xf32> to vector<2x16x4xbf16>
    "tpu.trace_start"() <{level = 10 : i32, message = "bqd,bkd->bqk"}> : () -> ()
    %cst_93 = arith.constant dense<0.000000e+00> : vector<2x8x16xf32>
    %158 = tpu.matmul %153, %155, %cst_93 {dimension_numbers = #tpu.dot_dimension_numbers<[2], [2], [1], [1], [0, 0, 0, 1, 1, 1], [0], [0]>} : vector<2x8x4xbf16>, vector<2x16x4xbf16>, vector<2x8x16xf32> -> vector<2x8x16xf32>
    "tpu.trace_stop"() : () -> ()
    %cst_94 = arith.constant dense<0xFF800000> : vector<2x8xf32>
    %159 = vector.multi_reduction <maximumf>, %158, %cst_94 [2] : vector<2x8x16xf32> to vector<2x8xf32>
    %160 = vector.shape_cast %159 : vector<2x8xf32> to vector<2x8x1xf32>
    %161 = vector.broadcast %160 : vector<2x8x1xf32> to vector<2x8x16xf32>
    %162 = arith.subf %158, %161 : vector<2x8x16xf32>
    %163 = math.exp %162 : vector<2x8x16xf32>
    %cst_95 = arith.constant dense<0.000000e+00> : vector<2x8xf32>
    %164 = vector.multi_reduction <add>, %163, %cst_95 [2] : vector<2x8x16xf32> to vector<2x8xf32>
    %165 = vector.shape_cast %164 : vector<2x8xf32> to vector<2x8x1xf32>
    %166 = tpu.reciprocal %165 {approx = true} : vector<2x8x1xf32> -> vector<2x8x1xf32>
    %167 = vector.broadcast %166 : vector<2x8x1xf32> to vector<2x8x16xf32>
    %168 = arith.mulf %163, %167 : vector<2x8x16xf32>
    %169 = arith.truncf %168 : vector<2x8x16xf32> to vector<2x8x16xbf16>
    "tpu.trace_start"() <{level = 10 : i32, message = "bqk,bkd->bqd"}> : () -> ()
    %cst_96 = arith.constant dense<0.000000e+00> : vector<2x8x4xf32>
    %170 = tpu.matmul %169, %157, %cst_96 {dimension_numbers = #tpu.dot_dimension_numbers<[2], [1], [1], [2], [0, 0, 0, 1, 1, 2], [0], [0]>} : vector<2x8x16xbf16>, vector<2x16x4xbf16>, vector<2x8x4xf32> -> vector<2x8x4xf32>
    "tpu.trace_stop"() : () -> ()
    %171 = vector.shape_cast %170 : vector<2x8x4xf32> to vector<16x4xf32>
    %172 = arith.truncf %171 : vector<16x4xf32> to vector<16x4xbf16>
    %c4_97 = arith.constant 4 : index
    %c0_98 = arith.constant 0 : index
    %c0_99 = arith.constant 0 : index
    %173 = vector.load %arg6[%c4_97, %c0_98, %c0_99] : memref<8x4x32xbf16, #tpu.memory_space<vmem>>, vector<1x4x32xbf16>
    %174 = vector.shape_cast %173 : vector<1x4x32xbf16> to vector<4x32xbf16>
    %cst_100 = arith.constant dense<0.000000e+00> : vector<16x32xf32>
    %175 = tpu.matmul %172, %174, %cst_100 {dimension_numbers = #tpu.dot_dimension_numbers<[1], [0], [0], [1], [0, 0, 1, 1], [], []>} : vector<16x4xbf16>, vector<4x32xbf16>, vector<16x32xf32> -> vector<16x32xf32>
    %176 = arith.addf %142, %175 : vector<16x32xf32>
    %c5 = arith.constant 5 : index
    %c0_101 = arith.constant 0 : index
    %c0_102 = arith.constant 0 : index
    %177 = vector.load %arg3[%c5, %c0_101, %c0_102] : memref<8x32x4xbf16, #tpu.memory_space<vmem>>, vector<1x32x4xbf16>
    %178 = vector.shape_cast %177 : vector<1x32x4xbf16> to vector<32x4xbf16>
    %cst_103 = arith.constant dense<0.000000e+00> : vector<16x4xf32>
    %179 = tpu.matmul %2, %178, %cst_103 {dimension_numbers = #tpu.dot_dimension_numbers<[1], [0], [0], [1], [0, 0, 1, 1], [], []>} : vector<16x32xbf16>, vector<32x4xbf16>, vector<16x4xf32> -> vector<16x4xf32>
    %c5_104 = arith.constant 5 : index
    %c0_105 = arith.constant 0 : index
    %c0_106 = arith.constant 0 : index
    %180 = vector.load %arg4[%c5_104, %c0_105, %c0_106] : memref<8x32x4xbf16, #tpu.memory_space<vmem>>, vector<1x32x4xbf16>
    %181 = vector.shape_cast %180 : vector<1x32x4xbf16> to vector<32x4xbf16>
    %cst_107 = arith.constant dense<0.000000e+00> : vector<32x4xf32>
    %182 = tpu.matmul %5, %181, %cst_107 {dimension_numbers = #tpu.dot_dimension_numbers<[1], [0], [0], [1], [0, 0, 1, 1], [], []>} : vector<32x32xbf16>, vector<32x4xbf16>, vector<32x4xf32> -> vector<32x4xf32>
    %c5_108 = arith.constant 5 : index
    %c0_109 = arith.constant 0 : index
    %c0_110 = arith.constant 0 : index
    %183 = vector.load %arg5[%c5_108, %c0_109, %c0_110] : memref<8x32x4xbf16, #tpu.memory_space<vmem>>, vector<1x32x4xbf16>
    %184 = vector.shape_cast %183 : vector<1x32x4xbf16> to vector<32x4xbf16>
    %cst_111 = arith.constant dense<0.000000e+00> : vector<32x4xf32>
    %185 = tpu.matmul %5, %184, %cst_111 {dimension_numbers = #tpu.dot_dimension_numbers<[1], [0], [0], [1], [0, 0, 1, 1], [], []>} : vector<32x32xbf16>, vector<32x4xbf16>, vector<32x4xf32> -> vector<32x4xf32>
    %186 = vector.shape_cast %179 : vector<16x4xf32> to vector<2x8x4xf32>
    %187 = arith.truncf %186 : vector<2x8x4xf32> to vector<2x8x4xbf16>
    %188 = vector.shape_cast %182 : vector<32x4xf32> to vector<2x16x4xf32>
    %189 = arith.truncf %188 : vector<2x16x4xf32> to vector<2x16x4xbf16>
    %190 = vector.shape_cast %185 : vector<32x4xf32> to vector<2x16x4xf32>
    %191 = arith.truncf %190 : vector<2x16x4xf32> to vector<2x16x4xbf16>
    "tpu.trace_start"() <{level = 10 : i32, message = "bqd,bkd->bqk"}> : () -> ()
    %cst_112 = arith.constant dense<0.000000e+00> : vector<2x8x16xf32>
    %192 = tpu.matmul %187, %189, %cst_112 {dimension_numbers = #tpu.dot_dimension_numbers<[2], [2], [1], [1], [0, 0, 0, 1, 1, 1], [0], [0]>} : vector<2x8x4xbf16>, vector<2x16x4xbf16>, vector<2x8x16xf32> -> vector<2x8x16xf32>
    "tpu.trace_stop"() : () -> ()
    %cst_113 = arith.constant dense<0xFF800000> : vector<2x8xf32>
    %193 = vector.multi_reduction <maximumf>, %192, %cst_113 [2] : vector<2x8x16xf32> to vector<2x8xf32>
    %194 = vector.shape_cast %193 : vector<2x8xf32> to vector<2x8x1xf32>
    %195 = vector.broadcast %194 : vector<2x8x1xf32> to vector<2x8x16xf32>
    %196 = arith.subf %192, %195 : vector<2x8x16xf32>
    %197 = math.exp %196 : vector<2x8x16xf32>
    %cst_114 = arith.constant dense<0.000000e+00> : vector<2x8xf32>
    %198 = vector.multi_reduction <add>, %197, %cst_114 [2] : vector<2x8x16xf32> to vector<2x8xf32>
    %199 = vector.shape_cast %198 : vector<2x8xf32> to vector<2x8x1xf32>
    %200 = tpu.reciprocal %199 {approx = true} : vector<2x8x1xf32> -> vector<2x8x1xf32>
    %201 = vector.broadcast %200 : vector<2x8x1xf32> to vector<2x8x16xf32>
    %202 = arith.mulf %197, %201 : vector<2x8x16xf32>
    %203 = arith.truncf %202 : vector<2x8x16xf32> to vector<2x8x16xbf16>
    "tpu.trace_start"() <{level = 10 : i32, message = "bqk,bkd->bqd"}> : () -> ()
    %cst_115 = arith.constant dense<0.000000e+00> : vector<2x8x4xf32>
    %204 = tpu.matmul %203, %191, %cst_115 {dimension_numbers = #tpu.dot_dimension_numbers<[2], [1], [1], [2], [0, 0, 0, 1, 1, 2], [0], [0]>} : vector<2x8x16xbf16>, vector<2x16x4xbf16>, vector<2x8x4xf32> -> vector<2x8x4xf32>
    "tpu.trace_stop"() : () -> ()
    %205 = vector.shape_cast %204 : vector<2x8x4xf32> to vector<16x4xf32>
    %206 = arith.truncf %205 : vector<16x4xf32> to vector<16x4xbf16>
    %c5_116 = arith.constant 5 : index
    %c0_117 = arith.constant 0 : index
    %c0_118 = arith.constant 0 : index
    %207 = vector.load %arg6[%c5_116, %c0_117, %c0_118] : memref<8x4x32xbf16, #tpu.memory_space<vmem>>, vector<1x4x32xbf16>
    %208 = vector.shape_cast %207 : vector<1x4x32xbf16> to vector<4x32xbf16>
    %cst_119 = arith.constant dense<0.000000e+00> : vector<16x32xf32>
    %209 = tpu.matmul %206, %208, %cst_119 {dimension_numbers = #tpu.dot_dimension_numbers<[1], [0], [0], [1], [0, 0, 1, 1], [], []>} : vector<16x4xbf16>, vector<4x32xbf16>, vector<16x32xf32> -> vector<16x32xf32>
    %210 = arith.addf %176, %209 : vector<16x32xf32>
    %c6 = arith.constant 6 : index
    %c0_120 = arith.constant 0 : index
    %c0_121 = arith.constant 0 : index
    %211 = vector.load %arg3[%c6, %c0_120, %c0_121] : memref<8x32x4xbf16, #tpu.memory_space<vmem>>, vector<1x32x4xbf16>
    %212 = vector.shape_cast %211 : vector<1x32x4xbf16> to vector<32x4xbf16>
    %cst_122 = arith.constant dense<0.000000e+00> : vector<16x4xf32>
    %213 = tpu.matmul %2, %212, %cst_122 {dimension_numbers = #tpu.dot_dimension_numbers<[1], [0], [0], [1], [0, 0, 1, 1], [], []>} : vector<16x32xbf16>, vector<32x4xbf16>, vector<16x4xf32> -> vector<16x4xf32>
    %c6_123 = arith.constant 6 : index
    %c0_124 = arith.constant 0 : index
    %c0_125 = arith.constant 0 : index
    %214 = vector.load %arg4[%c6_123, %c0_124, %c0_125] : memref<8x32x4xbf16, #tpu.memory_space<vmem>>, vector<1x32x4xbf16>
    %215 = vector.shape_cast %214 : vector<1x32x4xbf16> to vector<32x4xbf16>
    %cst_126 = arith.constant dense<0.000000e+00> : vector<32x4xf32>
    %216 = tpu.matmul %5, %215, %cst_126 {dimension_numbers = #tpu.dot_dimension_numbers<[1], [0], [0], [1], [0, 0, 1, 1], [], []>} : vector<32x32xbf16>, vector<32x4xbf16>, vector<32x4xf32> -> vector<32x4xf32>
    %c6_127 = arith.constant 6 : index
    %c0_128 = arith.constant 0 : index
    %c0_129 = arith.constant 0 : index
    %217 = vector.load %arg5[%c6_127, %c0_128, %c0_129] : memref<8x32x4xbf16, #tpu.memory_space<vmem>>, vector<1x32x4xbf16>
    %218 = vector.shape_cast %217 : vector<1x32x4xbf16> to vector<32x4xbf16>
    %cst_130 = arith.constant dense<0.000000e+00> : vector<32x4xf32>
    %219 = tpu.matmul %5, %218, %cst_130 {dimension_numbers = #tpu.dot_dimension_numbers<[1], [0], [0], [1], [0, 0, 1, 1], [], []>} : vector<32x32xbf16>, vector<32x4xbf16>, vector<32x4xf32> -> vector<32x4xf32>
    %220 = vector.shape_cast %213 : vector<16x4xf32> to vector<2x8x4xf32>
    %221 = arith.truncf %220 : vector<2x8x4xf32> to vector<2x8x4xbf16>
    %222 = vector.shape_cast %216 : vector<32x4xf32> to vector<2x16x4xf32>
    %223 = arith.truncf %222 : vector<2x16x4xf32> to vector<2x16x4xbf16>
    %224 = vector.shape_cast %219 : vector<32x4xf32> to vector<2x16x4xf32>
    %225 = arith.truncf %224 : vector<2x16x4xf32> to vector<2x16x4xbf16>
    "tpu.trace_start"() <{level = 10 : i32, message = "bqd,bkd->bqk"}> : () -> ()
    %cst_131 = arith.constant dense<0.000000e+00> : vector<2x8x16xf32>
    %226 = tpu.matmul %221, %223, %cst_131 {dimension_numbers = #tpu.dot_dimension_numbers<[2], [2], [1], [1], [0, 0, 0, 1, 1, 1], [0], [0]>} : vector<2x8x4xbf16>, vector<2x16x4xbf16>, vector<2x8x16xf32> -> vector<2x8x16xf32>
    "tpu.trace_stop"() : () -> ()
    %cst_132 = arith.constant dense<0xFF800000> : vector<2x8xf32>
    %227 = vector.multi_reduction <maximumf>, %226, %cst_132 [2] : vector<2x8x16xf32> to vector<2x8xf32>
    %228 = vector.shape_cast %227 : vector<2x8xf32> to vector<2x8x1xf32>
    %229 = vector.broadcast %228 : vector<2x8x1xf32> to vector<2x8x16xf32>
    %230 = arith.subf %226, %229 : vector<2x8x16xf32>
    %231 = math.exp %230 : vector<2x8x16xf32>
    %cst_133 = arith.constant dense<0.000000e+00> : vector<2x8xf32>
    %232 = vector.multi_reduction <add>, %231, %cst_133 [2] : vector<2x8x16xf32> to vector<2x8xf32>
    %233 = vector.shape_cast %232 : vector<2x8xf32> to vector<2x8x1xf32>
    %234 = tpu.reciprocal %233 {approx = true} : vector<2x8x1xf32> -> vector<2x8x1xf32>
    %235 = vector.broadcast %234 : vector<2x8x1xf32> to vector<2x8x16xf32>
    %236 = arith.mulf %231, %235 : vector<2x8x16xf32>
    %237 = arith.truncf %236 : vector<2x8x16xf32> to vector<2x8x16xbf16>
    "tpu.trace_start"() <{level = 10 : i32, message = "bqk,bkd->bqd"}> : () -> ()
    %cst_134 = arith.constant dense<0.000000e+00> : vector<2x8x4xf32>
    %238 = tpu.matmul %237, %225, %cst_134 {dimension_numbers = #tpu.dot_dimension_numbers<[2], [1], [1], [2], [0, 0, 0, 1, 1, 2], [0], [0]>} : vector<2x8x16xbf16>, vector<2x16x4xbf16>, vector<2x8x4xf32> -> vector<2x8x4xf32>
    "tpu.trace_stop"() : () -> ()
    %239 = vector.shape_cast %238 : vector<2x8x4xf32> to vector<16x4xf32>
    %240 = arith.truncf %239 : vector<16x4xf32> to vector<16x4xbf16>
    %c6_135 = arith.constant 6 : index
    %c0_136 = arith.constant 0 : index
    %c0_137 = arith.constant 0 : index
    %241 = vector.load %arg6[%c6_135, %c0_136, %c0_137] : memref<8x4x32xbf16, #tpu.memory_space<vmem>>, vector<1x4x32xbf16>
    %242 = vector.shape_cast %241 : vector<1x4x32xbf16> to vector<4x32xbf16>
    %cst_138 = arith.constant dense<0.000000e+00> : vector<16x32xf32>
    %243 = tpu.matmul %240, %242, %cst_138 {dimension_numbers = #tpu.dot_dimension_numbers<[1], [0], [0], [1], [0, 0, 1, 1], [], []>} : vector<16x4xbf16>, vector<4x32xbf16>, vector<16x32xf32> -> vector<16x32xf32>
    %244 = arith.addf %210, %243 : vector<16x32xf32>
    %c7 = arith.constant 7 : index
    %c0_139 = arith.constant 0 : index
    %c0_140 = arith.constant 0 : index
    %245 = vector.load %arg3[%c7, %c0_139, %c0_140] : memref<8x32x4xbf16, #tpu.memory_space<vmem>>, vector<1x32x4xbf16>
    %246 = vector.shape_cast %245 : vector<1x32x4xbf16> to vector<32x4xbf16>
    %cst_141 = arith.constant dense<0.000000e+00> : vector<16x4xf32>
    %247 = tpu.matmul %2, %246, %cst_141 {dimension_numbers = #tpu.dot_dimension_numbers<[1], [0], [0], [1], [0, 0, 1, 1], [], []>} : vector<16x32xbf16>, vector<32x4xbf16>, vector<16x4xf32> -> vector<16x4xf32>
    %c7_142 = arith.constant 7 : index
    %c0_143 = arith.constant 0 : index
    %c0_144 = arith.constant 0 : index
    %248 = vector.load %arg4[%c7_142, %c0_143, %c0_144] : memref<8x32x4xbf16, #tpu.memory_space<vmem>>, vector<1x32x4xbf16>
    %249 = vector.shape_cast %248 : vector<1x32x4xbf16> to vector<32x4xbf16>
    %cst_145 = arith.constant dense<0.000000e+00> : vector<32x4xf32>
    %250 = tpu.matmul %5, %249, %cst_145 {dimension_numbers = #tpu.dot_dimension_numbers<[1], [0], [0], [1], [0, 0, 1, 1], [], []>} : vector<32x32xbf16>, vector<32x4xbf16>, vector<32x4xf32> -> vector<32x4xf32>
    %c7_146 = arith.constant 7 : index
    %c0_147 = arith.constant 0 : index
    %c0_148 = arith.constant 0 : index
    %251 = vector.load %arg5[%c7_146, %c0_147, %c0_148] : memref<8x32x4xbf16, #tpu.memory_space<vmem>>, vector<1x32x4xbf16>
    %252 = vector.shape_cast %251 : vector<1x32x4xbf16> to vector<32x4xbf16>
    %cst_149 = arith.constant dense<0.000000e+00> : vector<32x4xf32>
    %253 = tpu.matmul %5, %252, %cst_149 {dimension_numbers = #tpu.dot_dimension_numbers<[1], [0], [0], [1], [0, 0, 1, 1], [], []>} : vector<32x32xbf16>, vector<32x4xbf16>, vector<32x4xf32> -> vector<32x4xf32>
    %254 = vector.shape_cast %247 : vector<16x4xf32> to vector<2x8x4xf32>
    %255 = arith.truncf %254 : vector<2x8x4xf32> to vector<2x8x4xbf16>
    %256 = vector.shape_cast %250 : vector<32x4xf32> to vector<2x16x4xf32>
    %257 = arith.truncf %256 : vector<2x16x4xf32> to vector<2x16x4xbf16>
    %258 = vector.shape_cast %253 : vector<32x4xf32> to vector<2x16x4xf32>
    %259 = arith.truncf %258 : vector<2x16x4xf32> to vector<2x16x4xbf16>
    "tpu.trace_start"() <{level = 10 : i32, message = "bqd,bkd->bqk"}> : () -> ()
    %cst_150 = arith.constant dense<0.000000e+00> : vector<2x8x16xf32>
    %260 = tpu.matmul %255, %257, %cst_150 {dimension_numbers = #tpu.dot_dimension_numbers<[2], [2], [1], [1], [0, 0, 0, 1, 1, 1], [0], [0]>} : vector<2x8x4xbf16>, vector<2x16x4xbf16>, vector<2x8x16xf32> -> vector<2x8x16xf32>
    "tpu.trace_stop"() : () -> ()
    %cst_151 = arith.constant dense<0xFF800000> : vector<2x8xf32>
    %261 = vector.multi_reduction <maximumf>, %260, %cst_151 [2] : vector<2x8x16xf32> to vector<2x8xf32>
    %262 = vector.shape_cast %261 : vector<2x8xf32> to vector<2x8x1xf32>
    %263 = vector.broadcast %262 : vector<2x8x1xf32> to vector<2x8x16xf32>
    %264 = arith.subf %260, %263 : vector<2x8x16xf32>
    %265 = math.exp %264 : vector<2x8x16xf32>
    %cst_152 = arith.constant dense<0.000000e+00> : vector<2x8xf32>
    %266 = vector.multi_reduction <add>, %265, %cst_152 [2] : vector<2x8x16xf32> to vector<2x8xf32>
    %267 = vector.shape_cast %266 : vector<2x8xf32> to vector<2x8x1xf32>
    %268 = tpu.reciprocal %267 {approx = true} : vector<2x8x1xf32> -> vector<2x8x1xf32>
    %269 = vector.broadcast %268 : vector<2x8x1xf32> to vector<2x8x16xf32>
    %270 = arith.mulf %265, %269 : vector<2x8x16xf32>
    %271 = arith.truncf %270 : vector<2x8x16xf32> to vector<2x8x16xbf16>
    "tpu.trace_start"() <{level = 10 : i32, message = "bqk,bkd->bqd"}> : () -> ()
    %cst_153 = arith.constant dense<0.000000e+00> : vector<2x8x4xf32>
    %272 = tpu.matmul %271, %259, %cst_153 {dimension_numbers = #tpu.dot_dimension_numbers<[2], [1], [1], [2], [0, 0, 0, 1, 1, 2], [0], [0]>} : vector<2x8x16xbf16>, vector<2x16x4xbf16>, vector<2x8x4xf32> -> vector<2x8x4xf32>
    "tpu.trace_stop"() : () -> ()
    %273 = vector.shape_cast %272 : vector<2x8x4xf32> to vector<16x4xf32>
    %274 = arith.truncf %273 : vector<16x4xf32> to vector<16x4xbf16>
    %c7_154 = arith.constant 7 : index
    %c0_155 = arith.constant 0 : index
    %c0_156 = arith.constant 0 : index
    %275 = vector.load %arg6[%c7_154, %c0_155, %c0_156] : memref<8x4x32xbf16, #tpu.memory_space<vmem>>, vector<1x4x32xbf16>
    %276 = vector.shape_cast %275 : vector<1x4x32xbf16> to vector<4x32xbf16>
    %cst_157 = arith.constant dense<0.000000e+00> : vector<16x32xf32>
    %277 = tpu.matmul %274, %276, %cst_157 {dimension_numbers = #tpu.dot_dimension_numbers<[1], [0], [0], [1], [0, 0, 1, 1], [], []>} : vector<16x4xbf16>, vector<4x32xbf16>, vector<16x32xf32> -> vector<16x32xf32>
    %278 = arith.addf %244, %277 : vector<16x32xf32>
    %c0_158 = arith.constant 0 : index
    %c0_159 = arith.constant 0 : index
    %279 = vector.load %arg7[%c0_158, %c0_159] : memref<1x32xf32, #tpu.memory_space<vmem>>, vector<1x32xf32>
    %280 = vector.broadcast %279 : vector<1x32xf32> to vector<16x32xf32>
    %281 = arith.addf %278, %280 : vector<16x32xf32>
    %282 = vector.shape_cast %281 : vector<16x32xf32> to vector<2x8x32xf32>
    %c0_160 = arith.constant 0 : index
    %c0_161 = arith.constant 0 : index
    %c0_162 = arith.constant 0 : index
    %283 = vector.load %arg8[%c0_160, %c0_161, %c0_162] : memref<2x8x32xf32, #tpu.memory_space<vmem>>, vector<2x8x32xf32>
    tpu.vector_store %arg8[%c0_160, %c0_161, %c0_162], %282 {strides = array<i32>} : memref<2x8x32xf32, #tpu.memory_space<vmem>>, vector<2x8x32xf32>,
    return
  }
  func.func @transform_0(%arg0: i32) -> (i32, i32, i32) {
    %c0_i32 = arith.constant 0 : i32
    %c0_i32_0 = arith.constant 0 : i32
    %c0_i32_1 = arith.constant 0 : i32
    return %arg0, %c0_i32, %c0_i32_0 : i32, i32, i32
  }
  func.func @transform_1(%arg0: i32) -> (i32, i32, i32) {
    %c0_i32 = arith.constant 0 : i32
    %c0_i32_0 = arith.constant 0 : i32
    %c0_i32_1 = arith.constant 0 : i32
    return %arg0, %c0_i32, %c0_i32_0 : i32, i32, i32
  }
  func.func @transform_2(%arg0: i32) -> (i32, i32, i32) {
    %c0_i32 = arith.constant 0 : i32
    %c0_i32_0 = arith.constant 0 : i32
    %c0_i32_1 = arith.constant 0 : i32
    %c0_i32_2 = arith.constant 0 : i32
    return %c0_i32, %c0_i32_0, %c0_i32_1 : i32, i32, i32
  }
  func.func @transform_3(%arg0: i32) -> (i32, i32, i32) {
    %c0_i32 = arith.constant 0 : i32
    %c0_i32_0 = arith.constant 0 : i32
    %c0_i32_1 = arith.constant 0 : i32
    %c0_i32_2 = arith.constant 0 : i32
    return %c0_i32, %c0_i32_0, %c0_i32_1 : i32, i32, i32
  }
  func.func @transform_4(%arg0: i32) -> (i32, i32, i32) {
    %c0_i32 = arith.constant 0 : i32
    %c0_i32_0 = arith.constant 0 : i32
    %c0_i32_1 = arith.constant 0 : i32
    %c0_i32_2 = arith.constant 0 : i32
    return %c0_i32, %c0_i32_0, %c0_i32_1 : i32, i32, i32
  }
  func.func @transform_5(%arg0: i32) -> (i32, i32, i32) {
    %c0_i32 = arith.constant 0 : i32
    %c0_i32_0 = arith.constant 0 : i32
    %c0_i32_1 = arith.constant 0 : i32
    %c0_i32_2 = arith.constant 0 : i32
    return %c0_i32, %c0_i32_0, %c0_i32_1 : i32, i32, i32
  }
  func.func @transform_6(%arg0: i32) -> (i32, i32) {
    %c0_i32 = arith.constant 0 : i32
    %c0_i32_0 = arith.constant 0 : i32
    %c0_i32_1 = arith.constant 0 : i32
    return %c0_i32, %c0_i32_0 : i32, i32
  }
  func.func @transform_7(%arg0: i32) -> (i32, i32, i32) {
    %c0_i32 = arith.constant 0 : i32
    %c0_i32_0 = arith.constant 0 : i32
    %c0_i32_1 = arith.constant 0 : i32
    return %arg0, %c0_i32, %c0_i32_0 : i32, i32, i32
  }
}

</mosaic_0001>

<llo_original>
// kernel: tpu_custom_call.1
$region0: #{tpu_custom_call.1}
  #allocation0 [shape = 'u32[]', space=smem, size = 0x4, offset = 0x4, fixed_abs, tag = 'smem constant byte address 0x4 - core index']
  #allocation1 [shape = 'u32[144,128]{1,0:T(1,128)}', space=vmem, size = 0x12000, scoped, tag = 'internal scratch']
  %s0 = inlined_call_operand.vmem [shape: f32[2,8,32], index: 0, kind: input, shape index: {}]
  %s1 = inlined_call_operand.vmem [shape: f32[2,16,32], index: 1, kind: input, shape index: {}]
  %s2 = inlined_call_operand.vmem [shape: bf16[8,32,4], index: 2, kind: input, shape index: {}]
  %s3 = inlined_call_operand.vmem [shape: bf16[8,32,4], index: 3, kind: input, shape index: {}]
  %s4 = inlined_call_operand.vmem [shape: bf16[8,32,4], index: 4, kind: input, shape index: {}]
  %s5 = inlined_call_operand.vmem [shape: bf16[8,4,32], index: 5, kind: input, shape index: {}]
  %s6 = inlined_call_operand.vmem [shape: f32[1,32], index: 6, kind: input, shape index: {}]
  %s7 = inlined_call_operand.hbm [shape: f32[2,8,32], index: 7, kind: output, shape index: {}]
  %s8 = sld [smem:[#allocation0]]
  $region38: #{tpu_custom_call.1} parent=0
    _
  %s10 = ssub.s32 1, %s8
  %s11 = scalar_select 0, %s10, %s8
  $region1: #{tpu_custom_call.1} parent=0
    #allocation2 [shape = 'u8[8192]{0}', space=vmem, size = 0x2000, scoped, tag = 'output window, operand 0, single buffered']
    #allocation3 [shape = 's32[1]{0}', space=sflag, size = 0x4, scoped, tag = 'scoped memory for tpu_custom_call.1']
    %12 = vsyncpa [#allocation3], 0
    // Predicated region
    $region2: #{tpu_custom_call.1} parent=1 // pred_check
      _
    $region3: #{tpu_custom_call.1} parent=1 // pred_check_branch
      %14 = sbr.rel (0) target = $region5
    $region4: #{tpu_custom_call.1} parent=1 // pred_region
      _
    $region5: #{tpu_custom_call.1} parent=1 // pred_fallthru
      _
    // Predicated region
    $region6: #{tpu_custom_call.1} parent=1 // pred_check
      _
    $region7: #{tpu_custom_call.1} parent=1 // pred_check_branch
      %16 = sbr.rel (0) target = $region9
    $region8: #{tpu_custom_call.1} parent=1 // pred_region
      _
    $region9: #{tpu_custom_call.1} parent=1 // pred_fallthru
      _
    // Predicated region
    $region10: #{tpu_custom_call.1} parent=1 // pred_check
      _
    $region11: #{tpu_custom_call.1} parent=1 // pred_check_branch
      %18 = sbr.rel (0) target = $region13
    $region12: #{tpu_custom_call.1} parent=1 // pred_region
      _
    $region13: #{tpu_custom_call.1} parent=1 // pred_fallthru
      _
    // Predicated region
    $region14: #{tpu_custom_call.1} parent=1 // pred_check
      _
    $region15: #{tpu_custom_call.1} parent=1 // pred_check_branch
      %20 = sbr.rel (0) target = $region17
    $region16: #{tpu_custom_call.1} parent=1 // pred_region
      _
    $region17: #{tpu_custom_call.1} parent=1 // pred_fallthru
      _
    // Predicated region
    $region18: #{tpu_custom_call.1} parent=1 // pred_check
      _
    $region19: #{tpu_custom_call.1} parent=1 // pred_check_branch
      %22 = sbr.rel (0) target = $region21
    $region20: #{tpu_custom_call.1} parent=1 // pred_region
      _
    $region21: #{tpu_custom_call.1} parent=1 // pred_fallthru
      _
    // Predicated region
    $region22: #{tpu_custom_call.1} parent=1 // pred_check
      _
    $region23: #{tpu_custom_call.1} parent=1 // pred_check_branch
      %24 = sbr.rel (0) target = $region25
    $region24: #{tpu_custom_call.1} parent=1 // pred_region
      _
    $region25: #{tpu_custom_call.1} parent=1 // pred_fallthru
      _
    // Predicated region
    $region26: #{tpu_custom_call.1} parent=1 // pred_check
      _
    $region27: #{tpu_custom_call.1} parent=1 // pred_check_branch
      %26 = sbr.rel (0) target = $region29
    $region28: #{tpu_custom_call.1} parent=1 // pred_region
      _
    $region29: #{tpu_custom_call.1} parent=1 // pred_fallthru
      _
    %v28 = vld [vmem:[%s0] sm:$0xff]
    %v29 = vld [vmem:[%s0 + $0x8] sm:$0xff]
    %v30 = vpack.c.bf16 %v29, %v28
    %v31 = vld [vmem:[%s1] sm:$0xff]
    %v32 = vld [vmem:[%s1 + $0x8] sm:$0xff]
    %v33 = vld [vmem:[%s1 + $0x10] sm:$0xff]
    %v34 = vld [vmem:[%s1 + $0x18] sm:$0xff]
    %v35 = vpack.c.bf16 %v32, %v31
    %v36 = vpack.c.bf16 %v34, %v33
    %v37 = vld [vmem:[%s2] sm:$0xf]
    %v38 = vld [vmem:[%s2 + $0x4] sm:$0xf]
    %v39 = vld [vmem:[%s2 + $0x8] sm:$0xf]
    %v40 = vld [vmem:[%s2 + $0xc] sm:$0xf]
    %v45 = vunpack.c.l.b16 %v37
    %v46 = vunpack.c.l.b16 %v38
    %v47 = vunpack.c.l.b16 %v39
    %v48 = vunpack.c.l.b16 %v40
    %v49 = vpack.c.b16 %v46, %v45
    %v50 = vpack.c.b16 %v48, %v47
    %vm53 = vcmask 261120
    %v55 = vsel %vm53, %v30, 0
    %57 = vmatprep.subr.bf16.mxu0 0
    %58 = vmatpush1.bf16.msra.mxu0 0
    %59 = vmatprep.subr.bf16.mxu0 0
    %60 = vmatpush1.bf16.msra.mxu0 0
    %61 = vmatprep.subr.bf16.mxu0 0
    %62 = vmatpush1.bf16.msra.mxu0 0
    %63 = vmatprep.subr.bf16.mxu0 0
    %64 = vmatpush1.bf16.msra.mxu0 0
    %65 = vmatprep.subr.bf16.mxu0 0
    %66 = vmatpush1.bf16.msra.mxu0 0
    %67 = vmatprep.subr.bf16.mxu0 0
    %68 = vmatpush1.bf16.msra.mxu0 0
    %69 = vmatprep.subr.bf16.mxu0 0
    %70 = vmatpush1.bf16.msra.mxu0 %v50
    %71 = vmatprep.subr.bf16.mxu0 0
    %72 = vmatpush1.bf16.msra.mxu0 %v49
    %73 = vmatprep.subr.bf16.mxu0 0
    %74 = vmatpush2.bf16.msra.mxu0 0
    %75 = vmatprep.subr.bf16.mxu0 0
    %76 = vmatpush2.bf16.msra.mxu0 0
    %77 = vmatprep.subr.bf16.mxu0 0
    %78 = vmatpush2.bf16.msra.mxu0 0
    %79 = vmatprep.subr.bf16.mxu0 0
    %80 = vmatpush2.bf16.msra.mxu0 0
    %81 = vmatprep.subr.bf16.mxu0 0
    %82 = vmatpush2.bf16.msra.mxu0 0
    %83 = vmatprep.subr.bf16.mxu0 0
    %84 = vmatpush2.bf16.msra.mxu0 0
    %85 = vmatprep.subr.bf16.mxu0 0
    %86 = vmatpush2.bf16.msra.mxu0 0
    %87 = vmatprep.subr.bf16.mxu0 0
    %88 = vmatpush2.bf16.msra.mxu0 0
    %89 = vmatprep.mubr.bf16.mxu0 0
    %90 = vmatmul.mubr.bf16.gmra.mxu0 %v55
    %v91 = vpop.f32.mrf.mxu0
    %v92 = vadd.f32 0.0, %v91
    %v93 = vpop.f32.mrf.mxu0
    %v94 = vpop.f32.mrf.mxu0
    %v95 = vadd.f32 0.0, %v94
    %v96 = vpop.f32.mrf.mxu0
    %97 = vdwg.mxu0
    %v98 = vld [vmem:[%s3] sm:$0xf]
    %v99 = vld [vmem:[%s3 + $0x4] sm:$0xf]
    %v100 = vld [vmem:[%s3 + $0x8] sm:$0xf]
    %v101 = vld [vmem:[%s3 + $0xc] sm:$0xf]
    %v106 = vunpack.c.l.b16 %v98
    %v107 = vunpack.c.l.b16 %v99
    %v108 = vunpack.c.l.b16 %v100
    %v109 = vunpack.c.l.b16 %v101
    %v110 = vpack.c.b16 %v107, %v106
    %v111 = vpack.c.b16 %v109, %v108
    %v115 = vsel %vm53, %v35, 0
    %v118 = vsel %vm53, %v36, 0
    %120 = vmatprep.subr.bf16.mxu0 0
    %121 = vmatpush1.bf16.msra.mxu0 0
    %122 = vmatprep.subr.bf16.mxu0 0
    %123 = vmatpush1.bf16.msra.mxu0 0
    %124 = vmatprep.subr.bf16.mxu0 0
    %125 = vmatpush1.bf16.msra.mxu0 0
    %126 = vmatprep.subr.bf16.mxu0 0
    %127 = vmatpush1.bf16.msra.mxu0 0
    %128 = vmatprep.subr.bf16.mxu0 0
    %129 = vmatpush1.bf16.msra.mxu0 0
    %130 = vmatprep.subr.bf16.mxu0 0
    %131 = vmatpush1.bf16.msra.mxu0 0
    %132 = vmatprep.subr.bf16.mxu0 0
    %133 = vmatpush1.bf16.msra.mxu0 %v111
    %134 = vmatprep.subr.bf16.mxu0 0
    %135 = vmatpush1.bf16.msra.mxu0 %v110
    %136 = vmatprep.subr.bf16.mxu0 0
    %137 = vmatpush2.bf16.msra.mxu0 0
    %138 = vmatprep.subr.bf16.mxu0 0
    %139 = vmatpush2.bf16.msra.mxu0 0
    %140 = vmatprep.subr.bf16.mxu0 0
    %141 = vmatpush2.bf16.msra.mxu0 0
    %142 = vmatprep.subr.bf16.mxu0 0
    %143 = vmatpush2.bf16.msra.mxu0 0
    %144 = vmatprep.subr.bf16.mxu0 0
    %145 = vmatpush2.bf16.msra.mxu0 0
    %146 = vmatprep.subr.bf16.mxu0 0
    %147 = vmatpush2.bf16.msra.mxu0 0
    %148 = vmatprep.subr.bf16.mxu0 0
    %149 = vmatpush2.bf16.msra.mxu0 0
    %150 = vmatprep.subr.bf16.mxu0 0
    %151 = vmatpush2.bf16.msra.mxu0 0
    %152 = vmatprep.mubr.bf16.mxu0 0
    %153 = vmatmul.mubr.bf16.gmra.mxu0 %v115
    %v154 = vpop.f32.mrf.mxu0
    %v155 = vadd.f32 0.0, %v154
    %v156 = vpop.f32.mrf.mxu0
    %v157 = vpop.f32.mrf.mxu0
    %v158 = vadd.f32 0.0, %v157
    %v159 = vpop.f32.mrf.mxu0
    %160 = vmatprep.mubr.bf16.mxu0 0
    %161 = vmatmul.mubr.bf16.gmra.mxu0 %v118
    %v162 = vpop.f32.mrf.mxu0
    %v163 = vadd.f32 0.0, %v162
    %v164 = vpop.f32.mrf.mxu0
    %v165 = vpop.f32.mrf.mxu0
    %v166 = vadd.f32 0.0, %v165
    %v167 = vpop.f32.mrf.mxu0
    %168 = vdwg.mxu0
    %v169 = vld [vmem:[%s4] sm:$0xf]
    %v170 = vld [vmem:[%s4 + $0x4] sm:$0xf]
    %v171 = vld [vmem:[%s4 + $0x8] sm:$0xf]
    %v172 = vld [vmem:[%s4 + $0xc] sm:$0xf]
    %v177 = vunpack.c.l.b16 %v169
    %v178 = vunpack.c.l.b16 %v170
    %v179 = vunpack.c.l.b16 %v171
    %v180 = vunpack.c.l.b16 %v172
    %v181 = vpack.c.b16 %v178, %v177
    %v182 = vpack.c.b16 %v180, %v179
    %185 = vmatprep.subr.bf16.mxu0 0
    %186 = vmatpush1.bf16.msra.mxu0 0
    %187 = vmatprep.subr.bf16.mxu0 0
    %188 = vmatpush1.bf16.msra.mxu0 0
    %189 = vmatprep.subr.bf16.mxu0 0
    %190 = vmatpush1.bf16.msra.mxu0 0
    %191 = vmatprep.subr.bf16.mxu0 0
    %192 = vmatpush1.bf16.msra.mxu0 0
    %193 = vmatprep.subr.bf16.mxu0 0
    %194 = vmatpush1.bf16.msra.mxu0 0
    %195 = vmatprep.subr.bf16.mxu0 0
    %196 = vmatpush1.bf16.msra.mxu0 0
    %197 = vmatprep.subr.bf16.mxu0 0
    %198 = vmatpush1.bf16.msra.mxu0 %v182
    %199 = vmatprep.subr.bf16.mxu0 0
    %200 = vmatpush1.bf16.msra.mxu0 %v181
    %201 = vmatprep.subr.bf16.mxu0 0
    %202 = vmatpush2.bf16.msra.mxu0 0
    %203 = vmatprep.subr.bf16.mxu0 0
    %204 = vmatpush2.bf16.msra.mxu0 0
    %205 = vmatprep.subr.bf16.mxu0 0
    %206 = vmatpush2.bf16.msra.mxu0 0
    %207 = vmatprep.subr.bf16.mxu0 0
    %208 = vmatpush2.bf16.msra.mxu0 0
    %209 = vmatprep.subr.bf16.mxu0 0
    %210 = vmatpush2.bf16.msra.mxu0 0
    %211 = vmatprep.subr.bf16.mxu0 0
    %212 = vmatpush2.bf16.msra.mxu0 0
    %213 = vmatprep.subr.bf16.mxu0 0
    %214 = vmatpush2.bf16.msra.mxu0 0
    %215 = vmatprep.subr.bf16.mxu0 0
    %216 = vmatpush2.bf16.msra.mxu0 0
    %217 = vmatprep.mubr.bf16.mxu0 0
    %218 = vmatmul.mubr.bf16.gmra.mxu0 %v115
    %v219 = vpop.f32.mrf.mxu0
    %v220 = vadd.f32 0.0, %v219
    %v221 = vpop.f32.mrf.mxu0
    %v222 = vpop.f32.mrf.mxu0
    %v223 = vadd.f32 0.0, %v222
    %v224 = vpop.f32.mrf.mxu0
    %225 = vmatprep.mubr.bf16.mxu0 0
    %226 = vmatmul.mubr.bf16.gmra.mxu0 %v118
    %v227 = vpop.f32.mrf.mxu0
    %v228 = vadd.f32 0.0, %v227
    %v229 = vpop.f32.mrf.mxu0
    %v230 = vpop.f32.mrf.mxu0
    %v231 = vadd.f32 0.0, %v230
    %v232 = vpop.f32.mrf.mxu0
    %233 = vdwg.mxu0
    %v234 = vpack.c.bf16 %v92, %v92
    %v235 = vpack.c.bf16 %v95, %v95
    %v236 = vpack.c.bf16 %v158, %v155
    %v237 = vpack.c.bf16 %v166, %v163
    %v238 = vpack.c.bf16 %v223, %v220
    %v239 = vpack.c.bf16 %v231, %v228
    %vm240 = vcmask 31744
    %v242 = vsel %vm240, %v234, 0
    %v245 = vsel %vm240, %v236, 0
    %247 = vmatprep.subr.bf16.mxu0 0
    %248 = vmatpush1.bf16.xpose.msra.mxu0 0
    %249 = vmatprep.subr.bf16.mxu0 0
    %250 = vmatpush1.bf16.xpose.msra.mxu0 0
    %251 = vmatprep.subr.bf16.mxu0 0
    %252 = vmatpush1.bf16.xpose.msra.mxu0 0
    %253 = vmatprep.subr.bf16.mxu0 0
    %254 = vmatpush1.bf16.xpose.msra.mxu0 0
    %255 = vmatprep.subr.bf16.mxu0 0
    %256 = vmatpush1.bf16.xpose.msra.mxu0 0
    %257 = vmatprep.subr.bf16.mxu0 0
    %258 = vmatpush1.bf16.xpose.msra.mxu0 0
    %259 = vmatprep.subr.bf16.mxu0 0
    %260 = vmatpush1.bf16.xpose.msra.mxu0 0
    %261 = vmatprep.subr.bf16.mxu0 0
    %262 = vmatpush1.bf16.xpose.msra.mxu0 %v245
    %263 = vmatprep.subr.bf16.mxu0 0
    %264 = vmatpush2.bf16.xpose.msra.mxu0 0
    %265 = vmatprep.subr.bf16.mxu0 0
    %266 = vmatpush2.bf16.xpose.msra.mxu0 0
    %267 = vmatprep.subr.bf16.mxu0 0
    %268 = vmatpush2.bf16.xpose.msra.mxu0 0
    %269 = vmatprep.subr.bf16.mxu0 0
    %270 = vmatpush2.bf16.xpose.msra.mxu0 0
    %271 = vmatprep.subr.bf16.mxu0 0
    %272 = vmatpush2.bf16.xpose.msra.mxu0 0
    %273 = vmatprep.subr.bf16.mxu0 0
    %274 = vmatpush2.bf16.xpose.msra.mxu0 0
    %275 = vmatprep.subr.bf16.mxu0 0
    %276 = vmatpush2.bf16.xpose.msra.mxu0 0
    %277 = vmatprep.subr.bf16.mxu0 0
    %278 = vmatpush2.bf16.xpose.msra.mxu0 0
    %279 = vmatprep.mubr.bf16.mxu0 0
    %280 = vmatmul.mubr.bf16.gmra.mxu0 %v242
    %v281 = vpop.f32.mrf.mxu0
    %v282 = vadd.f32 0.0, %v281
    %v283 = vpop.f32.mrf.mxu0
    %v284 = vpop.f32.mrf.mxu0
    %v285 = vpop.f32.mrf.mxu0
    %286 = vdwg.mxu0
    %v288 = vsel %vm240, %v235, 0
    %v291 = vsel %vm240, %v237, 0
    %293 = vmatprep.subr.bf16.mxu0 0
    %294 = vmatpush1.bf16.xpose.msra.mxu0 0
    %295 = vmatprep.subr.bf16.mxu0 0
    %296 = vmatpush1.bf16.xpose.msra.mxu0 0
    %297 = vmatprep.subr.bf16.mxu0 0
    %298 = vmatpush1.bf16.xpose.msra.mxu0 0
    %299 = vmatprep.subr.bf16.mxu0 0
    %300 = vmatpush1.bf16.xpose.msra.mxu0 0
    %301 = vmatprep.subr.bf16.mxu0 0
    %302 = vmatpush1.bf16.xpose.msra.mxu0 0
    %303 = vmatprep.subr.bf16.mxu0 0
    %304 = vmatpush1.bf16.xpose.msra.mxu0 0
    %305 = vmatprep.subr.bf16.mxu0 0
    %306 = vmatpush1.bf16.xpose.msra.mxu0 0
    %307 = vmatprep.subr.bf16.mxu0 0
    %308 = vmatpush1.bf16.xpose.msra.mxu0 %v291
    %309 = vmatprep.subr.bf16.mxu0 0
    %310 = vmatpush2.bf16.xpose.msra.mxu0 0
    %311 = vmatprep.subr.bf16.mxu0 0
    %312 = vmatpush2.bf16.xpose.msra.mxu0 0
    %313 = vmatprep.subr.bf16.mxu0 0
    %314 = vmatpush2.bf16.xpose.msra.mxu0 0
    %315 = vmatprep.subr.bf16.mxu0 0
    %316 = vmatpush2.bf16.xpose.msra.mxu0 0
    %317 = vmatprep.subr.bf16.mxu0 0
    %318 = vmatpush2.bf16.xpose.msra.mxu0 0
    %319 = vmatprep.subr.bf16.mxu0 0
    %320 = vmatpush2.bf16.xpose.msra.mxu0 0
    %321 = vmatprep.subr.bf16.mxu0 0
    %322 = vmatpush2.bf16.xpose.msra.mxu0 0
    %323 = vmatprep.subr.bf16.mxu0 0
    %324 = vmatpush2.bf16.xpose.msra.mxu0 0
    %325 = vmatprep.mubr.bf16.mxu0 0
    %326 = vmatmul.mubr.bf16.gmra.mxu0 %v288
    %v327 = vpop.f32.mrf.mxu0
    %v328 = vadd.f32 0.0, %v327
    %v329 = vpop.f32.mrf.mxu0
    %v330 = vpop.f32.mrf.mxu0
    %v331 = vpop.f32.mrf.mxu0
    %332 = vdwg.mxu0
    %vm333 = vcmask 130048
    %v334 = vsel %vm333, %v282, -inf
    %335 = vmax.xlane.f32.xlu0 %v334
    %v336 = vpop.xlane.xlu0 %335
    %v337 = vsel %vm333, %v328, -inf
    %338 = vmax.xlane.f32.xlu0 %v337
    %v339 = vpop.xlane.xlu0 %338
    %v340 = vsub.f32 %v282, %v336
    %v341 = vsub.f32 %v328, %v339
    %v342 = vmul.f32 %v340, 1.442695
    %v343 = vpow.pop %v342
    %v344 = vmul.f32 %v341, 1.442695
    %v345 = vpow.pop %v344
    %v346 = vsel %vm333, %v343, 0.0
    %347 = vadd.xlane.f32.xlu0 %v346
    %v348 = vpop.xlane.xlu0 %347
    %v349 = vsel %vm333, %v345, 0.0
    %350 = vadd.xlane.f32.xlu0 %v349
    %v351 = vpop.xlane.xlu0 %350
    %v352 = vrcp.pop %v348
    %v353 = vrcp.pop %v351
    %v354 = vmul.f32 %v343, %v352
    %v355 = vmul.f32 %v345, %v353
    %v356 = vpack.c.bf16 %v354, %v354
    %v357 = vpack.c.bf16 %v355, %v355
    %v359 = vsel %vm333, %v356, 0
    %361 = vmatprep.subr.bf16.mxu0 0
    %362 = vmatpush1.bf16.msra.mxu0 0
    %363 = vmatprep.subr.bf16.mxu0 0
    %364 = vmatpush1.bf16.msra.mxu0 0
    %365 = vmatprep.subr.bf16.mxu0 0
    %366 = vmatpush1.bf16.msra.mxu0 0
    %367 = vmatprep.subr.bf16.mxu0 0
    %368 = vmatpush1.bf16.msra.mxu0 0
    %369 = vmatprep.subr.bf16.mxu0 0
    %370 = vmatpush1.bf16.msra.mxu0 0
    %371 = vmatprep.subr.bf16.mxu0 0
    %372 = vmatpush1.bf16.msra.mxu0 0
    %373 = vmatprep.subr.bf16.mxu0 0
    %374 = vmatpush1.bf16.msra.mxu0 0
    %375 = vmatprep.subr.bf16.mxu0 0
    %376 = vmatpush1.bf16.msra.mxu0 %v238
    %377 = vmatprep.subr.bf16.mxu0 0
    %378 = vmatpush2.bf16.msra.mxu0 0
    %379 = vmatprep.subr.bf16.mxu0 0
    %380 = vmatpush2.bf16.msra.mxu0 0
    %381 = vmatprep.subr.bf16.mxu0 0
    %382 = vmatpush2.bf16.msra.mxu0 0
    %383 = vmatprep.subr.bf16.mxu0 0
    %384 = vmatpush2.bf16.msra.mxu0 0
    %385 = vmatprep.subr.bf16.mxu0 0
    %386 = vmatpush2.bf16.msra.mxu0 0
    %387 = vmatprep.subr.bf16.mxu0 0
    %388 = vmatpush2.bf16.msra.mxu0 0
    %389 = vmatprep.subr.bf16.mxu0 0
    %390 = vmatpush2.bf16.msra.mxu0 0
    %391 = vmatprep.subr.bf16.mxu0 0
    %392 = vmatpush2.bf16.msra.mxu0 0
    %393 = vmatprep.mubr.bf16.mxu0 0
    %394 = vmatmul.mubr.bf16.gmra.mxu0 %v359
    %v395 = vpop.f32.mrf.mxu0
    %v396 = vadd.f32 0.0, %v395
    %v397 = vpop.f32.mrf.mxu0
    %v398 = vpop.f32.mrf.mxu0
    %v399 = vpop.f32.mrf.mxu0
    %400 = vdwg.mxu0
    %v402 = vsel %vm333, %v357, 0
    %404 = vmatprep.subr.bf16.mxu0 0
    %405 = vmatpush1.bf16.msra.mxu0 0
    %406 = vmatprep.subr.bf16.mxu0 0
    %407 = vmatpush1.bf16.msra.mxu0 0
    %408 = vmatprep.subr.bf16.mxu0 0
    %409 = vmatpush1.bf16.msra.mxu0 0
    %410 = vmatprep.subr.bf16.mxu0 0
    %411 = vmatpush1.bf16.msra.mxu0 0
    %412 = vmatprep.subr.bf16.mxu0 0
    %413 = vmatpush1.bf16.msra.mxu0 0
    %414 = vmatprep.subr.bf16.mxu0 0
    %415 = vmatpush1.bf16.msra.mxu0 0
    %416 = vmatprep.subr.bf16.mxu0 0
    %417 = vmatpush1.bf16.msra.mxu0 0
    %418 = vmatprep.subr.bf16.mxu0 0
    %419 = vmatpush1.bf16.msra.mxu0 %v239
    %420 = vmatprep.subr.bf16.mxu0 0
    %421 = vmatpush2.bf16.msra.mxu0 0
    %422 = vmatprep.subr.bf16.mxu0 0
    %423 = vmatpush2.bf16.msra.mxu0 0
    %424 = vmatprep.subr.bf16.mxu0 0
    %425 = vmatpush2.bf16.msra.mxu0 0
    %426 = vmatprep.subr.bf16.mxu0 0
    %427 = vmatpush2.bf16.msra.mxu0 0
    %428 = vmatprep.subr.bf16.mxu0 0
    %429 = vmatpush2.bf16.msra.mxu0 0
    %430 = vmatprep.subr.bf16.mxu0 0
    %431 = vmatpush2.bf16.msra.mxu0 0
    %432 = vmatprep.subr.bf16.mxu0 0
    %433 = vmatpush2.bf16.msra.mxu0 0
    %434 = vmatprep.subr.bf16.mxu0 0
    %435 = vmatpush2.bf16.msra.mxu0 0
    %436 = vmatprep.mubr.bf16.mxu0 0
    %437 = vmatmul.mubr.bf16.gmra.mxu0 %v402
    %v438 = vpop.f32.mrf.mxu0
    %v439 = vadd.f32 0.0, %v438
    %v440 = vpop.f32.mrf.mxu0
    %v441 = vpop.f32.mrf.mxu0
    %v442 = vpop.f32.mrf.mxu0
    %443 = vdwg.mxu0
    %v444 = vpack.c.bf16 %v439, %v396
    %v445 = vld [vmem:[%s5] sm:$0x3]
    %s446 = scalar_lea.vmem %s2, 16
    %v447 = vld [vmem:[%s446] sm:$0xf]
    %v448 = vld [vmem:[%s446 + $0x4] sm:$0xf]
    %v449 = vld [vmem:[%s446 + $0x8] sm:$0xf]
    %v450 = vld [vmem:[%s446 + $0xc] sm:$0xf]
    %v455 = vunpack.c.l.b16 %v447
    %v456 = vunpack.c.l.b16 %v448
    %v457 = vunpack.c.l.b16 %v449
    %v458 = vunpack.c.l.b16 %v450
    %v459 = vpack.c.b16 %v456, %v455
    %v460 = vpack.c.b16 %v458, %v457
    %463 = vmatprep.subr.bf16.mxu0 0
    %464 = vmatpush1.bf16.msra.mxu0 0
    %465 = vmatprep.subr.bf16.mxu0 0
    %466 = vmatpush1.bf16.msra.mxu0 0
    %467 = vmatprep.subr.bf16.mxu0 0
    %468 = vmatpush1.bf16.msra.mxu0 0
    %469 = vmatprep.subr.bf16.mxu0 0
    %470 = vmatpush1.bf16.msra.mxu0 0
    %471 = vmatprep.subr.bf16.mxu0 0
    %472 = vmatpush1.bf16.msra.mxu0 0
    %473 = vmatprep.subr.bf16.mxu0 0
    %474 = vmatpush1.bf16.msra.mxu0 0
    %475 = vmatprep.subr.bf16.mxu0 0
    %476 = vmatpush1.bf16.msra.mxu0 %v460
    %477 = vmatprep.subr.bf16.mxu0 0
    %478 = vmatpush1.bf16.msra.mxu0 %v459
    %479 = vmatprep.subr.bf16.mxu0 0
    %480 = vmatpush2.bf16.msra.mxu0 0
    %481 = vmatprep.subr.bf16.mxu0 0
    %482 = vmatpush2.bf16.msra.mxu0 0
    %483 = vmatprep.subr.bf16.mxu0 0
    %484 = vmatpush2.bf16.msra.mxu0 0
    %485 = vmatprep.subr.bf16.mxu0 0
    %486 = vmatpush2.bf16.msra.mxu0 0
    %487 = vmatprep.subr.bf16.mxu0 0
    %488 = vmatpush2.bf16.msra.mxu0 0
    %489 = vmatprep.subr.bf16.mxu0 0
    %490 = vmatpush2.bf16.msra.mxu0 0
    %491 = vmatprep.subr.bf16.mxu0 0
    %492 = vmatpush2.bf16.msra.mxu0 0
    %493 = vmatprep.subr.bf16.mxu0 0
    %494 = vmatpush2.bf16.msra.mxu0 0
    %495 = vmatprep.mubr.bf16.mxu0 0
    %496 = vmatmul.mubr.bf16.gmra.mxu0 %v55
    %v497 = vpop.f32.mrf.mxu0
    %v498 = vadd.f32 0.0, %v497
    %v499 = vpop.f32.mrf.mxu0
    %v500 = vpop.f32.mrf.mxu0
    %v501 = vadd.f32 0.0, %v500
    %v502 = vpop.f32.mrf.mxu0
    %503 = vdwg.mxu0
    %s504 = scalar_lea.vmem %s3, 16
    %v505 = vld [vmem:[%s504] sm:$0xf]
    %v506 = vld [vmem:[%s504 + $0x4] sm:$0xf]
    %v507 = vld [vmem:[%s504 + $0x8] sm:$0xf]
    %v508 = vld [vmem:[%s504 + $0xc] sm:$0xf]
    %v513 = vunpack.c.l.b16 %v505
    %v514 = vunpack.c.l.b16 %v506
    %v515 = vunpack.c.l.b16 %v507
    %v516 = vunpack.c.l.b16 %v508
    %v517 = vpack.c.b16 %v514, %v513
    %v518 = vpack.c.b16 %v516, %v515
    %521 = vmatprep.subr.bf16.mxu0 0
    %522 = vmatpush1.bf16.msra.mxu0 0
    %523 = vmatprep.subr.bf16.mxu0 0
    %524 = vmatpush1.bf16.msra.mxu0 0
    %525 = vmatprep.subr.bf16.mxu0 0
    %526 = vmatpush1.bf16.msra.mxu0 0
    %527 = vmatprep.subr.bf16.mxu0 0
    %528 = vmatpush1.bf16.msra.mxu0 0
    %529 = vmatprep.subr.bf16.mxu0 0
    %530 = vmatpush1.bf16.msra.mxu0 0
    %531 = vmatprep.subr.bf16.mxu0 0
    %532 = vmatpush1.bf16.msra.mxu0 0
    %533 = vmatprep.subr.bf16.mxu0 0
    %534 = vmatpush1.bf16.msra.mxu0 %v518
    %535 = vmatprep.subr.bf16.mxu0 0
    %536 = vmatpush1.bf16.msra.mxu0 %v517
    %537 = vmatprep.subr.bf16.mxu0 0
    %538 = vmatpush2.bf16.msra.mxu0 0
    %539 = vmatprep.subr.bf16.mxu0 0
    %540 = vmatpush2.bf16.msra.mxu0 0
    %541 = vmatprep.subr.bf16.mxu0 0
    %542 = vmatpush2.bf16.msra.mxu0 0
    %543 = vmatprep.subr.bf16.mxu0 0
    %544 = vmatpush2.bf16.msra.mxu0 0
    %545 = vmatprep.subr.bf16.mxu0 0
    %546 = vmatpush2.bf16.msra.mxu0 0
    %547 = vmatprep.subr.bf16.mxu0 0
    %548 = vmatpush2.bf16.msra.mxu0 0
    %549 = vmatprep.subr.bf16.mxu0 0
    %550 = vmatpush2.bf16.msra.mxu0 0
    %551 = vmatprep.subr.bf16.mxu0 0
    %552 = vmatpush2.bf16.msra.mxu0 0
    %553 = vmatprep.mubr.bf16.mxu0 0
    %554 = vmatmul.mubr.bf16.gmra.mxu0 %v115
    %v555 = vpop.f32.mrf.mxu0
    %v556 = vadd.f32 0.0, %v555
    %v557 = vpop.f32.mrf.mxu0
    %v558 = vpop.f32.mrf.mxu0
    %v559 = vadd.f32 0.0, %v558
    %v560 = vpop.f32.mrf.mxu0
    %561 = vmatprep.mubr.bf16.mxu0 0
    %562 = vmatmul.mubr.bf16.gmra.mxu0 %v118
    %v563 = vpop.f32.mrf.mxu0
    %v564 = vadd.f32 0.0, %v563
    %v565 = vpop.f32.mrf.mxu0
    %v566 = vpop.f32.mrf.mxu0
    %v567 = vadd.f32 0.0, %v566
    %v568 = vpop.f32.mrf.mxu0
    %569 = vdwg.mxu0
    %s570 = scalar_lea.vmem %s4, 16
    %v571 = vld [vmem:[%s570] sm:$0xf]
    %v572 = vld [vmem:[%s570 + $0x4] sm:$0xf]
    %v573 = vld [vmem:[%s570 + $0x8] sm:$0xf]
    %v574 = vld [vmem:[%s570 + $0xc] sm:$0xf]
    %v579 = vunpack.c.l.b16 %v571
    %v580 = vunpack.c.l.b16 %v572
    %v581 = vunpack.c.l.b16 %v573
    %v582 = vunpack.c.l.b16 %v574
    %v583 = vpack.c.b16 %v580, %v579
    %v584 = vpack.c.b16 %v582, %v581
    %587 = vmatprep.subr.bf16.mxu0 0
    %588 = vmatpush1.bf16.msra.mxu0 0
    %589 = vmatprep.subr.bf16.mxu0 0
    %590 = vmatpush1.bf16.msra.mxu0 0
    %591 = vmatprep.subr.bf16.mxu0 0
    %592 = vmatpush1.bf16.msra.mxu0 0
    %593 = vmatprep.subr.bf16.mxu0 0
    %594 = vmatpush1.bf16.msra.mxu0 0
    %595 = vmatprep.subr.bf16.mxu0 0
    %596 = vmatpush1.bf16.msra.mxu0 0
    %597 = vmatprep.subr.bf16.mxu0 0
    %598 = vmatpush1.bf16.msra.mxu0 0
    %599 = vmatprep.subr.bf16.mxu0 0
    %600 = vmatpush1.bf16.msra.mxu0 %v584
    %601 = vmatprep.subr.bf16.mxu0 0
    %602 = vmatpush1.bf16.msra.mxu0 %v583
    %603 = vmatprep.subr.bf16.mxu0 0
    %604 = vmatpush2.bf16.msra.mxu0 0
    %605 = vmatprep.subr.bf16.mxu0 0
    %606 = vmatpush2.bf16.msra.mxu0 0
    %607 = vmatprep.subr.bf16.mxu0 0
    %608 = vmatpush2.bf16.msra.mxu0 0
    %609 = vmatprep.subr.bf16.mxu0 0
    %610 = vmatpush2.bf16.msra.mxu0 0
    %611 = vmatprep.subr.bf16.mxu0 0
    %612 = vmatpush2.bf16.msra.mxu0 0
    %613 = vmatprep.subr.bf16.mxu0 0
    %614 = vmatpush2.bf16.msra.mxu0 0
    %615 = vmatprep.subr.bf16.mxu0 0
    %616 = vmatpush2.bf16.msra.mxu0 0
    %617 = vmatprep.subr.bf16.mxu0 0
    %618 = vmatpush2.bf16.msra.mxu0 0
    %619 = vmatprep.mubr.bf16.mxu0 0
    %620 = vmatmul.mubr.bf16.gmra.mxu0 %v115
    %v621 = vpop.f32.mrf.mxu0
    %v622 = vadd.f32 0.0, %v621
    %v623 = vpop.f32.mrf.mxu0
    %v624 = vpop.f32.mrf.mxu0
    %v625 = vadd.f32 0.0, %v624
    %v626 = vpop.f32.mrf.mxu0
    %627 = vmatprep.mubr.bf16.mxu0 0
    %628 = vmatmul.mubr.bf16.gmra.mxu0 %v118
    %v629 = vpop.f32.mrf.mxu0
    %v630 = vadd.f32 0.0, %v629
    %v631 = vpop.f32.mrf.mxu0
    %v632 = vpop.f32.mrf.mxu0
    %v633 = vadd.f32 0.0, %v632
    %v634 = vpop.f32.mrf.mxu0
    %635 = vdwg.mxu0
    %v636 = vpack.c.bf16 %v498, %v498
    %v637 = vpack.c.bf16 %v501, %v501
    %v638 = vpack.c.bf16 %v559, %v556
    %v639 = vpack.c.bf16 %v567, %v564
    %v640 = vpack.c.bf16 %v625, %v622
    %v641 = vpack.c.bf16 %v633, %v630
    %v643 = vsel %vm240, %v636, 0
    %v646 = vsel %vm240, %v638, 0
    %648 = vmatprep.subr.bf16.mxu0 0
    %649 = vmatpush1.bf16.xpose.msra.mxu0 0
    %650 = vmatprep.subr.bf16.mxu0 0
    %651 = vmatpush1.bf16.xpose.msra.mxu0 0
    %652 = vmatprep.subr.bf16.mxu0 0
    %653 = vmatpush1.bf16.xpose.msra.mxu0 0
    %654 = vmatprep.subr.bf16.mxu0 0
    %655 = vmatpush1.bf16.xpose.msra.mxu0 0
    %656 = vmatprep.subr.bf16.mxu0 0
    %657 = vmatpush1.bf16.xpose.msra.mxu0 0
    %658 = vmatprep.subr.bf16.mxu0 0
    %659 = vmatpush1.bf16.xpose.msra.mxu0 0
    %660 = vmatprep.subr.bf16.mxu0 0
    %661 = vmatpush1.bf16.xpose.msra.mxu0 0
    %662 = vmatprep.subr.bf16.mxu0 0
    %663 = vmatpush1.bf16.xpose.msra.mxu0 %v646
    %664 = vmatprep.subr.bf16.mxu0 0
    %665 = vmatpush2.bf16.xpose.msra.mxu0 0
    %666 = vmatprep.subr.bf16.mxu0 0
    %667 = vmatpush2.bf16.xpose.msra.mxu0 0
    %668 = vmatprep.subr.bf16.mxu0 0
    %669 = vmatpush2.bf16.xpose.msra.mxu0 0
    %670 = vmatprep.subr.bf16.mxu0 0
    %671 = vmatpush2.bf16.xpose.msra.mxu0 0
    %672 = vmatprep.subr.bf16.mxu0 0
    %673 = vmatpush2.bf16.xpose.msra.mxu0 0
    %674 = vmatprep.subr.bf16.mxu0 0
    %675 = vmatpush2.bf16.xpose.msra.mxu0 0
    %676 = vmatprep.subr.bf16.mxu0 0
    %677 = vmatpush2.bf16.xpose.msra.mxu0 0
    %678 = vmatprep.subr.bf16.mxu0 0
    %679 = vmatpush2.bf16.xpose.msra.mxu0 0
    %680 = vmatprep.mubr.bf16.mxu0 0
    %681 = vmatmul.mubr.bf16.gmra.mxu0 %v643
    %v682 = vpop.f32.mrf.mxu0
    %v683 = vadd.f32 0.0, %v682
    %v684 = vpop.f32.mrf.mxu0
    %v685 = vpop.f32.mrf.mxu0
    %v686 = vpop.f32.mrf.mxu0
    %687 = vdwg.mxu0
    %v689 = vsel %vm240, %v637, 0
    %v692 = vsel %vm240, %v639, 0
    %694 = vmatprep.subr.bf16.mxu0 0
    %695 = vmatpush1.bf16.xpose.msra.mxu0 0
    %696 = vmatprep.subr.bf16.mxu0 0
    %697 = vmatpush1.bf16.xpose.msra.mxu0 0
    %698 = vmatprep.subr.bf16.mxu0 0
    %699 = vmatpush1.bf16.xpose.msra.mxu0 0
    %700 = vmatprep.subr.bf16.mxu0 0
    %701 = vmatpush1.bf16.xpose.msra.mxu0 0
    %702 = vmatprep.subr.bf16.mxu0 0
    %703 = vmatpush1.bf16.xpose.msra.mxu0 0
    %704 = vmatprep.subr.bf16.mxu0 0
    %705 = vmatpush1.bf16.xpose.msra.mxu0 0
    %706 = vmatprep.subr.bf16.mxu0 0
    %707 = vmatpush1.bf16.xpose.msra.mxu0 0
    %708 = vmatprep.subr.bf16.mxu0 0
    %709 = vmatpush1.bf16.xpose.msra.mxu0 %v692
    %710 = vmatprep.subr.bf16.mxu0 0
    %711 = vmatpush2.bf16.xpose.msra.mxu0 0
    %712 = vmatprep.subr.bf16.mxu0 0
    %713 = vmatpush2.bf16.xpose.msra.mxu0 0
    %714 = vmatprep.subr.bf16.mxu0 0
    %715 = vmatpush2.bf16.xpose.msra.mxu0 0
    %716 = vmatprep.subr.bf16.mxu0 0
    %717 = vmatpush2.bf16.xpose.msra.mxu0 0
    %718 = vmatprep.subr.bf16.mxu0 0
    %719 = vmatpush2.bf16.xpose.msra.mxu0 0
    %720 = vmatprep.subr.bf16.mxu0 0
    %721 = vmatpush2.bf16.xpose.msra.mxu0 0
    %722 = vmatprep.subr.bf16.mxu0 0
    %723 = vmatpush2.bf16.xpose.msra.mxu0 0
    %724 = vmatprep.subr.bf16.mxu0 0
    %725 = vmatpush2.bf16.xpose.msra.mxu0 0
    %726 = vmatprep.mubr.bf16.mxu0 0
    %727 = vmatmul.mubr.bf16.gmra.mxu0 %v689
    %v728 = vpop.f32.mrf.mxu0
    %v729 = vadd.f32 0.0, %v728
    %v730 = vpop.f32.mrf.mxu0
    %v731 = vpop.f32.mrf.mxu0
    %v732 = vpop.f32.mrf.mxu0
    %733 = vdwg.mxu0
    %v734 = vsel %vm333, %v683, -inf
    %735 = vmax.xlane.f32.xlu0 %v734
    %v736 = vpop.xlane.xlu0 %735
    %v737 = vsel %vm333, %v729, -inf
    %738 = vmax.xlane.f32.xlu0 %v737
    %v739 = vpop.xlane.xlu0 %738
    %v740 = vsub.f32 %v683, %v736
    %v741 = vsub.f32 %v729, %v739
    %v742 = vmul.f32 %v740, 1.442695
    %v743 = vpow.pop %v742
    %v744 = vmul.f32 %v741, 1.442695
    %v745 = vpow.pop %v744
    %v746 = vsel %vm333, %v743, 0.0
    %747 = vadd.xlane.f32.xlu0 %v746
    %v748 = vpop.xlane.xlu0 %747
    %v749 = vsel %vm333, %v745, 0.0
    %750 = vadd.xlane.f32.xlu0 %v749
    %v751 = vpop.xlane.xlu0 %750
    %v752 = vrcp.pop %v748
    %v753 = vrcp.pop %v751
    %v754 = vmul.f32 %v743, %v752
    %v755 = vmul.f32 %v745, %v753
    %v756 = vpack.c.bf16 %v754, %v754
    %v757 = vpack.c.bf16 %v755, %v755
    %v759 = vsel %vm333, %v756, 0
    %761 = vmatprep.subr.bf16.mxu0 0
    %762 = vmatpush1.bf16.msra.mxu0 0
    %763 = vmatprep.subr.bf16.mxu0 0
    %764 = vmatpush1.bf16.msra.mxu0 0
    %765 = vmatprep.subr.bf16.mxu0 0
    %766 = vmatpush1.bf16.msra.mxu0 0
    %767 = vmatprep.subr.bf16.mxu0 0
    %768 = vmatpush1.bf16.msra.mxu0 0
    %769 = vmatprep.subr.bf16.mxu0 0
    %770 = vmatpush1.bf16.msra.mxu0 0
    %771 = vmatprep.subr.bf16.mxu0 0
    %772 = vmatpush1.bf16.msra.mxu0 0
    %773 = vmatprep.subr.bf16.mxu0 0
    %774 = vmatpush1.bf16.msra.mxu0 0
    %775 = vmatprep.subr.bf16.mxu0 0
    %776 = vmatpush1.bf16.msra.mxu0 %v640
    %777 = vmatprep.subr.bf16.mxu0 0
    %778 = vmatpush2.bf16.msra.mxu0 0
    %779 = vmatprep.subr.bf16.mxu0 0
    %780 = vmatpush2.bf16.msra.mxu0 0
    %781 = vmatprep.subr.bf16.mxu0 0
    %782 = vmatpush2.bf16.msra.mxu0 0
    %783 = vmatprep.subr.bf16.mxu0 0
    %784 = vmatpush2.bf16.msra.mxu0 0
    %785 = vmatprep.subr.bf16.mxu0 0
    %786 = vmatpush2.bf16.msra.mxu0 0
    %787 = vmatprep.subr.bf16.mxu0 0
    %788 = vmatpush2.bf16.msra.mxu0 0
    %789 = vmatprep.subr.bf16.mxu0 0
    %790 = vmatpush2.bf16.msra.mxu0 0
    %791 = vmatprep.subr.bf16.mxu0 0
    %792 = vmatpush2.bf16.msra.mxu0 0
    %793 = vmatprep.mubr.bf16.mxu0 0
    %794 = vmatmul.mubr.bf16.gmra.mxu0 %v759
    %v795 = vpop.f32.mrf.mxu0
    %v796 = vadd.f32 0.0, %v795
    %v797 = vpop.f32.mrf.mxu0
    %v798 = vpop.f32.mrf.mxu0
    %v799 = vpop.f32.mrf.mxu0
    %800 = vdwg.mxu0
    %v802 = vsel %vm333, %v757, 0
    %804 = vmatprep.subr.bf16.mxu0 0
    %805 = vmatpush1.bf16.msra.mxu0 0
    %806 = vmatprep.subr.bf16.mxu0 0
    %807 = vmatpush1.bf16.msra.mxu0 0
    %808 = vmatprep.subr.bf16.mxu0 0
    %809 = vmatpush1.bf16.msra.mxu0 0
    %810 = vmatprep.subr.bf16.mxu0 0
    %811 = vmatpush1.bf16.msra.mxu0 0
    %812 = vmatprep.subr.bf16.mxu0 0
    %813 = vmatpush1.bf16.msra.mxu0 0
    %814 = vmatprep.subr.bf16.mxu0 0
    %815 = vmatpush1.bf16.msra.mxu0 0
    %816 = vmatprep.subr.bf16.mxu0 0
    %817 = vmatpush1.bf16.msra.mxu0 0
    %818 = vmatprep.subr.bf16.mxu0 0
    %819 = vmatpush1.bf16.msra.mxu0 %v641
    %820 = vmatprep.subr.bf16.mxu0 0
    %821 = vmatpush2.bf16.msra.mxu0 0
    %822 = vmatprep.subr.bf16.mxu0 0
    %823 = vmatpush2.bf16.msra.mxu0 0
    %824 = vmatprep.subr.bf16.mxu0 0
    %825 = vmatpush2.bf16.msra.mxu0 0
    %826 = vmatprep.subr.bf16.mxu0 0
    %827 = vmatpush2.bf16.msra.mxu0 0
    %828 = vmatprep.subr.bf16.mxu0 0
    %829 = vmatpush2.bf16.msra.mxu0 0
    %830 = vmatprep.subr.bf16.mxu0 0
    %831 = vmatpush2.bf16.msra.mxu0 0
    %832 = vmatprep.subr.bf16.mxu0 0
    %833 = vmatpush2.bf16.msra.mxu0 0
    %834 = vmatprep.subr.bf16.mxu0 0
    %835 = vmatpush2.bf16.msra.mxu0 0
    %836 = vmatprep.mubr.bf16.mxu0 0
    %837 = vmatmul.mubr.bf16.gmra.mxu0 %v802
    %v838 = vpop.f32.mrf.mxu0
    %v839 = vadd.f32 0.0, %v838
    %v840 = vpop.f32.mrf.mxu0
    %v841 = vpop.f32.mrf.mxu0
    %v842 = vpop.f32.mrf.mxu0
    %843 = vdwg.mxu0
    %v844 = vpack.c.bf16 %v839, %v796
    %s845 = scalar_lea.vmem %s5, 2
    %v846 = vld [vmem:[%s845] sm:$0x3]
    %v848 = vsel %vm240, %v844, 0
    %vm850 = vcmask 1041408
    %v852 = vsel %vm850, %v846, 0
    %854 = vmatprep.subr.bf16.mxu0 0
    %855 = vmatpush1.bf16.msra.mxu0 0
    %856 = vmatprep.subr.bf16.mxu0 0
    %857 = vmatpush1.bf16.msra.mxu0 0
    %858 = vmatprep.subr.bf16.mxu0 0
    %859 = vmatpush1.bf16.msra.mxu0 0
    %860 = vmatprep.subr.bf16.mxu0 0
    %861 = vmatpush1.bf16.msra.mxu0 0
    %862 = vmatprep.subr.bf16.mxu0 0
    %863 = vmatpush1.bf16.msra.mxu0 0
    %864 = vmatprep.subr.bf16.mxu0 0
    %865 = vmatpush1.bf16.msra.mxu0 0
    %866 = vmatprep.subr.bf16.mxu0 0
    %867 = vmatpush1.bf16.msra.mxu0 0
    %868 = vmatprep.subr.bf16.mxu0 0
    %869 = vmatpush1.bf16.msra.mxu0 %v852
    %870 = vmatprep.subr.bf16.mxu0 0
    %871 = vmatpush2.bf16.msra.mxu0 0
    %872 = vmatprep.subr.bf16.mxu0 0
    %873 = vmatpush2.bf16.msra.mxu0 0
    %874 = vmatprep.subr.bf16.mxu0 0
    %875 = vmatpush2.bf16.msra.mxu0 0
    %876 = vmatprep.subr.bf16.mxu0 0
    %877 = vmatpush2.bf16.msra.mxu0 0
    %878 = vmatprep.subr.bf16.mxu0 0
    %879 = vmatpush2.bf16.msra.mxu0 0
    %880 = vmatprep.subr.bf16.mxu0 0
    %881 = vmatpush2.bf16.msra.mxu0 0
    %882 = vmatprep.subr.bf16.mxu0 0
    %883 = vmatpush2.bf16.msra.mxu0 0
    %884 = vmatprep.subr.bf16.mxu0 0
    %885 = vmatpush2.bf16.msra.mxu0 0
    %886 = vmatprep.mubr.bf16.mxu0 0
    %887 = vmatmul.mubr.bf16.gmra.mxu0 %v848
    %v888 = vpop.f32.mrf.mxu0
    %v889 = vadd.f32 0.0, %v888
    %v890 = vpop.f32.mrf.mxu0
    %v891 = vpop.f32.mrf.mxu0
    %v892 = vadd.f32 0.0, %v891
    %v893 = vpop.f32.mrf.mxu0
    %894 = vdwg.mxu0
    %v896 = vsel %vm240, %v444, 0
    %v899 = vsel %vm850, %v445, 0
    %901 = vmatprep.subr.bf16.mxu0 0
    %902 = vmatpush1.bf16.msra.mxu0 0
    %903 = vmatprep.subr.bf16.mxu0 0
    %904 = vmatpush1.bf16.msra.mxu0 0
    %905 = vmatprep.subr.bf16.mxu0 0
    %906 = vmatpush1.bf16.msra.mxu0 0
    %907 = vmatprep.subr.bf16.mxu0 0
    %908 = vmatpush1.bf16.msra.mxu0 0
    %909 = vmatprep.subr.bf16.mxu0 0
    %910 = vmatpush1.bf16.msra.mxu0 0
    %911 = vmatprep.subr.bf16.mxu0 0
    %912 = vmatpush1.bf16.msra.mxu0 0
    %913 = vmatprep.subr.bf16.mxu0 0
    %914 = vmatpush1.bf16.msra.mxu0 0
    %915 = vmatprep.subr.bf16.mxu0 0
    %916 = vmatpush1.bf16.msra.mxu0 %v899
    %917 = vmatprep.subr.bf16.mxu0 0
    %918 = vmatpush2.bf16.msra.mxu0 0
    %919 = vmatprep.subr.bf16.mxu0 0
    %920 = vmatpush2.bf16.msra.mxu0 0
    %921 = vmatprep.subr.bf16.mxu0 0
    %922 = vmatpush2.bf16.msra.mxu0 0
    %923 = vmatprep.subr.bf16.mxu0 0
    %924 = vmatpush2.bf16.msra.mxu0 0
    %925 = vmatprep.subr.bf16.mxu0 0
    %926 = vmatpush2.bf16.msra.mxu0 0
    %927 = vmatprep.subr.bf16.mxu0 0
    %928 = vmatpush2.bf16.msra.mxu0 0
    %929 = vmatprep.subr.bf16.mxu0 0
    %930 = vmatpush2.bf16.msra.mxu0 0
    %931 = vmatprep.subr.bf16.mxu0 0
    %932 = vmatpush2.bf16.msra.mxu0 0
    %933 = vmatprep.mubr.bf16.mxu0 0
    %934 = vmatmul.mubr.bf16.gmra.mxu0 %v896
    %v935 = vpop.f32.mrf.mxu0
    %v936 = vadd.f32 %v889, %v935
    %v937 = vpop.f32.mrf.mxu0
    %v938 = vpop.f32.mrf.mxu0
    %v939 = vadd.f32 %v892, %v938
    %v940 = vpop.f32.mrf.mxu0
    %941 = vdwg.mxu0
    %s942 = scalar_lea.vmem %s2, 32
    %v943 = vld [vmem:[%s942] sm:$0xf]
    %v944 = vld [vmem:[%s942 + $0x4] sm:$0xf]
    %v945 = vld [vmem:[%s942 + $0x8] sm:$0xf]
    %v946 = vld [vmem:[%s942 + $0xc] sm:$0xf]
    %v951 = vunpack.c.l.b16 %v943
    %v952 = vunpack.c.l.b16 %v944
    %v953 = vunpack.c.l.b16 %v945
    %v954 = vunpack.c.l.b16 %v946
    %v955 = vpack.c.b16 %v952, %v951
    %v956 = vpack.c.b16 %v954, %v953
    %959 = vmatprep.subr.bf16.mxu0 0
    %960 = vmatpush1.bf16.msra.mxu0 0
    %961 = vmatprep.subr.bf16.mxu0 0
    %962 = vmatpush1.bf16.msra.mxu0 0
    %963 = vmatprep.subr.bf16.mxu0 0
    %964 = vmatpush1.bf16.msra.mxu0 0
    %965 = vmatprep.subr.bf16.mxu0 0
    %966 = vmatpush1.bf16.msra.mxu0 0
    %967 = vmatprep.subr.bf16.mxu0 0
    %968 = vmatpush1.bf16.msra.mxu0 0
    %969 = vmatprep.subr.bf16.mxu0 0
    %970 = vmatpush1.bf16.msra.mxu0 0
    %971 = vmatprep.subr.bf16.mxu0 0
    %972 = vmatpush1.bf16.msra.mxu0 %v956
    %973 = vmatprep.subr.bf16.mxu0 0
    %974 = vmatpush1.bf16.msra.mxu0 %v955
    %975 = vmatprep.subr.bf16.mxu0 0
    %976 = vmatpush2.bf16.msra.mxu0 0
    %977 = vmatprep.subr.bf16.mxu0 0
    %978 = vmatpush2.bf16.msra.mxu0 0
    %979 = vmatprep.subr.bf16.mxu0 0
    %980 = vmatpush2.bf16.msra.mxu0 0
    %981 = vmatprep.subr.bf16.mxu0 0
    %982 = vmatpush2.bf16.msra.mxu0 0
    %983 = vmatprep.subr.bf16.mxu0 0
    %984 = vmatpush2.bf16.msra.mxu0 0
    %985 = vmatprep.subr.bf16.mxu0 0
    %986 = vmatpush2.bf16.msra.mxu0 0
    %987 = vmatprep.subr.bf16.mxu0 0
    %988 = vmatpush2.bf16.msra.mxu0 0
    %989 = vmatprep.subr.bf16.mxu0 0
    %990 = vmatpush2.bf16.msra.mxu0 0
    %991 = vmatprep.mubr.bf16.mxu0 0
    %992 = vmatmul.mubr.bf16.gmra.mxu0 %v55
    %v993 = vpop.f32.mrf.mxu0
    %v994 = vadd.f32 0.0, %v993
    %v995 = vpop.f32.mrf.mxu0
    %v996 = vpop.f32.mrf.mxu0
    %v997 = vadd.f32 0.0, %v996
    %v998 = vpop.f32.mrf.mxu0
    %999 = vdwg.mxu0
    %s1000 = scalar_lea.vmem %s3, 32
    %v1001 = vld [vmem:[%s1000] sm:$0xf]
    %v1002 = vld [vmem:[%s1000 + $0x4] sm:$0xf]
    %v1003 = vld [vmem:[%s1000 + $0x8] sm:$0xf]
    %v1004 = vld [vmem:[%s1000 + $0xc] sm:$0xf]
    %v1009 = vunpack.c.l.b16 %v1001
    %v1010 = vunpack.c.l.b16 %v1002
    %v1011 = vunpack.c.l.b16 %v1003
    %v1012 = vunpack.c.l.b16 %v1004
    %v1013 = vpack.c.b16 %v1010, %v1009
    %v1014 = vpack.c.b16 %v1012, %v1011
    %1017 = vmatprep.subr.bf16.mxu0 0
    %1018 = vmatpush1.bf16.msra.mxu0 0
    %1019 = vmatprep.subr.bf16.mxu0 0
    %1020 = vmatpush1.bf16.msra.mxu0 0
    %1021 = vmatprep.subr.bf16.mxu0 0
    %1022 = vmatpush1.bf16.msra.mxu0 0
    %1023 = vmatprep.subr.bf16.mxu0 0
    %1024 = vmatpush1.bf16.msra.mxu0 0
    %1025 = vmatprep.subr.bf16.mxu0 0
    %1026 = vmatpush1.bf16.msra.mxu0 0
    %1027 = vmatprep.subr.bf16.mxu0 0
    %1028 = vmatpush1.bf16.msra.mxu0 0
    %1029 = vmatprep.subr.bf16.mxu0 0
    %1030 = vmatpush1.bf16.msra.mxu0 %v1014
    %1031 = vmatprep.subr.bf16.mxu0 0
    %1032 = vmatpush1.bf16.msra.mxu0 %v1013
    %1033 = vmatprep.subr.bf16.mxu0 0
    %1034 = vmatpush2.bf16.msra.mxu0 0
    %1035 = vmatprep.subr.bf16.mxu0 0
    %1036 = vmatpush2.bf16.msra.mxu0 0
    %1037 = vmatprep.subr.bf16.mxu0 0
    %1038 = vmatpush2.bf16.msra.mxu0 0
    %1039 = vmatprep.subr.bf16.mxu0 0
    %1040 = vmatpush2.bf16.msra.mxu0 0
    %1041 = vmatprep.subr.bf16.mxu0 0
    %1042 = vmatpush2.bf16.msra.mxu0 0
    %1043 = vmatprep.subr.bf16.mxu0 0
    %1044 = vmatpush2.bf16.msra.mxu0 0
    %1045 = vmatprep.subr.bf16.mxu0 0
    %1046 = vmatpush2.bf16.msra.mxu0 0
    %1047 = vmatprep.subr.bf16.mxu0 0
    %1048 = vmatpush2.bf16.msra.mxu0 0
    %1049 = vmatprep.mubr.bf16.mxu0 0
    %1050 = vmatmul.mubr.bf16.gmra.mxu0 %v115
    %v1051 = vpop.f32.mrf.mxu0
    %v1052 = vadd.f32 0.0, %v1051
    %v1053 = vpop.f32.mrf.mxu0
    %v1054 = vpop.f32.mrf.mxu0
    %v1055 = vadd.f32 0.0, %v1054
    %v1056 = vpop.f32.mrf.mxu0
    %1057 = vmatprep.mubr.bf16.mxu0 0
    %1058 = vmatmul.mubr.bf16.gmra.mxu0 %v118
    %v1059 = vpop.f32.mrf.mxu0
    %v1060 = vadd.f32 0.0, %v1059
    %v1061 = vpop.f32.mrf.mxu0
    %v1062 = vpop.f32.mrf.mxu0
    %v1063 = vadd.f32 0.0, %v1062
    %v1064 = vpop.f32.mrf.mxu0
    %1065 = vdwg.mxu0
    %s1066 = scalar_lea.vmem %s4, 32
    %v1067 = vld [vmem:[%s1066] sm:$0xf]
    %v1068 = vld [vmem:[%s1066 + $0x4] sm:$0xf]
    %v1069 = vld [vmem:[%s1066 + $0x8] sm:$0xf]
    %v1070 = vld [vmem:[%s1066 + $0xc] sm:$0xf]
    %v1075 = vunpack.c.l.b16 %v1067
    %v1076 = vunpack.c.l.b16 %v1068
    %v1077 = vunpack.c.l.b16 %v1069
    %v1078 = vunpack.c.l.b16 %v1070
    %v1079 = vpack.c.b16 %v1076, %v1075
    %v1080 = vpack.c.b16 %v1078, %v1077
    %1083 = vmatprep.subr.bf16.mxu0 0
    %1084 = vmatpush1.bf16.msra.mxu0 0
    %1085 = vmatprep.subr.bf16.mxu0 0
    %1086 = vmatpush1.bf16.msra.mxu0 0
    %1087 = vmatprep.subr.bf16.mxu0 0
    %1088 = vmatpush1.bf16.msra.mxu0 0
    %1089 = vmatprep.subr.bf16.mxu0 0
    %1090 = vmatpush1.bf16.msra.mxu0 0
    %1091 = vmatprep.subr.bf16.mxu0 0
    %1092 = vmatpush1.bf16.msra.mxu0 0
    %1093 = vmatprep.subr.bf16.mxu0 0
    %1094 = vmatpush1.bf16.msra.mxu0 0
    %1095 = vmatprep.subr.bf16.mxu0 0
    %1096 = vmatpush1.bf16.msra.mxu0 %v1080
    %1097 = vmatprep.subr.bf16.mxu0 0
    %1098 = vmatpush1.bf16.msra.mxu0 %v1079
    %1099 = vmatprep.subr.bf16.mxu0 0
    %1100 = vmatpush2.bf16.msra.mxu0 0
    %1101 = vmatprep.subr.bf16.mxu0 0
    %1102 = vmatpush2.bf16.msra.mxu0 0
    %1103 = vmatprep.subr.bf16.mxu0 0
    %1104 = vmatpush2.bf16.msra.mxu0 0
    %1105 = vmatprep.subr.bf16.mxu0 0
    %1106 = vmatpush2.bf16.msra.mxu0 0
    %1107 = vmatprep.subr.bf16.mxu0 0
    %1108 = vmatpush2.bf16.msra.mxu0 0
    %1109 = vmatprep.subr.bf16.mxu0 0
    %1110 = vmatpush2.bf16.msra.mxu0 0
    %1111 = vmatprep.subr.bf16.mxu0 0
    %1112 = vmatpush2.bf16.msra.mxu0 0
    %1113 = vmatprep.subr.bf16.mxu0 0
    %1114 = vmatpush2.bf16.msra.mxu0 0
    %1115 = vmatprep.mubr.bf16.mxu0 0
    %1116 = vmatmul.mubr.bf16.gmra.mxu0 %v115
    %v1117 = vpop.f32.mrf.mxu0
    %v1118 = vadd.f32 0.0, %v1117
    %v1119 = vpop.f32.mrf.mxu0
    %v1120 = vpop.f32.mrf.mxu0
    %v1121 = vadd.f32 0.0, %v1120
    %v1122 = vpop.f32.mrf.mxu0
    %1123 = vmatprep.mubr.bf16.mxu0 0
    %1124 = vmatmul.mubr.bf16.gmra.mxu0 %v118
    %v1125 = vpop.f32.mrf.mxu0
    %v1126 = vadd.f32 0.0, %v1125
    %v1127 = vpop.f32.mrf.mxu0
    %v1128 = vpop.f32.mrf.mxu0
    %v1129 = vadd.f32 0.0, %v1128
    %v1130 = vpop.f32.mrf.mxu0
    %1131 = vdwg.mxu0
    %v1132 = vpack.c.bf16 %v994, %v994
    %v1133 = vpack.c.bf16 %v997, %v997
    %v1134 = vpack.c.bf16 %v1055, %v1052
    %v1135 = vpack.c.bf16 %v1063, %v1060
    %v1136 = vpack.c.bf16 %v1121, %v1118
    %v1137 = vpack.c.bf16 %v1129, %v1126
    %v1139 = vsel %vm240, %v1132, 0
    %v1142 = vsel %vm240, %v1134, 0
    %1144 = vmatprep.subr.bf16.mxu0 0
    %1145 = vmatpush1.bf16.xpose.msra.mxu0 0
    %1146 = vmatprep.subr.bf16.mxu0 0
    %1147 = vmatpush1.bf16.xpose.msra.mxu0 0
    %1148 = vmatprep.subr.bf16.mxu0 0
    %1149 = vmatpush1.bf16.xpose.msra.mxu0 0
    %1150 = vmatprep.subr.bf16.mxu0 0
    %1151 = vmatpush1.bf16.xpose.msra.mxu0 0
    %1152 = vmatprep.subr.bf16.mxu0 0
    %1153 = vmatpush1.bf16.xpose.msra.mxu0 0
    %1154 = vmatprep.subr.bf16.mxu0 0
    %1155 = vmatpush1.bf16.xpose.msra.mxu0 0
    %1156 = vmatprep.subr.bf16.mxu0 0
    %1157 = vmatpush1.bf16.xpose.msra.mxu0 0
    %1158 = vmatprep.subr.bf16.mxu0 0
    %1159 = vmatpush1.bf16.xpose.msra.mxu0 %v1142
    %1160 = vmatprep.subr.bf16.mxu0 0
    %1161 = vmatpush2.bf16.xpose.msra.mxu0 0
    %1162 = vmatprep.subr.bf16.mxu0 0
    %1163 = vmatpush2.bf16.xpose.msra.mxu0 0
    %1164 = vmatprep.subr.bf16.mxu0 0
    %1165 = vmatpush2.bf16.xpose.msra.mxu0 0
    %1166 = vmatprep.subr.bf16.mxu0 0
    %1167 = vmatpush2.bf16.xpose.msra.mxu0 0
    %1168 = vmatprep.subr.bf16.mxu0 0
    %1169 = vmatpush2.bf16.xpose.msra.mxu0 0
    %1170 = vmatprep.subr.bf16.mxu0 0
    %1171 = vmatpush2.bf16.xpose.msra.mxu0 0
    %1172 = vmatprep.subr.bf16.mxu0 0
    %1173 = vmatpush2.bf16.xpose.msra.mxu0 0
    %1174 = vmatprep.subr.bf16.mxu0 0
    %1175 = vmatpush2.bf16.xpose.msra.mxu0 0
    %1176 = vmatprep.mubr.bf16.mxu0 0
    %1177 = vmatmul.mubr.bf16.gmra.mxu0 %v1139
    %v1178 = vpop.f32.mrf.mxu0
    %v1179 = vadd.f32 0.0, %v1178
    %v1180 = vpop.f32.mrf.mxu0
    %v1181 = vpop.f32.mrf.mxu0
    %v1182 = vpop.f32.mrf.mxu0
    %1183 = vdwg.mxu0
    %v1185 = vsel %vm240, %v1133, 0
    %v1188 = vsel %vm240, %v1135, 0
    %1190 = vmatprep.subr.bf16.mxu0 0
    %1191 = vmatpush1.bf16.xpose.msra.mxu0 0
    %1192 = vmatprep.subr.bf16.mxu0 0
    %1193 = vmatpush1.bf16.xpose.msra.mxu0 0
    %1194 = vmatprep.subr.bf16.mxu0 0
    %1195 = vmatpush1.bf16.xpose.msra.mxu0 0
    %1196 = vmatprep.subr.bf16.mxu0 0
    %1197 = vmatpush1.bf16.xpose.msra.mxu0 0
    %1198 = vmatprep.subr.bf16.mxu0 0
    %1199 = vmatpush1.bf16.xpose.msra.mxu0 0
    %1200 = vmatprep.subr.bf16.mxu0 0
    %1201 = vmatpush1.bf16.xpose.msra.mxu0 0
    %1202 = vmatprep.subr.bf16.mxu0 0
    %1203 = vmatpush1.bf16.xpose.msra.mxu0 0
    %1204 = vmatprep.subr.bf16.mxu0 0
    %1205 = vmatpush1.bf16.xpose.msra.mxu0 %v1188
    %1206 = vmatprep.subr.bf16.mxu0 0
    %1207 = vmatpush2.bf16.xpose.msra.mxu0 0
    %1208 = vmatprep.subr.bf16.mxu0 0
    %1209 = vmatpush2.bf16.xpose.msra.mxu0 0
    %1210 = vmatprep.subr.bf16.mxu0 0
    %1211 = vmatpush2.bf16.xpose.msra.mxu0 0
    %1212 = vmatprep.subr.bf16.mxu0 0
    %1213 = vmatpush2.bf16.xpose.msra.mxu0 0
    %1214 = vmatprep.subr.bf16.mxu0 0
    %1215 = vmatpush2.bf16.xpose.msra.mxu0 0
    %1216 = vmatprep.subr.bf16.mxu0 0
    %1217 = vmatpush2.bf16.xpose.msra.mxu0 0
    %1218 = vmatprep.subr.bf16.mxu0 0
    %1219 = vmatpush2.bf16.xpose.msra.mxu0 0
    %1220 = vmatprep.subr.bf16.mxu0 0
    %1221 = vmatpush2.bf16.xpose.msra.mxu0 0
    %1222 = vmatprep.mubr.bf16.mxu0 0
    %1223 = vmatmul.mubr.bf16.gmra.mxu0 %v1185
    %v1224 = vpop.f32.mrf.mxu0
    %v1225 = vadd.f32 0.0, %v1224
    %v1226 = vpop.f32.mrf.mxu0
    %v1227 = vpop.f32.mrf.mxu0
    %v1228 = vpop.f32.mrf.mxu0
    %1229 = vdwg.mxu0
    %v1230 = vsel %vm333, %v1179, -inf
    %1231 = vmax.xlane.f32.xlu0 %v1230
    %v1232 = vpop.xlane.xlu0 %1231
    %v1233 = vsel %vm333, %v1225, -inf
    %1234 = vmax.xlane.f32.xlu0 %v1233
    %v1235 = vpop.xlane.xlu0 %1234
    %v1236 = vsub.f32 %v1179, %v1232
    %v1237 = vsub.f32 %v1225, %v1235
    %v1238 = vmul.f32 %v1236, 1.442695
    %v1239 = vpow.pop %v1238
    %v1240 = vmul.f32 %v1237, 1.442695
    %v1241 = vpow.pop %v1240
    %v1242 = vsel %vm333, %v1239, 0.0
    %1243 = vadd.xlane.f32.xlu0 %v1242
    %v1244 = vpop.xlane.xlu0 %1243
    %v1245 = vsel %vm333, %v1241, 0.0
    %1246 = vadd.xlane.f32.xlu0 %v1245
    %v1247 = vpop.xlane.xlu0 %1246
    %v1248 = vrcp.pop %v1244
    %v1249 = vrcp.pop %v1247
    %v1250 = vmul.f32 %v1239, %v1248
    %v1251 = vmul.f32 %v1241, %v1249
    %v1252 = vpack.c.bf16 %v1250, %v1250
    %v1253 = vpack.c.bf16 %v1251, %v1251
    %v1255 = vsel %vm333, %v1252, 0
    %1257 = vmatprep.subr.bf16.mxu0 0
    %1258 = vmatpush1.bf16.msra.mxu0 0
    %1259 = vmatprep.subr.bf16.mxu0 0
    %1260 = vmatpush1.bf16.msra.mxu0 0
    %1261 = vmatprep.subr.bf16.mxu0 0
    %1262 = vmatpush1.bf16.msra.mxu0 0
    %1263 = vmatprep.subr.bf16.mxu0 0
    %1264 = vmatpush1.bf16.msra.mxu0 0
    %1265 = vmatprep.subr.bf16.mxu0 0
    %1266 = vmatpush1.bf16.msra.mxu0 0
    %1267 = vmatprep.subr.bf16.mxu0 0
    %1268 = vmatpush1.bf16.msra.mxu0 0
    %1269 = vmatprep.subr.bf16.mxu0 0
    %1270 = vmatpush1.bf16.msra.mxu0 0
    %1271 = vmatprep.subr.bf16.mxu0 0
    %1272 = vmatpush1.bf16.msra.mxu0 %v1136
    %1273 = vmatprep.subr.bf16.mxu0 0
    %1274 = vmatpush2.bf16.msra.mxu0 0
    %1275 = vmatprep.subr.bf16.mxu0 0
    %1276 = vmatpush2.bf16.msra.mxu0 0
    %1277 = vmatprep.subr.bf16.mxu0 0
    %1278 = vmatpush2.bf16.msra.mxu0 0
    %1279 = vmatprep.subr.bf16.mxu0 0
    %1280 = vmatpush2.bf16.msra.mxu0 0
    %1281 = vmatprep.subr.bf16.mxu0 0
    %1282 = vmatpush2.bf16.msra.mxu0 0
    %1283 = vmatprep.subr.bf16.mxu0 0
    %1284 = vmatpush2.bf16.msra.mxu0 0
    %1285 = vmatprep.subr.bf16.mxu0 0
    %1286 = vmatpush2.bf16.msra.mxu0 0
    %1287 = vmatprep.subr.bf16.mxu0 0
    %1288 = vmatpush2.bf16.msra.mxu0 0
    %1289 = vmatprep.mubr.bf16.mxu0 0
    %1290 = vmatmul.mubr.bf16.gmra.mxu0 %v1255
    %v1291 = vpop.f32.mrf.mxu0
    %v1292 = vadd.f32 0.0, %v1291
    %v1293 = vpop.f32.mrf.mxu0
    %v1294 = vpop.f32.mrf.mxu0
    %v1295 = vpop.f32.mrf.mxu0
    %1296 = vdwg.mxu0
    %v1298 = vsel %vm333, %v1253, 0
    %1300 = vmatprep.subr.bf16.mxu0 0
    %1301 = vmatpush1.bf16.msra.mxu0 0
    %1302 = vmatprep.subr.bf16.mxu0 0
    %1303 = vmatpush1.bf16.msra.mxu0 0
    %1304 = vmatprep.subr.bf16.mxu0 0
    %1305 = vmatpush1.bf16.msra.mxu0 0
    %1306 = vmatprep.subr.bf16.mxu0 0
    %1307 = vmatpush1.bf16.msra.mxu0 0
    %1308 = vmatprep.subr.bf16.mxu0 0
    %1309 = vmatpush1.bf16.msra.mxu0 0
    %1310 = vmatprep.subr.bf16.mxu0 0
    %1311 = vmatpush1.bf16.msra.mxu0 0
    %1312 = vmatprep.subr.bf16.mxu0 0
    %1313 = vmatpush1.bf16.msra.mxu0 0
    %1314 = vmatprep.subr.bf16.mxu0 0
    %1315 = vmatpush1.bf16.msra.mxu0 %v1137
    %1316 = vmatprep.subr.bf16.mxu0 0
    %1317 = vmatpush2.bf16.msra.mxu0 0
    %1318 = vmatprep.subr.bf16.mxu0 0
    %1319 = vmatpush2.bf16.msra.mxu0 0
    %1320 = vmatprep.subr.bf16.mxu0 0
    %1321 = vmatpush2.bf16.msra.mxu0 0
    %1322 = vmatprep.subr.bf16.mxu0 0
    %1323 = vmatpush2.bf16.msra.mxu0 0
    %1324 = vmatprep.subr.bf16.mxu0 0
    %1325 = vmatpush2.bf16.msra.mxu0 0
    %1326 = vmatprep.subr.bf16.mxu0 0
    %1327 = vmatpush2.bf16.msra.mxu0 0
    %1328 = vmatprep.subr.bf16.mxu0 0
    %1329 = vmatpush2.bf16.msra.mxu0 0
    %1330 = vmatprep.subr.bf16.mxu0 0
    %1331 = vmatpush2.bf16.msra.mxu0 0
    %1332 = vmatprep.mubr.bf16.mxu0 0
    %1333 = vmatmul.mubr.bf16.gmra.mxu0 %v1298
    %v1334 = vpop.f32.mrf.mxu0
    %v1335 = vadd.f32 0.0, %v1334
    %v1336 = vpop.f32.mrf.mxu0
    %v1337 = vpop.f32.mrf.mxu0
    %v1338 = vpop.f32.mrf.mxu0
    %1339 = vdwg.mxu0
    %v1340 = vpack.c.bf16 %v1335, %v1292
    %s1341 = scalar_lea.vmem %s5, 4
    %v1342 = vld [vmem:[%s1341] sm:$0x3]
    %v1344 = vsel %vm240, %v1340, 0
    %v1347 = vsel %vm850, %v1342, 0
    %1349 = vmatprep.subr.bf16.mxu0 0
    %1350 = vmatpush1.bf16.msra.mxu0 0
    %1351 = vmatprep.subr.bf16.mxu0 0
    %1352 = vmatpush1.bf16.msra.mxu0 0
    %1353 = vmatprep.subr.bf16.mxu0 0
    %1354 = vmatpush1.bf16.msra.mxu0 0
    %1355 = vmatprep.subr.bf16.mxu0 0
    %1356 = vmatpush1.bf16.msra.mxu0 0
    %1357 = vmatprep.subr.bf16.mxu0 0
    %1358 = vmatpush1.bf16.msra.mxu0 0
    %1359 = vmatprep.subr.bf16.mxu0 0
    %1360 = vmatpush1.bf16.msra.mxu0 0
    %1361 = vmatprep.subr.bf16.mxu0 0
    %1362 = vmatpush1.bf16.msra.mxu0 0
    %1363 = vmatprep.subr.bf16.mxu0 0
    %1364 = vmatpush1.bf16.msra.mxu0 %v1347
    %1365 = vmatprep.subr.bf16.mxu0 0
    %1366 = vmatpush2.bf16.msra.mxu0 0
    %1367 = vmatprep.subr.bf16.mxu0 0
    %1368 = vmatpush2.bf16.msra.mxu0 0
    %1369 = vmatprep.subr.bf16.mxu0 0
    %1370 = vmatpush2.bf16.msra.mxu0 0
    %1371 = vmatprep.subr.bf16.mxu0 0
    %1372 = vmatpush2.bf16.msra.mxu0 0
    %1373 = vmatprep.subr.bf16.mxu0 0
    %1374 = vmatpush2.bf16.msra.mxu0 0
    %1375 = vmatprep.subr.bf16.mxu0 0
    %1376 = vmatpush2.bf16.msra.mxu0 0
    %1377 = vmatprep.subr.bf16.mxu0 0
    %1378 = vmatpush2.bf16.msra.mxu0 0
    %1379 = vmatprep.subr.bf16.mxu0 0
    %1380 = vmatpush2.bf16.msra.mxu0 0
    %1381 = vmatprep.mubr.bf16.mxu0 0
    %1382 = vmatmul.mubr.bf16.gmra.mxu0 %v1344
    %v1383 = vpop.f32.mrf.mxu0
    %v1384 = vadd.f32 0.0, %v1383
    %v1385 = vpop.f32.mrf.mxu0
    %v1386 = vpop.f32.mrf.mxu0
    %v1387 = vadd.f32 0.0, %v1386
    %v1388 = vpop.f32.mrf.mxu0
    %1389 = vdwg.mxu0
    %v1390 = vadd.f32 %v936, %v1384
    %v1391 = vadd.f32 %v939, %v1387
    %s1392 = scalar_lea.vmem %s2, 48
    %v1393 = vld [vmem:[%s1392] sm:$0xf]
    %v1394 = vld [vmem:[%s1392 + $0x4] sm:$0xf]
    %v1395 = vld [vmem:[%s1392 + $0x8] sm:$0xf]
    %v1396 = vld [vmem:[%s1392 + $0xc] sm:$0xf]
    %v1401 = vunpack.c.l.b16 %v1393
    %v1402 = vunpack.c.l.b16 %v1394
    %v1403 = vunpack.c.l.b16 %v1395
    %v1404 = vunpack.c.l.b16 %v1396
    %v1405 = vpack.c.b16 %v1402, %v1401
    %v1406 = vpack.c.b16 %v1404, %v1403
    %1409 = vmatprep.subr.bf16.mxu0 0
    %1410 = vmatpush1.bf16.msra.mxu0 0
    %1411 = vmatprep.subr.bf16.mxu0 0
    %1412 = vmatpush1.bf16.msra.mxu0 0
    %1413 = vmatprep.subr.bf16.mxu0 0
    %1414 = vmatpush1.bf16.msra.mxu0 0
    %1415 = vmatprep.subr.bf16.mxu0 0
    %1416 = vmatpush1.bf16.msra.mxu0 0
    %1417 = vmatprep.subr.bf16.mxu0 0
    %1418 = vmatpush1.bf16.msra.mxu0 0
    %1419 = vmatprep.subr.bf16.mxu0 0
    %1420 = vmatpush1.bf16.msra.mxu0 0
    %1421 = vmatprep.subr.bf16.mxu0 0
    %1422 = vmatpush1.bf16.msra.mxu0 %v1406
    %1423 = vmatprep.subr.bf16.mxu0 0
    %1424 = vmatpush1.bf16.msra.mxu0 %v1405
    %1425 = vmatprep.subr.bf16.mxu0 0
    %1426 = vmatpush2.bf16.msra.mxu0 0
    %1427 = vmatprep.subr.bf16.mxu0 0
    %1428 = vmatpush2.bf16.msra.mxu0 0
    %1429 = vmatprep.subr.bf16.mxu0 0
    %1430 = vmatpush2.bf16.msra.mxu0 0
    %1431 = vmatprep.subr.bf16.mxu0 0
    %1432 = vmatpush2.bf16.msra.mxu0 0
    %1433 = vmatprep.subr.bf16.mxu0 0
    %1434 = vmatpush2.bf16.msra.mxu0 0
    %1435 = vmatprep.subr.bf16.mxu0 0
    %1436 = vmatpush2.bf16.msra.mxu0 0
    %1437 = vmatprep.subr.bf16.mxu0 0
    %1438 = vmatpush2.bf16.msra.mxu0 0
    %1439 = vmatprep.subr.bf16.mxu0 0
    %1440 = vmatpush2.bf16.msra.mxu0 0
    %1441 = vmatprep.mubr.bf16.mxu0 0
    %1442 = vmatmul.mubr.bf16.gmra.mxu0 %v55
    %v1443 = vpop.f32.mrf.mxu0
    %v1444 = vadd.f32 0.0, %v1443
    %v1445 = vpop.f32.mrf.mxu0
    %v1446 = vpop.f32.mrf.mxu0
    %v1447 = vadd.f32 0.0, %v1446
    %v1448 = vpop.f32.mrf.mxu0
    %1449 = vdwg.mxu0
    %s1450 = scalar_lea.vmem %s3, 48
    %v1451 = vld [vmem:[%s1450] sm:$0xf]
    %v1452 = vld [vmem:[%s1450 + $0x4] sm:$0xf]
    %v1453 = vld [vmem:[%s1450 + $0x8] sm:$0xf]
    %v1454 = vld [vmem:[%s1450 + $0xc] sm:$0xf]
    %v1459 = vunpack.c.l.b16 %v1451
    %v1460 = vunpack.c.l.b16 %v1452
    %v1461 = vunpack.c.l.b16 %v1453
    %v1462 = vunpack.c.l.b16 %v1454
    %v1463 = vpack.c.b16 %v1460, %v1459
    %v1464 = vpack.c.b16 %v1462, %v1461
    %1467 = vmatprep.subr.bf16.mxu0 0
    %1468 = vmatpush1.bf16.msra.mxu0 0
    %1469 = vmatprep.subr.bf16.mxu0 0
    %1470 = vmatpush1.bf16.msra.mxu0 0
    %1471 = vmatprep.subr.bf16.mxu0 0
    %1472 = vmatpush1.bf16.msra.mxu0 0
    %1473 = vmatprep.subr.bf16.mxu0 0
    %1474 = vmatpush1.bf16.msra.mxu0 0
    %1475 = vmatprep.subr.bf16.mxu0 0
    %1476 = vmatpush1.bf16.msra.mxu0 0
    %1477 = vmatprep.subr.bf16.mxu0 0
    %1478 = vmatpush1.bf16.msra.mxu0 0
    %1479 = vmatprep.subr.bf16.mxu0 0
    %1480 = vmatpush1.bf16.msra.mxu0 %v1464
    %1481 = vmatprep.subr.bf16.mxu0 0
    %1482 = vmatpush1.bf16.msra.mxu0 %v1463
    %1483 = vmatprep.subr.bf16.mxu0 0
    %1484 = vmatpush2.bf16.msra.mxu0 0
    %1485 = vmatprep.subr.bf16.mxu0 0
    %1486 = vmatpush2.bf16.msra.mxu0 0
    %1487 = vmatprep.subr.bf16.mxu0 0
    %1488 = vmatpush2.bf16.msra.mxu0 0
    %1489 = vmatprep.subr.bf16.mxu0 0
    %1490 = vmatpush2.bf16.msra.mxu0 0
    %1491 = vmatprep.subr.bf16.mxu0 0
    %1492 = vmatpush2.bf16.msra.mxu0 0
    %1493 = vmatprep.subr.bf16.mxu0 0
    %1494 = vmatpush2.bf16.msra.mxu0 0
    %1495 = vmatprep.subr.bf16.mxu0 0
    %1496 = vmatpush2.bf16.msra.mxu0 0
    %1497 = vmatprep.subr.bf16.mxu0 0
    %1498 = vmatpush2.bf16.msra.mxu0 0
    %1499 = vmatprep.mubr.bf16.mxu0 0
    %1500 = vmatmul.mubr.bf16.gmra.mxu0 %v115
    %v1501 = vpop.f32.mrf.mxu0
    %v1502 = vadd.f32 0.0, %v1501
    %v1503 = vpop.f32.mrf.mxu0
    %v1504 = vpop.f32.mrf.mxu0
    %v1505 = vadd.f32 0.0, %v1504
    %v1506 = vpop.f32.mrf.mxu0
    %1507 = vmatprep.mubr.bf16.mxu0 0
    %1508 = vmatmul.mubr.bf16.gmra.mxu0 %v118
    %v1509 = vpop.f32.mrf.mxu0
    %v1510 = vadd.f32 0.0, %v1509
    %v1511 = vpop.f32.mrf.mxu0
    %v1512 = vpop.f32.mrf.mxu0
    %v1513 = vadd.f32 0.0, %v1512
    %v1514 = vpop.f32.mrf.mxu0
    %1515 = vdwg.mxu0
    %s1516 = scalar_lea.vmem %s4, 48
    %v1517 = vld [vmem:[%s1516] sm:$0xf]
    %v1518 = vld [vmem:[%s1516 + $0x4] sm:$0xf]
    %v1519 = vld [vmem:[%s1516 + $0x8] sm:$0xf]
    %v1520 = vld [vmem:[%s1516 + $0xc] sm:$0xf]
    %v1525 = vunpack.c.l.b16 %v1517
    %v1526 = vunpack.c.l.b16 %v1518
    %v1527 = vunpack.c.l.b16 %v1519
    %v1528 = vunpack.c.l.b16 %v1520
    %v1529 = vpack.c.b16 %v1526, %v1525
    %v1530 = vpack.c.b16 %v1528, %v1527
    %1533 = vmatprep.subr.bf16.mxu0 0
    %1534 = vmatpush1.bf16.msra.mxu0 0
    %1535 = vmatprep.subr.bf16.mxu0 0
    %1536 = vmatpush1.bf16.msra.mxu0 0
    %1537 = vmatprep.subr.bf16.mxu0 0
    %1538 = vmatpush1.bf16.msra.mxu0 0
    %1539 = vmatprep.subr.bf16.mxu0 0
    %1540 = vmatpush1.bf16.msra.mxu0 0
    %1541 = vmatprep.subr.bf16.mxu0 0
    %1542 = vmatpush1.bf16.msra.mxu0 0
    %1543 = vmatprep.subr.bf16.mxu0 0
    %1544 = vmatpush1.bf16.msra.mxu0 0
    %1545 = vmatprep.subr.bf16.mxu0 0
    %1546 = vmatpush1.bf16.msra.mxu0 %v1530
    %1547 = vmatprep.subr.bf16.mxu0 0
    %1548 = vmatpush1.bf16.msra.mxu0 %v1529
    %1549 = vmatprep.subr.bf16.mxu0 0
    %1550 = vmatpush2.bf16.msra.mxu0 0
    %1551 = vmatprep.subr.bf16.mxu0 0
    %1552 = vmatpush2.bf16.msra.mxu0 0
    %1553 = vmatprep.subr.bf16.mxu0 0
    %1554 = vmatpush2.bf16.msra.mxu0 0
    %1555 = vmatprep.subr.bf16.mxu0 0
    %1556 = vmatpush2.bf16.msra.mxu0 0
    %1557 = vmatprep.subr.bf16.mxu0 0
    %1558 = vmatpush2.bf16.msra.mxu0 0
    %1559 = vmatprep.subr.bf16.mxu0 0
    %1560 = vmatpush2.bf16.msra.mxu0 0
    %1561 = vmatprep.subr.bf16.mxu0 0
    %1562 = vmatpush2.bf16.msra.mxu0 0
    %1563 = vmatprep.subr.bf16.mxu0 0
    %1564 = vmatpush2.bf16.msra.mxu0 0
    %1565 = vmatprep.mubr.bf16.mxu0 0
    %1566 = vmatmul.mubr.bf16.gmra.mxu0 %v115
    %v1567 = vpop.f32.mrf.mxu0
    %v1568 = vadd.f32 0.0, %v1567
    %v1569 = vpop.f32.mrf.mxu0
    %v1570 = vpop.f32.mrf.mxu0
    %v1571 = vadd.f32 0.0, %v1570
    %v1572 = vpop.f32.mrf.mxu0
    %1573 = vmatprep.mubr.bf16.mxu0 0
    %1574 = vmatmul.mubr.bf16.gmra.mxu0 %v118
    %v1575 = vpop.f32.mrf.mxu0
    %v1576 = vadd.f32 0.0, %v1575
    %v1577 = vpop.f32.mrf.mxu0
    %v1578 = vpop.f32.mrf.mxu0
    %v1579 = vadd.f32 0.0, %v1578
    %v1580 = vpop.f32.mrf.mxu0
    %1581 = vdwg.mxu0
    %v1582 = vpack.c.bf16 %v1444, %v1444
    %v1583 = vpack.c.bf16 %v1447, %v1447
    %v1584 = vpack.c.bf16 %v1505, %v1502
    %v1585 = vpack.c.bf16 %v1513, %v1510
    %v1586 = vpack.c.bf16 %v1571, %v1568
    %v1587 = vpack.c.bf16 %v1579, %v1576
    %v1589 = vsel %vm240, %v1582, 0
    %v1592 = vsel %vm240, %v1584, 0
    %1594 = vmatprep.subr.bf16.mxu0 0
    %1595 = vmatpush1.bf16.xpose.msra.mxu0 0
    %1596 = vmatprep.subr.bf16.mxu0 0
    %1597 = vmatpush1.bf16.xpose.msra.mxu0 0
    %1598 = vmatprep.subr.bf16.mxu0 0
    %1599 = vmatpush1.bf16.xpose.msra.mxu0 0
    %1600 = vmatprep.subr.bf16.mxu0 0
    %1601 = vmatpush1.bf16.xpose.msra.mxu0 0
    %1602 = vmatprep.subr.bf16.mxu0 0
    %1603 = vmatpush1.bf16.xpose.msra.mxu0 0
    %1604 = vmatprep.subr.bf16.mxu0 0
    %1605 = vmatpush1.bf16.xpose.msra.mxu0 0
    %1606 = vmatprep.subr.bf16.mxu0 0
    %1607 = vmatpush1.bf16.xpose.msra.mxu0 0
    %1608 = vmatprep.subr.bf16.mxu0 0
    %1609 = vmatpush1.bf16.xpose.msra.mxu0 %v1592
    %1610 = vmatprep.subr.bf16.mxu0 0
    %1611 = vmatpush2.bf16.xpose.msra.mxu0 0
    %1612 = vmatprep.subr.bf16.mxu0 0
    %1613 = vmatpush2.bf16.xpose.msra.mxu0 0
    %1614 = vmatprep.subr.bf16.mxu0 0
    %1615 = vmatpush2.bf16.xpose.msra.mxu0 0
    %1616 = vmatprep.subr.bf16.mxu0 0
    %1617 = vmatpush2.bf16.xpose.msra.mxu0 0
    %1618 = vmatprep.subr.bf16.mxu0 0
    %1619 = vmatpush2.bf16.xpose.msra.mxu0 0
    %1620 = vmatprep.subr.bf16.mxu0 0
    %1621 = vmatpush2.bf16.xpose.msra.mxu0 0
    %1622 = vmatprep.subr.bf16.mxu0 0
    %1623 = vmatpush2.bf16.xpose.msra.mxu0 0
    %1624 = vmatprep.subr.bf16.mxu0 0
    %1625 = vmatpush2.bf16.xpose.msra.mxu0 0
    %1626 = vmatprep.mubr.bf16.mxu0 0
    %1627 = vmatmul.mubr.bf16.gmra.mxu0 %v1589
    %v1628 = vpop.f32.mrf.mxu0
    %v1629 = vadd.f32 0.0, %v1628
    %v1630 = vpop.f32.mrf.mxu0
    %v1631 = vpop.f32.mrf.mxu0
    %v1632 = vpop.f32.mrf.mxu0
    %1633 = vdwg.mxu0
    %v1635 = vsel %vm240, %v1583, 0
    %v1638 = vsel %vm240, %v1585, 0
    %1640 = vmatprep.subr.bf16.mxu0 0
    %1641 = vmatpush1.bf16.xpose.msra.mxu0 0
    %1642 = vmatprep.subr.bf16.mxu0 0
    %1643 = vmatpush1.bf16.xpose.msra.mxu0 0
    %1644 = vmatprep.subr.bf16.mxu0 0
    %1645 = vmatpush1.bf16.xpose.msra.mxu0 0
    %1646 = vmatprep.subr.bf16.mxu0 0
    %1647 = vmatpush1.bf16.xpose.msra.mxu0 0
    %1648 = vmatprep.subr.bf16.mxu0 0
    %1649 = vmatpush1.bf16.xpose.msra.mxu0 0
    %1650 = vmatprep.subr.bf16.mxu0 0
    %1651 = vmatpush1.bf16.xpose.msra.mxu0 0
    %1652 = vmatprep.subr.bf16.mxu0 0
    %1653 = vmatpush1.bf16.xpose.msra.mxu0 0
    %1654 = vmatprep.subr.bf16.mxu0 0
    %1655 = vmatpush1.bf16.xpose.msra.mxu0 %v1638
    %1656 = vmatprep.subr.bf16.mxu0 0
    %1657 = vmatpush2.bf16.xpose.msra.mxu0 0
    %1658 = vmatprep.subr.bf16.mxu0 0
    %1659 = vmatpush2.bf16.xpose.msra.mxu0 0
    %1660 = vmatprep.subr.bf16.mxu0 0
    %1661 = vmatpush2.bf16.xpose.msra.mxu0 0
    %1662 = vmatprep.subr.bf16.mxu0 0
    %1663 = vmatpush2.bf16.xpose.msra.mxu0 0
    %1664 = vmatprep.subr.bf16.mxu0 0
    %1665 = vmatpush2.bf16.xpose.msra.mxu0 0
    %1666 = vmatprep.subr.bf16.mxu0 0
    %1667 = vmatpush2.bf16.xpose.msra.mxu0 0
    %1668 = vmatprep.subr.bf16.mxu0 0
    %1669 = vmatpush2.bf16.xpose.msra.mxu0 0
    %1670 = vmatprep.subr.bf16.mxu0 0
    %1671 = vmatpush2.bf16.xpose.msra.mxu0 0
    %1672 = vmatprep.mubr.bf16.mxu0 0
    %1673 = vmatmul.mubr.bf16.gmra.mxu0 %v1635
    %v1674 = vpop.f32.mrf.mxu0
    %v1675 = vadd.f32 0.0, %v1674
    %v1676 = vpop.f32.mrf.mxu0
    %v1677 = vpop.f32.mrf.mxu0
    %v1678 = vpop.f32.mrf.mxu0
    %1679 = vdwg.mxu0
    %v1680 = vsel %vm333, %v1629, -inf
    %1681 = vmax.xlane.f32.xlu0 %v1680
    %v1682 = vpop.xlane.xlu0 %1681
    %v1683 = vsel %vm333, %v1675, -inf
    %1684 = vmax.xlane.f32.xlu0 %v1683
    %v1685 = vpop.xlane.xlu0 %1684
    %v1686 = vsub.f32 %v1629, %v1682
    %v1687 = vsub.f32 %v1675, %v1685
    %v1688 = vmul.f32 %v1686, 1.442695
    %v1689 = vpow.pop %v1688
    %v1690 = vmul.f32 %v1687, 1.442695
    %v1691 = vpow.pop %v1690
    %v1692 = vsel %vm333, %v1689, 0.0
    %1693 = vadd.xlane.f32.xlu0 %v1692
    %v1694 = vpop.xlane.xlu0 %1693
    %v1695 = vsel %vm333, %v1691, 0.0
    %1696 = vadd.xlane.f32.xlu0 %v1695
    %v1697 = vpop.xlane.xlu0 %1696
    %v1698 = vrcp.pop %v1694
    %v1699 = vrcp.pop %v1697
    %v1700 = vmul.f32 %v1689, %v1698
    %v1701 = vmul.f32 %v1691, %v1699
    %v1702 = vpack.c.bf16 %v1700, %v1700
    %v1703 = vpack.c.bf16 %v1701, %v1701
    %v1705 = vsel %vm333, %v1702, 0
    %1707 = vmatprep.subr.bf16.mxu0 0
    %1708 = vmatpush1.bf16.msra.mxu0 0
    %1709 = vmatprep.subr.bf16.mxu0 0
    %1710 = vmatpush1.bf16.msra.mxu0 0
    %1711 = vmatprep.subr.bf16.mxu0 0
    %1712 = vmatpush1.bf16.msra.mxu0 0
    %1713 = vmatprep.subr.bf16.mxu0 0
    %1714 = vmatpush1.bf16.msra.mxu0 0
    %1715 = vmatprep.subr.bf16.mxu0 0
    %1716 = vmatpush1.bf16.msra.mxu0 0
    %1717 = vmatprep.subr.bf16.mxu0 0
    %1718 = vmatpush1.bf16.msra.mxu0 0
    %1719 = vmatprep.subr.bf16.mxu0 0
    %1720 = vmatpush1.bf16.msra.mxu0 0
    %1721 = vmatprep.subr.bf16.mxu0 0
    %1722 = vmatpush1.bf16.msra.mxu0 %v1586
    %1723 = vmatprep.subr.bf16.mxu0 0
    %1724 = vmatpush2.bf16.msra.mxu0 0
    %1725 = vmatprep.subr.bf16.mxu0 0
    %1726 = vmatpush2.bf16.msra.mxu0 0
    %1727 = vmatprep.subr.bf16.mxu0 0
    %1728 = vmatpush2.bf16.msra.mxu0 0
    %1729 = vmatprep.subr.bf16.mxu0 0
    %1730 = vmatpush2.bf16.msra.mxu0 0
    %1731 = vmatprep.subr.bf16.mxu0 0
    %1732 = vmatpush2.bf16.msra.mxu0 0
    %1733 = vmatprep.subr.bf16.mxu0 0
    %1734 = vmatpush2.bf16.msra.mxu0 0
    %1735 = vmatprep.subr.bf16.mxu0 0
    %1736 = vmatpush2.bf16.msra.mxu0 0
    %1737 = vmatprep.subr.bf16.mxu0 0
    %1738 = vmatpush2.bf16.msra.mxu0 0
    %1739 = vmatprep.mubr.bf16.mxu0 0
    %1740 = vmatmul.mubr.bf16.gmra.mxu0 %v1705
    %v1741 = vpop.f32.mrf.mxu0
    %v1742 = vadd.f32 0.0, %v1741
    %v1743 = vpop.f32.mrf.mxu0
    %v1744 = vpop.f32.mrf.mxu0
    %v1745 = vpop.f32.mrf.mxu0
    %1746 = vdwg.mxu0
    %v1748 = vsel %vm333, %v1703, 0
    %1750 = vmatprep.subr.bf16.mxu0 0
    %1751 = vmatpush1.bf16.msra.mxu0 0
    %1752 = vmatprep.subr.bf16.mxu0 0
    %1753 = vmatpush1.bf16.msra.mxu0 0
    %1754 = vmatprep.subr.bf16.mxu0 0
    %1755 = vmatpush1.bf16.msra.mxu0 0
    %1756 = vmatprep.subr.bf16.mxu0 0
    %1757 = vmatpush1.bf16.msra.mxu0 0
    %1758 = vmatprep.subr.bf16.mxu0 0
    %1759 = vmatpush1.bf16.msra.mxu0 0
    %1760 = vmatprep.subr.bf16.mxu0 0
    %1761 = vmatpush1.bf16.msra.mxu0 0
    %1762 = vmatprep.subr.bf16.mxu0 0
    %1763 = vmatpush1.bf16.msra.mxu0 0
    %1764 = vmatprep.subr.bf16.mxu0 0
    %1765 = vmatpush1.bf16.msra.mxu0 %v1587
    %1766 = vmatprep.subr.bf16.mxu0 0
    %1767 = vmatpush2.bf16.msra.mxu0 0
    %1768 = vmatprep.subr.bf16.mxu0 0
    %1769 = vmatpush2.bf16.msra.mxu0 0
    %1770 = vmatprep.subr.bf16.mxu0 0
    %1771 = vmatpush2.bf16.msra.mxu0 0
    %1772 = vmatprep.subr.bf16.mxu0 0
    %1773 = vmatpush2.bf16.msra.mxu0 0
    %1774 = vmatprep.subr.bf16.mxu0 0
    %1775 = vmatpush2.bf16.msra.mxu0 0
    %1776 = vmatprep.subr.bf16.mxu0 0
    %1777 = vmatpush2.bf16.msra.mxu0 0
    %1778 = vmatprep.subr.bf16.mxu0 0
    %1779 = vmatpush2.bf16.msra.mxu0 0
    %1780 = vmatprep.subr.bf16.mxu0 0
    %1781 = vmatpush2.bf16.msra.mxu0 0
    %1782 = vmatprep.mubr.bf16.mxu0 0
    %1783 = vmatmul.mubr.bf16.gmra.mxu0 %v1748
    %v1784 = vpop.f32.mrf.mxu0
    %v1785 = vadd.f32 0.0, %v1784
    %v1786 = vpop.f32.mrf.mxu0
    %v1787 = vpop.f32.mrf.mxu0
    %v1788 = vpop.f32.mrf.mxu0
    %1789 = vdwg.mxu0
    %v1790 = vpack.c.bf16 %v1785, %v1742
    %s1791 = scalar_lea.vmem %s5, 6
    %v1792 = vld [vmem:[%s1791] sm:$0x3]
    %v1794 = vsel %vm240, %v1790, 0
    %v1797 = vsel %vm850, %v1792, 0
    %1799 = vmatprep.subr.bf16.mxu0 0
    %1800 = vmatpush1.bf16.msra.mxu0 0
    %1801 = vmatprep.subr.bf16.mxu0 0
    %1802 = vmatpush1.bf16.msra.mxu0 0
    %1803 = vmatprep.subr.bf16.mxu0 0
    %1804 = vmatpush1.bf16.msra.mxu0 0
    %1805 = vmatprep.subr.bf16.mxu0 0
    %1806 = vmatpush1.bf16.msra.mxu0 0
    %1807 = vmatprep.subr.bf16.mxu0 0
    %1808 = vmatpush1.bf16.msra.mxu0 0
    %1809 = vmatprep.subr.bf16.mxu0 0
    %1810 = vmatpush1.bf16.msra.mxu0 0
    %1811 = vmatprep.subr.bf16.mxu0 0
    %1812 = vmatpush1.bf16.msra.mxu0 0
    %1813 = vmatprep.subr.bf16.mxu0 0
    %1814 = vmatpush1.bf16.msra.mxu0 %v1797
    %1815 = vmatprep.subr.bf16.mxu0 0
    %1816 = vmatpush2.bf16.msra.mxu0 0
    %1817 = vmatprep.subr.bf16.mxu0 0
    %1818 = vmatpush2.bf16.msra.mxu0 0
    %1819 = vmatprep.subr.bf16.mxu0 0
    %1820 = vmatpush2.bf16.msra.mxu0 0
    %1821 = vmatprep.subr.bf16.mxu0 0
    %1822 = vmatpush2.bf16.msra.mxu0 0
    %1823 = vmatprep.subr.bf16.mxu0 0
    %1824 = vmatpush2.bf16.msra.mxu0 0
    %1825 = vmatprep.subr.bf16.mxu0 0
    %1826 = vmatpush2.bf16.msra.mxu0 0
    %1827 = vmatprep.subr.bf16.mxu0 0
    %1828 = vmatpush2.bf16.msra.mxu0 0
    %1829 = vmatprep.subr.bf16.mxu0 0
    %1830 = vmatpush2.bf16.msra.mxu0 0
    %1831 = vmatprep.mubr.bf16.mxu0 0
    %1832 = vmatmul.mubr.bf16.gmra.mxu0 %v1794
    %v1833 = vpop.f32.mrf.mxu0
    %v1834 = vadd.f32 0.0, %v1833
    %v1835 = vpop.f32.mrf.mxu0
    %v1836 = vpop.f32.mrf.mxu0
    %v1837 = vadd.f32 0.0, %v1836
    %v1838 = vpop.f32.mrf.mxu0
    %1839 = vdwg.mxu0
    %v1840 = vadd.f32 %v1390, %v1834
    %v1841 = vadd.f32 %v1391, %v1837
    %s1842 = scalar_lea.vmem %s2, 64
    %v1843 = vld [vmem:[%s1842] sm:$0xf]
    %v1844 = vld [vmem:[%s1842 + $0x4] sm:$0xf]
    %v1845 = vld [vmem:[%s1842 + $0x8] sm:$0xf]
    %v1846 = vld [vmem:[%s1842 + $0xc] sm:$0xf]
    %v1851 = vunpack.c.l.b16 %v1843
    %v1852 = vunpack.c.l.b16 %v1844
    %v1853 = vunpack.c.l.b16 %v1845
    %v1854 = vunpack.c.l.b16 %v1846
    %v1855 = vpack.c.b16 %v1852, %v1851
    %v1856 = vpack.c.b16 %v1854, %v1853
    %1859 = vmatprep.subr.bf16.mxu0 0
    %1860 = vmatpush1.bf16.msra.mxu0 0
    %1861 = vmatprep.subr.bf16.mxu0 0
    %1862 = vmatpush1.bf16.msra.mxu0 0
    %1863 = vmatprep.subr.bf16.mxu0 0
    %1864 = vmatpush1.bf16.msra.mxu0 0
    %1865 = vmatprep.subr.bf16.mxu0 0
    %1866 = vmatpush1.bf16.msra.mxu0 0
    %1867 = vmatprep.subr.bf16.mxu0 0
    %1868 = vmatpush1.bf16.msra.mxu0 0
    %1869 = vmatprep.subr.bf16.mxu0 0
    %1870 = vmatpush1.bf16.msra.mxu0 0
    %1871 = vmatprep.subr.bf16.mxu0 0
    %1872 = vmatpush1.bf16.msra.mxu0 %v1856
    %1873 = vmatprep.subr.bf16.mxu0 0
    %1874 = vmatpush1.bf16.msra.mxu0 %v1855
    %1875 = vmatprep.subr.bf16.mxu0 0
    %1876 = vmatpush2.bf16.msra.mxu0 0
    %1877 = vmatprep.subr.bf16.mxu0 0
    %1878 = vmatpush2.bf16.msra.mxu0 0
    %1879 = vmatprep.subr.bf16.mxu0 0
    %1880 = vmatpush2.bf16.msra.mxu0 0
    %1881 = vmatprep.subr.bf16.mxu0 0
    %1882 = vmatpush2.bf16.msra.mxu0 0
    %1883 = vmatprep.subr.bf16.mxu0 0
    %1884 = vmatpush2.bf16.msra.mxu0 0
    %1885 = vmatprep.subr.bf16.mxu0 0
    %1886 = vmatpush2.bf16.msra.mxu0 0
    %1887 = vmatprep.subr.bf16.mxu0 0
    %1888 = vmatpush2.bf16.msra.mxu0 0
    %1889 = vmatprep.subr.bf16.mxu0 0
    %1890 = vmatpush2.bf16.msra.mxu0 0
    %1891 = vmatprep.mubr.bf16.mxu0 0
    %1892 = vmatmul.mubr.bf16.gmra.mxu0 %v55
    %v1893 = vpop.f32.mrf.mxu0
    %v1894 = vadd.f32 0.0, %v1893
    %v1895 = vpop.f32.mrf.mxu0
    %v1896 = vpop.f32.mrf.mxu0
    %v1897 = vadd.f32 0.0, %v1896
    %v1898 = vpop.f32.mrf.mxu0
    %1899 = vdwg.mxu0
    %s1900 = scalar_lea.vmem %s3, 64
    %v1901 = vld [vmem:[%s1900] sm:$0xf]
    %v1902 = vld [vmem:[%s1900 + $0x4] sm:$0xf]
    %v1903 = vld [vmem:[%s1900 + $0x8] sm:$0xf]
    %v1904 = vld [vmem:[%s1900 + $0xc] sm:$0xf]
    %v1909 = vunpack.c.l.b16 %v1901
    %v1910 = vunpack.c.l.b16 %v1902
    %v1911 = vunpack.c.l.b16 %v1903
    %v1912 = vunpack.c.l.b16 %v1904
    %v1913 = vpack.c.b16 %v1910, %v1909
    %v1914 = vpack.c.b16 %v1912, %v1911
    %1917 = vmatprep.subr.bf16.mxu0 0
    %1918 = vmatpush1.bf16.msra.mxu0 0
    %1919 = vmatprep.subr.bf16.mxu0 0
    %1920 = vmatpush1.bf16.msra.mxu0 0
    %1921 = vmatprep.subr.bf16.mxu0 0
    %1922 = vmatpush1.bf16.msra.mxu0 0
    %1923 = vmatprep.subr.bf16.mxu0 0
    %1924 = vmatpush1.bf16.msra.mxu0 0
    %1925 = vmatprep.subr.bf16.mxu0 0
    %1926 = vmatpush1.bf16.msra.mxu0 0
    %1927 = vmatprep.subr.bf16.mxu0 0
    %1928 = vmatpush1.bf16.msra.mxu0 0
    %1929 = vmatprep.subr.bf16.mxu0 0
    %1930 = vmatpush1.bf16.msra.mxu0 %v1914
    %1931 = vmatprep.subr.bf16.mxu0 0
    %1932 = vmatpush1.bf16.msra.mxu0 %v1913
    %1933 = vmatprep.subr.bf16.mxu0 0
    %1934 = vmatpush2.bf16.msra.mxu0 0
    %1935 = vmatprep.subr.bf16.mxu0 0
    %1936 = vmatpush2.bf16.msra.mxu0 0
    %1937 = vmatprep.subr.bf16.mxu0 0
    %1938 = vmatpush2.bf16.msra.mxu0 0
    %1939 = vmatprep.subr.bf16.mxu0 0
    %1940 = vmatpush2.bf16.msra.mxu0 0
    %1941 = vmatprep.subr.bf16.mxu0 0
    %1942 = vmatpush2.bf16.msra.mxu0 0
    %1943 = vmatprep.subr.bf16.mxu0 0
    %1944 = vmatpush2.bf16.msra.mxu0 0
    %1945 = vmatprep.subr.bf16.mxu0 0
    %1946 = vmatpush2.bf16.msra.mxu0 0
    %1947 = vmatprep.subr.bf16.mxu0 0
    %1948 = vmatpush2.bf16.msra.mxu0 0
    %1949 = vmatprep.mubr.bf16.mxu0 0
    %1950 = vmatmul.mubr.bf16.gmra.mxu0 %v115
    %v1951 = vpop.f32.mrf.mxu0
    %v1952 = vadd.f32 0.0, %v1951
    %v1953 = vpop.f32.mrf.mxu0
    %v1954 = vpop.f32.mrf.mxu0
    %v1955 = vadd.f32 0.0, %v1954
    %v1956 = vpop.f32.mrf.mxu0
    %1957 = vmatprep.mubr.bf16.mxu0 0
    %1958 = vmatmul.mubr.bf16.gmra.mxu0 %v118
    %v1959 = vpop.f32.mrf.mxu0
    %v1960 = vadd.f32 0.0, %v1959
    %v1961 = vpop.f32.mrf.mxu0
    %v1962 = vpop.f32.mrf.mxu0
    %v1963 = vadd.f32 0.0, %v1962
    %v1964 = vpop.f32.mrf.mxu0
    %1965 = vdwg.mxu0
    %s1966 = scalar_lea.vmem %s4, 64
    %v1967 = vld [vmem:[%s1966] sm:$0xf]
    %v1968 = vld [vmem:[%s1966 + $0x4] sm:$0xf]
    %v1969 = vld [vmem:[%s1966 + $0x8] sm:$0xf]
    %v1970 = vld [vmem:[%s1966 + $0xc] sm:$0xf]
    %v1975 = vunpack.c.l.b16 %v1967
    %v1976 = vunpack.c.l.b16 %v1968
    %v1977 = vunpack.c.l.b16 %v1969
    %v1978 = vunpack.c.l.b16 %v1970
    %v1979 = vpack.c.b16 %v1976, %v1975
    %v1980 = vpack.c.b16 %v1978, %v1977
    %1983 = vmatprep.subr.bf16.mxu0 0
    %1984 = vmatpush1.bf16.msra.mxu0 0
    %1985 = vmatprep.subr.bf16.mxu0 0
    %1986 = vmatpush1.bf16.msra.mxu0 0
    %1987 = vmatprep.subr.bf16.mxu0 0
    %1988 = vmatpush1.bf16.msra.mxu0 0
    %1989 = vmatprep.subr.bf16.mxu0 0
    %1990 = vmatpush1.bf16.msra.mxu0 0
    %1991 = vmatprep.subr.bf16.mxu0 0
    %1992 = vmatpush1.bf16.msra.mxu0 0
    %1993 = vmatprep.subr.bf16.mxu0 0
    %1994 = vmatpush1.bf16.msra.mxu0 0
    %1995 = vmatprep.subr.bf16.mxu0 0
    %1996 = vmatpush1.bf16.msra.mxu0 %v1980
    %1997 = vmatprep.subr.bf16.mxu0 0
    %1998 = vmatpush1.bf16.msra.mxu0 %v1979
    %1999 = vmatprep.subr.bf16.mxu0 0
    %2000 = vmatpush2.bf16.msra.mxu0 0
    %2001 = vmatprep.subr.bf16.mxu0 0
    %2002 = vmatpush2.bf16.msra.mxu0 0
    %2003 = vmatprep.subr.bf16.mxu0 0
    %2004 = vmatpush2.bf16.msra.mxu0 0
    %2005 = vmatprep.subr.bf16.mxu0 0
    %2006 = vmatpush2.bf16.msra.mxu0 0
    %2007 = vmatprep.subr.bf16.mxu0 0
    %2008 = vmatpush2.bf16.msra.mxu0 0
    %2009 = vmatprep.subr.bf16.mxu0 0
    %2010 = vmatpush2.bf16.msra.mxu0 0
    %2011 = vmatprep.subr.bf16.mxu0 0
    %2012 = vmatpush2.bf16.msra.mxu0 0
    %2013 = vmatprep.subr.bf16.mxu0 0
    %2014 = vmatpush2.bf16.msra.mxu0 0
    %2015 = vmatprep.mubr.bf16.mxu0 0
    %2016 = vmatmul.mubr.bf16.gmra.mxu0 %v115
    %v2017 = vpop.f32.mrf.mxu0
    %v2018 = vadd.f32 0.0, %v2017
    %v2019 = vpop.f32.mrf.mxu0
    %v2020 = vpop.f32.mrf.mxu0
    %v2021 = vadd.f32 0.0, %v2020
    %v2022 = vpop.f32.mrf.mxu0
    %2023 = vmatprep.mubr.bf16.mxu0 0
    %2024 = vmatmul.mubr.bf16.gmra.mxu0 %v118
    %v2025 = vpop.f32.mrf.mxu0
    %v2026 = vadd.f32 0.0, %v2025
    %v2027 = vpop.f32.mrf.mxu0
    %v2028 = vpop.f32.mrf.mxu0
    %v2029 = vadd.f32 0.0, %v2028
    %v2030 = vpop.f32.mrf.mxu0
    %2031 = vdwg.mxu0
    %v2032 = vpack.c.bf16 %v1894, %v1894
    %v2033 = vpack.c.bf16 %v1897, %v1897
    %v2034 = vpack.c.bf16 %v1955, %v1952
    %v2035 = vpack.c.bf16 %v1963, %v1960
    %v2036 = vpack.c.bf16 %v2021, %v2018
    %v2037 = vpack.c.bf16 %v2029, %v2026
    %v2039 = vsel %vm240, %v2032, 0
    %v2042 = vsel %vm240, %v2034, 0
    %2044 = vmatprep.subr.bf16.mxu0 0
    %2045 = vmatpush1.bf16.xpose.msra.mxu0 0
    %2046 = vmatprep.subr.bf16.mxu0 0
    %2047 = vmatpush1.bf16.xpose.msra.mxu0 0
    %2048 = vmatprep.subr.bf16.mxu0 0
    %2049 = vmatpush1.bf16.xpose.msra.mxu0 0
    %2050 = vmatprep.subr.bf16.mxu0 0
    %2051 = vmatpush1.bf16.xpose.msra.mxu0 0
    %2052 = vmatprep.subr.bf16.mxu0 0
    %2053 = vmatpush1.bf16.xpose.msra.mxu0 0
    %2054 = vmatprep.subr.bf16.mxu0 0
    %2055 = vmatpush1.bf16.xpose.msra.mxu0 0
    %2056 = vmatprep.subr.bf16.mxu0 0
    %2057 = vmatpush1.bf16.xpose.msra.mxu0 0
    %2058 = vmatprep.subr.bf16.mxu0 0
    %2059 = vmatpush1.bf16.xpose.msra.mxu0 %v2042
    %2060 = vmatprep.subr.bf16.mxu0 0
    %2061 = vmatpush2.bf16.xpose.msra.mxu0 0
    %2062 = vmatprep.subr.bf16.mxu0 0
    %2063 = vmatpush2.bf16.xpose.msra.mxu0 0
    %2064 = vmatprep.subr.bf16.mxu0 0
    %2065 = vmatpush2.bf16.xpose.msra.mxu0 0
    %2066 = vmatprep.subr.bf16.mxu0 0
    %2067 = vmatpush2.bf16.xpose.msra.mxu0 0
    %2068 = vmatprep.subr.bf16.mxu0 0
    %2069 = vmatpush2.bf16.xpose.msra.mxu0 0
    %2070 = vmatprep.subr.bf16.mxu0 0
    %2071 = vmatpush2.bf16.xpose.msra.mxu0 0
    %2072 = vmatprep.subr.bf16.mxu0 0
    %2073 = vmatpush2.bf16.xpose.msra.mxu0 0
    %2074 = vmatprep.subr.bf16.mxu0 0
    %2075 = vmatpush2.bf16.xpose.msra.mxu0 0
    %2076 = vmatprep.mubr.bf16.mxu0 0
    %2077 = vmatmul.mubr.bf16.gmra.mxu0 %v2039
    %v2078 = vpop.f32.mrf.mxu0
    %v2079 = vadd.f32 0.0, %v2078
    %v2080 = vpop.f32.mrf.mxu0
    %v2081 = vpop.f32.mrf.mxu0
    %v2082 = vpop.f32.mrf.mxu0
    %2083 = vdwg.mxu0
    %v2085 = vsel %vm240, %v2033, 0
    %v2088 = vsel %vm240, %v2035, 0
    %2090 = vmatprep.subr.bf16.mxu0 0
    %2091 = vmatpush1.bf16.xpose.msra.mxu0 0
    %2092 = vmatprep.subr.bf16.mxu0 0
    %2093 = vmatpush1.bf16.xpose.msra.mxu0 0
    %2094 = vmatprep.subr.bf16.mxu0 0
    %2095 = vmatpush1.bf16.xpose.msra.mxu0 0
    %2096 = vmatprep.subr.bf16.mxu0 0
    %2097 = vmatpush1.bf16.xpose.msra.mxu0 0
    %2098 = vmatprep.subr.bf16.mxu0 0
    %2099 = vmatpush1.bf16.xpose.msra.mxu0 0
    %2100 = vmatprep.subr.bf16.mxu0 0
    %2101 = vmatpush1.bf16.xpose.msra.mxu0 0
    %2102 = vmatprep.subr.bf16.mxu0 0
    %2103 = vmatpush1.bf16.xpose.msra.mxu0 0
    %2104 = vmatprep.subr.bf16.mxu0 0
    %2105 = vmatpush1.bf16.xpose.msra.mxu0 %v2088
    %2106 = vmatprep.subr.bf16.mxu0 0
    %2107 = vmatpush2.bf16.xpose.msra.mxu0 0
    %2108 = vmatprep.subr.bf16.mxu0 0
    %2109 = vmatpush2.bf16.xpose.msra.mxu0 0
    %2110 = vmatprep.subr.bf16.mxu0 0
    %2111 = vmatpush2.bf16.xpose.msra.mxu0 0
    %2112 = vmatprep.subr.bf16.mxu0 0
    %2113 = vmatpush2.bf16.xpose.msra.mxu0 0
    %2114 = vmatprep.subr.bf16.mxu0 0
    %2115 = vmatpush2.bf16.xpose.msra.mxu0 0
    %2116 = vmatprep.subr.bf16.mxu0 0
    %2117 = vmatpush2.bf16.xpose.msra.mxu0 0
    %2118 = vmatprep.subr.bf16.mxu0 0
    %2119 = vmatpush2.bf16.xpose.msra.mxu0 0
    %2120 = vmatprep.subr.bf16.mxu0 0
    %2121 = vmatpush2.bf16.xpose.msra.mxu0 0
    %2122 = vmatprep.mubr.bf16.mxu0 0
    %2123 = vmatmul.mubr.bf16.gmra.mxu0 %v2085
    %v2124 = vpop.f32.mrf.mxu0
    %v2125 = vadd.f32 0.0, %v2124
    %v2126 = vpop.f32.mrf.mxu0
    %v2127 = vpop.f32.mrf.mxu0
    %v2128 = vpop.f32.mrf.mxu0
    %2129 = vdwg.mxu0
    %v2130 = vsel %vm333, %v2079, -inf
    %2131 = vmax.xlane.f32.xlu0 %v2130
    %v2132 = vpop.xlane.xlu0 %2131
    %v2133 = vsel %vm333, %v2125, -inf
    %2134 = vmax.xlane.f32.xlu0 %v2133
    %v2135 = vpop.xlane.xlu0 %2134
    %v2136 = vsub.f32 %v2079, %v2132
    %v2137 = vsub.f32 %v2125, %v2135
    %v2138 = vmul.f32 %v2136, 1.442695
    %v2139 = vpow.pop %v2138
    %v2140 = vmul.f32 %v2137, 1.442695
    %v2141 = vpow.pop %v2140
    %v2142 = vsel %vm333, %v2139, 0.0
    %2143 = vadd.xlane.f32.xlu0 %v2142
    %v2144 = vpop.xlane.xlu0 %2143
    %v2145 = vsel %vm333, %v2141, 0.0
    %2146 = vadd.xlane.f32.xlu0 %v2145
    %v2147 = vpop.xlane.xlu0 %2146
    %v2148 = vrcp.pop %v2144
    %v2149 = vrcp.pop %v2147
    %v2150 = vmul.f32 %v2139, %v2148
    %v2151 = vmul.f32 %v2141, %v2149
    %v2152 = vpack.c.bf16 %v2150, %v2150
    %v2153 = vpack.c.bf16 %v2151, %v2151
    %v2155 = vsel %vm333, %v2152, 0
    %2157 = vmatprep.subr.bf16.mxu0 0
    %2158 = vmatpush1.bf16.msra.mxu0 0
    %2159 = vmatprep.subr.bf16.mxu0 0
    %2160 = vmatpush1.bf16.msra.mxu0 0
    %2161 = vmatprep.subr.bf16.mxu0 0
    %2162 = vmatpush1.bf16.msra.mxu0 0
    %2163 = vmatprep.subr.bf16.mxu0 0
    %2164 = vmatpush1.bf16.msra.mxu0 0
    %2165 = vmatprep.subr.bf16.mxu0 0
    %2166 = vmatpush1.bf16.msra.mxu0 0
    %2167 = vmatprep.subr.bf16.mxu0 0
    %2168 = vmatpush1.bf16.msra.mxu0 0
    %2169 = vmatprep.subr.bf16.mxu0 0
    %2170 = vmatpush1.bf16.msra.mxu0 0
    %2171 = vmatprep.subr.bf16.mxu0 0
    %2172 = vmatpush1.bf16.msra.mxu0 %v2036
    %2173 = vmatprep.subr.bf16.mxu0 0
    %2174 = vmatpush2.bf16.msra.mxu0 0
    %2175 = vmatprep.subr.bf16.mxu0 0
    %2176 = vmatpush2.bf16.msra.mxu0 0
    %2177 = vmatprep.subr.bf16.mxu0 0
    %2178 = vmatpush2.bf16.msra.mxu0 0
    %2179 = vmatprep.subr.bf16.mxu0 0
    %2180 = vmatpush2.bf16.msra.mxu0 0
    %2181 = vmatprep.subr.bf16.mxu0 0
    %2182 = vmatpush2.bf16.msra.mxu0 0
    %2183 = vmatprep.subr.bf16.mxu0 0
    %2184 = vmatpush2.bf16.msra.mxu0 0
    %2185 = vmatprep.subr.bf16.mxu0 0
    %2186 = vmatpush2.bf16.msra.mxu0 0
    %2187 = vmatprep.subr.bf16.mxu0 0
    %2188 = vmatpush2.bf16.msra.mxu0 0
    %2189 = vmatprep.mubr.bf16.mxu0 0
    %2190 = vmatmul.mubr.bf16.gmra.mxu0 %v2155
    %v2191 = vpop.f32.mrf.mxu0
    %v2192 = vadd.f32 0.0, %v2191
    %v2193 = vpop.f32.mrf.mxu0
    %v2194 = vpop.f32.mrf.mxu0
    %v2195 = vpop.f32.mrf.mxu0
    %2196 = vdwg.mxu0
    %v2198 = vsel %vm333, %v2153, 0
    %2200 = vmatprep.subr.bf16.mxu0 0
    %2201 = vmatpush1.bf16.msra.mxu0 0
    %2202 = vmatprep.subr.bf16.mxu0 0
    %2203 = vmatpush1.bf16.msra.mxu0 0
    %2204 = vmatprep.subr.bf16.mxu0 0
    %2205 = vmatpush1.bf16.msra.mxu0 0
    %2206 = vmatprep.subr.bf16.mxu0 0
    %2207 = vmatpush1.bf16.msra.mxu0 0
    %2208 = vmatprep.subr.bf16.mxu0 0
    %2209 = vmatpush1.bf16.msra.mxu0 0
    %2210 = vmatprep.subr.bf16.mxu0 0
    %2211 = vmatpush1.bf16.msra.mxu0 0
    %2212 = vmatprep.subr.bf16.mxu0 0
    %2213 = vmatpush1.bf16.msra.mxu0 0
    %2214 = vmatprep.subr.bf16.mxu0 0
    %2215 = vmatpush1.bf16.msra.mxu0 %v2037
    %2216 = vmatprep.subr.bf16.mxu0 0
    %2217 = vmatpush2.bf16.msra.mxu0 0
    %2218 = vmatprep.subr.bf16.mxu0 0
    %2219 = vmatpush2.bf16.msra.mxu0 0
    %2220 = vmatprep.subr.bf16.mxu0 0
    %2221 = vmatpush2.bf16.msra.mxu0 0
    %2222 = vmatprep.subr.bf16.mxu0 0
    %2223 = vmatpush2.bf16.msra.mxu0 0
    %2224 = vmatprep.subr.bf16.mxu0 0
    %2225 = vmatpush2.bf16.msra.mxu0 0
    %2226 = vmatprep.subr.bf16.mxu0 0
    %2227 = vmatpush2.bf16.msra.mxu0 0
    %2228 = vmatprep.subr.bf16.mxu0 0
    %2229 = vmatpush2.bf16.msra.mxu0 0
    %2230 = vmatprep.subr.bf16.mxu0 0
    %2231 = vmatpush2.bf16.msra.mxu0 0
    %2232 = vmatprep.mubr.bf16.mxu0 0
    %2233 = vmatmul.mubr.bf16.gmra.mxu0 %v2198
    %v2234 = vpop.f32.mrf.mxu0
    %v2235 = vadd.f32 0.0, %v2234
    %v2236 = vpop.f32.mrf.mxu0
    %v2237 = vpop.f32.mrf.mxu0
    %v2238 = vpop.f32.mrf.mxu0
    %2239 = vdwg.mxu0
    %v2240 = vpack.c.bf16 %v2235, %v2192
    %s2241 = scalar_lea.vmem %s5, 8
    %v2242 = vld [vmem:[%s2241] sm:$0x3]
    %v2244 = vsel %vm240, %v2240, 0
    %v2247 = vsel %vm850, %v2242, 0
    %2249 = vmatprep.subr.bf16.mxu0 0
    %2250 = vmatpush1.bf16.msra.mxu0 0
    %2251 = vmatprep.subr.bf16.mxu0 0
    %2252 = vmatpush1.bf16.msra.mxu0 0
    %2253 = vmatprep.subr.bf16.mxu0 0
    %2254 = vmatpush1.bf16.msra.mxu0 0
    %2255 = vmatprep.subr.bf16.mxu0 0
    %2256 = vmatpush1.bf16.msra.mxu0 0
    %2257 = vmatprep.subr.bf16.mxu0 0
    %2258 = vmatpush1.bf16.msra.mxu0 0
    %2259 = vmatprep.subr.bf16.mxu0 0
    %2260 = vmatpush1.bf16.msra.mxu0 0
    %2261 = vmatprep.subr.bf16.mxu0 0
    %2262 = vmatpush1.bf16.msra.mxu0 0
    %2263 = vmatprep.subr.bf16.mxu0 0
    %2264 = vmatpush1.bf16.msra.mxu0 %v2247
    %2265 = vmatprep.subr.bf16.mxu0 0
    %2266 = vmatpush2.bf16.msra.mxu0 0
    %2267 = vmatprep.subr.bf16.mxu0 0
    %2268 = vmatpush2.bf16.msra.mxu0 0
    %2269 = vmatprep.subr.bf16.mxu0 0
    %2270 = vmatpush2.bf16.msra.mxu0 0
    %2271 = vmatprep.subr.bf16.mxu0 0
    %2272 = vmatpush2.bf16.msra.mxu0 0
    %2273 = vmatprep.subr.bf16.mxu0 0
    %2274 = vmatpush2.bf16.msra.mxu0 0
    %2275 = vmatprep.subr.bf16.mxu0 0
    %2276 = vmatpush2.bf16.msra.mxu0 0
    %2277 = vmatprep.subr.bf16.mxu0 0
    %2278 = vmatpush2.bf16.msra.mxu0 0
    %2279 = vmatprep.subr.bf16.mxu0 0
    %2280 = vmatpush2.bf16.msra.mxu0 0
    %2281 = vmatprep.mubr.bf16.mxu0 0
    %2282 = vmatmul.mubr.bf16.gmra.mxu0 %v2244
    %v2283 = vpop.f32.mrf.mxu0
    %v2284 = vadd.f32 0.0, %v2283
    %v2285 = vpop.f32.mrf.mxu0
    %v2286 = vpop.f32.mrf.mxu0
    %v2287 = vadd.f32 0.0, %v2286
    %v2288 = vpop.f32.mrf.mxu0
    %2289 = vdwg.mxu0
    %v2290 = vadd.f32 %v1840, %v2284
    %v2291 = vadd.f32 %v1841, %v2287
    %s2292 = scalar_lea.vmem %s2, 80
    %v2293 = vld [vmem:[%s2292] sm:$0xf]
    %v2294 = vld [vmem:[%s2292 + $0x4] sm:$0xf]
    %v2295 = vld [vmem:[%s2292 + $0x8] sm:$0xf]
    %v2296 = vld [vmem:[%s2292 + $0xc] sm:$0xf]
    %v2301 = vunpack.c.l.b16 %v2293
    %v2302 = vunpack.c.l.b16 %v2294
    %v2303 = vunpack.c.l.b16 %v2295
    %v2304 = vunpack.c.l.b16 %v2296
    %v2305 = vpack.c.b16 %v2302, %v2301
    %v2306 = vpack.c.b16 %v2304, %v2303
    %2309 = vmatprep.subr.bf16.mxu0 0
    %2310 = vmatpush1.bf16.msra.mxu0 0
    %2311 = vmatprep.subr.bf16.mxu0 0
    %2312 = vmatpush1.bf16.msra.mxu0 0
    %2313 = vmatprep.subr.bf16.mxu0 0
    %2314 = vmatpush1.bf16.msra.mxu0 0
    %2315 = vmatprep.subr.bf16.mxu0 0
    %2316 = vmatpush1.bf16.msra.mxu0 0
    %2317 = vmatprep.subr.bf16.mxu0 0
    %2318 = vmatpush1.bf16.msra.mxu0 0
    %2319 = vmatprep.subr.bf16.mxu0 0
    %2320 = vmatpush1.bf16.msra.mxu0 0
    %2321 = vmatprep.subr.bf16.mxu0 0
    %2322 = vmatpush1.bf16.msra.mxu0 %v2306
    %2323 = vmatprep.subr.bf16.mxu0 0
    %2324 = vmatpush1.bf16.msra.mxu0 %v2305
    %2325 = vmatprep.subr.bf16.mxu0 0
    %2326 = vmatpush2.bf16.msra.mxu0 0
    %2327 = vmatprep.subr.bf16.mxu0 0
    %2328 = vmatpush2.bf16.msra.mxu0 0
    %2329 = vmatprep.subr.bf16.mxu0 0
    %2330 = vmatpush2.bf16.msra.mxu0 0
    %2331 = vmatprep.subr.bf16.mxu0 0
    %2332 = vmatpush2.bf16.msra.mxu0 0
    %2333 = vmatprep.subr.bf16.mxu0 0
    %2334 = vmatpush2.bf16.msra.mxu0 0
    %2335 = vmatprep.subr.bf16.mxu0 0
    %2336 = vmatpush2.bf16.msra.mxu0 0
    %2337 = vmatprep.subr.bf16.mxu0 0
    %2338 = vmatpush2.bf16.msra.mxu0 0
    %2339 = vmatprep.subr.bf16.mxu0 0
    %2340 = vmatpush2.bf16.msra.mxu0 0
    %2341 = vmatprep.mubr.bf16.mxu0 0
    %2342 = vmatmul.mubr.bf16.gmra.mxu0 %v55
    %v2343 = vpop.f32.mrf.mxu0
    %v2344 = vadd.f32 0.0, %v2343
    %v2345 = vpop.f32.mrf.mxu0
    %v2346 = vpop.f32.mrf.mxu0
    %v2347 = vadd.f32 0.0, %v2346
    %v2348 = vpop.f32.mrf.mxu0
    %2349 = vdwg.mxu0
    %s2350 = scalar_lea.vmem %s3, 80
    %v2351 = vld [vmem:[%s2350] sm:$0xf]
    %v2352 = vld [vmem:[%s2350 + $0x4] sm:$0xf]
    %v2353 = vld [vmem:[%s2350 + $0x8] sm:$0xf]
    %v2354 = vld [vmem:[%s2350 + $0xc] sm:$0xf]
    %v2359 = vunpack.c.l.b16 %v2351
    %v2360 = vunpack.c.l.b16 %v2352
    %v2361 = vunpack.c.l.b16 %v2353
    %v2362 = vunpack.c.l.b16 %v2354
    %v2363 = vpack.c.b16 %v2360, %v2359
    %v2364 = vpack.c.b16 %v2362, %v2361
    %2367 = vmatprep.subr.bf16.mxu0 0
    %2368 = vmatpush1.bf16.msra.mxu0 0
    %2369 = vmatprep.subr.bf16.mxu0 0
    %2370 = vmatpush1.bf16.msra.mxu0 0
    %2371 = vmatprep.subr.bf16.mxu0 0
    %2372 = vmatpush1.bf16.msra.mxu0 0
    %2373 = vmatprep.subr.bf16.mxu0 0
    %2374 = vmatpush1.bf16.msra.mxu0 0
    %2375 = vmatprep.subr.bf16.mxu0 0
    %2376 = vmatpush1.bf16.msra.mxu0 0
    %2377 = vmatprep.subr.bf16.mxu0 0
    %2378 = vmatpush1.bf16.msra.mxu0 0
    %2379 = vmatprep.subr.bf16.mxu0 0
    %2380 = vmatpush1.bf16.msra.mxu0 %v2364
    %2381 = vmatprep.subr.bf16.mxu0 0
    %2382 = vmatpush1.bf16.msra.mxu0 %v2363
    %2383 = vmatprep.subr.bf16.mxu0 0
    %2384 = vmatpush2.bf16.msra.mxu0 0
    %2385 = vmatprep.subr.bf16.mxu0 0
    %2386 = vmatpush2.bf16.msra.mxu0 0
    %2387 = vmatprep.subr.bf16.mxu0 0
    %2388 = vmatpush2.bf16.msra.mxu0 0
    %2389 = vmatprep.subr.bf16.mxu0 0
    %2390 = vmatpush2.bf16.msra.mxu0 0
    %2391 = vmatprep.subr.bf16.mxu0 0
    %2392 = vmatpush2.bf16.msra.mxu0 0
    %2393 = vmatprep.subr.bf16.mxu0 0
    %2394 = vmatpush2.bf16.msra.mxu0 0
    %2395 = vmatprep.subr.bf16.mxu0 0
    %2396 = vmatpush2.bf16.msra.mxu0 0
    %2397 = vmatprep.subr.bf16.mxu0 0
    %2398 = vmatpush2.bf16.msra.mxu0 0
    %2399 = vmatprep.mubr.bf16.mxu0 0
    %2400 = vmatmul.mubr.bf16.gmra.mxu0 %v115
    %v2401 = vpop.f32.mrf.mxu0
    %v2402 = vadd.f32 0.0, %v2401
    %v2403 = vpop.f32.mrf.mxu0
    %v2404 = vpop.f32.mrf.mxu0
    %v2405 = vadd.f32 0.0, %v2404
    %v2406 = vpop.f32.mrf.mxu0
    %2407 = vmatprep.mubr.bf16.mxu0 0
    %2408 = vmatmul.mubr.bf16.gmra.mxu0 %v118
    %v2409 = vpop.f32.mrf.mxu0
    %v2410 = vadd.f32 0.0, %v2409
    %v2411 = vpop.f32.mrf.mxu0
    %v2412 = vpop.f32.mrf.mxu0
    %v2413 = vadd.f32 0.0, %v2412
    %v2414 = vpop.f32.mrf.mxu0
    %2415 = vdwg.mxu0
    %s2416 = scalar_lea.vmem %s4, 80
    %v2417 = vld [vmem:[%s2416] sm:$0xf]
    %v2418 = vld [vmem:[%s2416 + $0x4] sm:$0xf]
    %v2419 = vld [vmem:[%s2416 + $0x8] sm:$0xf]
    %v2420 = vld [vmem:[%s2416 + $0xc] sm:$0xf]
    %v2425 = vunpack.c.l.b16 %v2417
    %v2426 = vunpack.c.l.b16 %v2418
    %v2427 = vunpack.c.l.b16 %v2419
    %v2428 = vunpack.c.l.b16 %v2420
    %v2429 = vpack.c.b16 %v2426, %v2425
    %v2430 = vpack.c.b16 %v2428, %v2427
    %2433 = vmatprep.subr.bf16.mxu0 0
    %2434 = vmatpush1.bf16.msra.mxu0 0
    %2435 = vmatprep.subr.bf16.mxu0 0
    %2436 = vmatpush1.bf16.msra.mxu0 0
    %2437 = vmatprep.subr.bf16.mxu0 0
    %2438 = vmatpush1.bf16.msra.mxu0 0
    %2439 = vmatprep.subr.bf16.mxu0 0
    %2440 = vmatpush1.bf16.msra.mxu0 0
    %2441 = vmatprep.subr.bf16.mxu0 0
    %2442 = vmatpush1.bf16.msra.mxu0 0
    %2443 = vmatprep.subr.bf16.mxu0 0
    %2444 = vmatpush1.bf16.msra.mxu0 0
    %2445 = vmatprep.subr.bf16.mxu0 0
    %2446 = vmatpush1.bf16.msra.mxu0 %v2430
    %2447 = vmatprep.subr.bf16.mxu0 0
    %2448 = vmatpush1.bf16.msra.mxu0 %v2429
    %2449 = vmatprep.subr.bf16.mxu0 0
    %2450 = vmatpush2.bf16.msra.mxu0 0
    %2451 = vmatprep.subr.bf16.mxu0 0
    %2452 = vmatpush2.bf16.msra.mxu0 0
    %2453 = vmatprep.subr.bf16.mxu0 0
    %2454 = vmatpush2.bf16.msra.mxu0 0
    %2455 = vmatprep.subr.bf16.mxu0 0
    %2456 = vmatpush2.bf16.msra.mxu0 0
    %2457 = vmatprep.subr.bf16.mxu0 0
    %2458 = vmatpush2.bf16.msra.mxu0 0
    %2459 = vmatprep.subr.bf16.mxu0 0
    %2460 = vmatpush2.bf16.msra.mxu0 0
    %2461 = vmatprep.subr.bf16.mxu0 0
    %2462 = vmatpush2.bf16.msra.mxu0 0
    %2463 = vmatprep.subr.bf16.mxu0 0
    %2464 = vmatpush2.bf16.msra.mxu0 0
    %2465 = vmatprep.mubr.bf16.mxu0 0
    %2466 = vmatmul.mubr.bf16.gmra.mxu0 %v115
    %v2467 = vpop.f32.mrf.mxu0
    %v2468 = vadd.f32 0.0, %v2467
    %v2469 = vpop.f32.mrf.mxu0
    %v2470 = vpop.f32.mrf.mxu0
    %v2471 = vadd.f32 0.0, %v2470
    %v2472 = vpop.f32.mrf.mxu0
    %2473 = vmatprep.mubr.bf16.mxu0 0
    %2474 = vmatmul.mubr.bf16.gmra.mxu0 %v118
    %v2475 = vpop.f32.mrf.mxu0
    %v2476 = vadd.f32 0.0, %v2475
    %v2477 = vpop.f32.mrf.mxu0
    %v2478 = vpop.f32.mrf.mxu0
    %v2479 = vadd.f32 0.0, %v2478
    %v2480 = vpop.f32.mrf.mxu0
    %2481 = vdwg.mxu0
    %v2482 = vpack.c.bf16 %v2344, %v2344
    %v2483 = vpack.c.bf16 %v2347, %v2347
    %v2484 = vpack.c.bf16 %v2405, %v2402
    %v2485 = vpack.c.bf16 %v2413, %v2410
    %v2486 = vpack.c.bf16 %v2471, %v2468
    %v2487 = vpack.c.bf16 %v2479, %v2476
    %v2489 = vsel %vm240, %v2482, 0
    %v2492 = vsel %vm240, %v2484, 0
    %2494 = vmatprep.subr.bf16.mxu0 0
    %2495 = vmatpush1.bf16.xpose.msra.mxu0 0
    %2496 = vmatprep.subr.bf16.mxu0 0
    %2497 = vmatpush1.bf16.xpose.msra.mxu0 0
    %2498 = vmatprep.subr.bf16.mxu0 0
    %2499 = vmatpush1.bf16.xpose.msra.mxu0 0
    %2500 = vmatprep.subr.bf16.mxu0 0
    %2501 = vmatpush1.bf16.xpose.msra.mxu0 0
    %2502 = vmatprep.subr.bf16.mxu0 0
    %2503 = vmatpush1.bf16.xpose.msra.mxu0 0
    %2504 = vmatprep.subr.bf16.mxu0 0
    %2505 = vmatpush1.bf16.xpose.msra.mxu0 0
    %2506 = vmatprep.subr.bf16.mxu0 0
    %2507 = vmatpush1.bf16.xpose.msra.mxu0 0
    %2508 = vmatprep.subr.bf16.mxu0 0
    %2509 = vmatpush1.bf16.xpose.msra.mxu0 %v2492
    %2510 = vmatprep.subr.bf16.mxu0 0
    %2511 = vmatpush2.bf16.xpose.msra.mxu0 0
    %2512 = vmatprep.subr.bf16.mxu0 0
    %2513 = vmatpush2.bf16.xpose.msra.mxu0 0
    %2514 = vmatprep.subr.bf16.mxu0 0
    %2515 = vmatpush2.bf16.xpose.msra.mxu0 0
    %2516 = vmatprep.subr.bf16.mxu0 0
    %2517 = vmatpush2.bf16.xpose.msra.mxu0 0
    %2518 = vmatprep.subr.bf16.mxu0 0
    %2519 = vmatpush2.bf16.xpose.msra.mxu0 0
    %2520 = vmatprep.subr.bf16.mxu0 0
    %2521 = vmatpush2.bf16.xpose.msra.mxu0 0
    %2522 = vmatprep.subr.bf16.mxu0 0
    %2523 = vmatpush2.bf16.xpose.msra.mxu0 0
    %2524 = vmatprep.subr.bf16.mxu0 0
    %2525 = vmatpush2.bf16.xpose.msra.mxu0 0
    %2526 = vmatprep.mubr.bf16.mxu0 0
    %2527 = vmatmul.mubr.bf16.gmra.mxu0 %v2489
    %v2528 = vpop.f32.mrf.mxu0
    %v2529 = vadd.f32 0.0, %v2528
    %v2530 = vpop.f32.mrf.mxu0
    %v2531 = vpop.f32.mrf.mxu0
    %v2532 = vpop.f32.mrf.mxu0
    %2533 = vdwg.mxu0
    %v2535 = vsel %vm240, %v2483, 0
    %v2538 = vsel %vm240, %v2485, 0
    %2540 = vmatprep.subr.bf16.mxu0 0
    %2541 = vmatpush1.bf16.xpose.msra.mxu0 0
    %2542 = vmatprep.subr.bf16.mxu0 0
    %2543 = vmatpush1.bf16.xpose.msra.mxu0 0
    %2544 = vmatprep.subr.bf16.mxu0 0
    %2545 = vmatpush1.bf16.xpose.msra.mxu0 0
    %2546 = vmatprep.subr.bf16.mxu0 0
    %2547 = vmatpush1.bf16.xpose.msra.mxu0 0
    %2548 = vmatprep.subr.bf16.mxu0 0
    %2549 = vmatpush1.bf16.xpose.msra.mxu0 0
    %2550 = vmatprep.subr.bf16.mxu0 0
    %2551 = vmatpush1.bf16.xpose.msra.mxu0 0
    %2552 = vmatprep.subr.bf16.mxu0 0
    %2553 = vmatpush1.bf16.xpose.msra.mxu0 0
    %2554 = vmatprep.subr.bf16.mxu0 0
    %2555 = vmatpush1.bf16.xpose.msra.mxu0 %v2538
    %2556 = vmatprep.subr.bf16.mxu0 0
    %2557 = vmatpush2.bf16.xpose.msra.mxu0 0
    %2558 = vmatprep.subr.bf16.mxu0 0
    %2559 = vmatpush2.bf16.xpose.msra.mxu0 0
    %2560 = vmatprep.subr.bf16.mxu0 0
    %2561 = vmatpush2.bf16.xpose.msra.mxu0 0
    %2562 = vmatprep.subr.bf16.mxu0 0
    %2563 = vmatpush2.bf16.xpose.msra.mxu0 0
    %2564 = vmatprep.subr.bf16.mxu0 0
    %2565 = vmatpush2.bf16.xpose.msra.mxu0 0
    %2566 = vmatprep.subr.bf16.mxu0 0
    %2567 = vmatpush2.bf16.xpose.msra.mxu0 0
    %2568 = vmatprep.subr.bf16.mxu0 0
    %2569 = vmatpush2.bf16.xpose.msra.mxu0 0
    %2570 = vmatprep.subr.bf16.mxu0 0
    %2571 = vmatpush2.bf16.xpose.msra.mxu0 0
    %2572 = vmatprep.mubr.bf16.mxu0 0
    %2573 = vmatmul.mubr.bf16.gmra.mxu0 %v2535
    %v2574 = vpop.f32.mrf.mxu0
    %v2575 = vadd.f32 0.0, %v2574
    %v2576 = vpop.f32.mrf.mxu0
    %v2577 = vpop.f32.mrf.mxu0
    %v2578 = vpop.f32.mrf.mxu0
    %2579 = vdwg.mxu0
    %v2580 = vsel %vm333, %v2529, -inf
    %2581 = vmax.xlane.f32.xlu0 %v2580
    %v2582 = vpop.xlane.xlu0 %2581
    %v2583 = vsel %vm333, %v2575, -inf
    %2584 = vmax.xlane.f32.xlu0 %v2583
    %v2585 = vpop.xlane.xlu0 %2584
    %v2586 = vsub.f32 %v2529, %v2582
    %v2587 = vsub.f32 %v2575, %v2585
    %v2588 = vmul.f32 %v2586, 1.442695
    %v2589 = vpow.pop %v2588
    %v2590 = vmul.f32 %v2587, 1.442695
    %v2591 = vpow.pop %v2590
    %v2592 = vsel %vm333, %v2589, 0.0
    %2593 = vadd.xlane.f32.xlu0 %v2592
    %v2594 = vpop.xlane.xlu0 %2593
    %v2595 = vsel %vm333, %v2591, 0.0
    %2596 = vadd.xlane.f32.xlu0 %v2595
    %v2597 = vpop.xlane.xlu0 %2596
    %v2598 = vrcp.pop %v2594
    %v2599 = vrcp.pop %v2597
    %v2600 = vmul.f32 %v2589, %v2598
    %v2601 = vmul.f32 %v2591, %v2599
    %v2602 = vpack.c.bf16 %v2600, %v2600
    %v2603 = vpack.c.bf16 %v2601, %v2601
    %v2605 = vsel %vm333, %v2602, 0
    %2607 = vmatprep.subr.bf16.mxu0 0
    %2608 = vmatpush1.bf16.msra.mxu0 0
    %2609 = vmatprep.subr.bf16.mxu0 0
    %2610 = vmatpush1.bf16.msra.mxu0 0
    %2611 = vmatprep.subr.bf16.mxu0 0
    %2612 = vmatpush1.bf16.msra.mxu0 0
    %2613 = vmatprep.subr.bf16.mxu0 0
    %2614 = vmatpush1.bf16.msra.mxu0 0
    %2615 = vmatprep.subr.bf16.mxu0 0
    %2616 = vmatpush1.bf16.msra.mxu0 0
    %2617 = vmatprep.subr.bf16.mxu0 0
    %2618 = vmatpush1.bf16.msra.mxu0 0
    %2619 = vmatprep.subr.bf16.mxu0 0
    %2620 = vmatpush1.bf16.msra.mxu0 0
    %2621 = vmatprep.subr.bf16.mxu0 0
    %2622 = vmatpush1.bf16.msra.mxu0 %v2486
    %2623 = vmatprep.subr.bf16.mxu0 0
    %2624 = vmatpush2.bf16.msra.mxu0 0
    %2625 = vmatprep.subr.bf16.mxu0 0
    %2626 = vmatpush2.bf16.msra.mxu0 0
    %2627 = vmatprep.subr.bf16.mxu0 0
    %2628 = vmatpush2.bf16.msra.mxu0 0
    %2629 = vmatprep.subr.bf16.mxu0 0
    %2630 = vmatpush2.bf16.msra.mxu0 0
    %2631 = vmatprep.subr.bf16.mxu0 0
    %2632 = vmatpush2.bf16.msra.mxu0 0
    %2633 = vmatprep.subr.bf16.mxu0 0
    %2634 = vmatpush2.bf16.msra.mxu0 0
    %2635 = vmatprep.subr.bf16.mxu0 0
    %2636 = vmatpush2.bf16.msra.mxu0 0
    %2637 = vmatprep.subr.bf16.mxu0 0
    %2638 = vmatpush2.bf16.msra.mxu0 0
    %2639 = vmatprep.mubr.bf16.mxu0 0
    %2640 = vmatmul.mubr.bf16.gmra.mxu0 %v2605
    %v2641 = vpop.f32.mrf.mxu0
    %v2642 = vadd.f32 0.0, %v2641
    %v2643 = vpop.f32.mrf.mxu0
    %v2644 = vpop.f32.mrf.mxu0
    %v2645 = vpop.f32.mrf.mxu0
    %2646 = vdwg.mxu0
    %v2648 = vsel %vm333, %v2603, 0
    %2650 = vmatprep.subr.bf16.mxu0 0
    %2651 = vmatpush1.bf16.msra.mxu0 0
    %2652 = vmatprep.subr.bf16.mxu0 0
    %2653 = vmatpush1.bf16.msra.mxu0 0
    %2654 = vmatprep.subr.bf16.mxu0 0
    %2655 = vmatpush1.bf16.msra.mxu0 0
    %2656 = vmatprep.subr.bf16.mxu0 0
    %2657 = vmatpush1.bf16.msra.mxu0 0
    %2658 = vmatprep.subr.bf16.mxu0 0
    %2659 = vmatpush1.bf16.msra.mxu0 0
    %2660 = vmatprep.subr.bf16.mxu0 0
    %2661 = vmatpush1.bf16.msra.mxu0 0
    %2662 = vmatprep.subr.bf16.mxu0 0
    %2663 = vmatpush1.bf16.msra.mxu0 0
    %2664 = vmatprep.subr.bf16.mxu0 0
    %2665 = vmatpush1.bf16.msra.mxu0 %v2487
    %2666 = vmatprep.subr.bf16.mxu0 0
    %2667 = vmatpush2.bf16.msra.mxu0 0
    %2668 = vmatprep.subr.bf16.mxu0 0
    %2669 = vmatpush2.bf16.msra.mxu0 0
    %2670 = vmatprep.subr.bf16.mxu0 0
    %2671 = vmatpush2.bf16.msra.mxu0 0
    %2672 = vmatprep.subr.bf16.mxu0 0
    %2673 = vmatpush2.bf16.msra.mxu0 0
    %2674 = vmatprep.subr.bf16.mxu0 0
    %2675 = vmatpush2.bf16.msra.mxu0 0
    %2676 = vmatprep.subr.bf16.mxu0 0
    %2677 = vmatpush2.bf16.msra.mxu0 0
    %2678 = vmatprep.subr.bf16.mxu0 0
    %2679 = vmatpush2.bf16.msra.mxu0 0
    %2680 = vmatprep.subr.bf16.mxu0 0
    %2681 = vmatpush2.bf16.msra.mxu0 0
    %2682 = vmatprep.mubr.bf16.mxu0 0
    %2683 = vmatmul.mubr.bf16.gmra.mxu0 %v2648
    %v2684 = vpop.f32.mrf.mxu0
    %v2685 = vadd.f32 0.0, %v2684
    %v2686 = vpop.f32.mrf.mxu0
    %v2687 = vpop.f32.mrf.mxu0
    %v2688 = vpop.f32.mrf.mxu0
    %2689 = vdwg.mxu0
    %v2690 = vpack.c.bf16 %v2685, %v2642
    %s2691 = scalar_lea.vmem %s5, 10
    %v2692 = vld [vmem:[%s2691] sm:$0x3]
    %v2694 = vsel %vm240, %v2690, 0
    %v2697 = vsel %vm850, %v2692, 0
    %2699 = vmatprep.subr.bf16.mxu0 0
    %2700 = vmatpush1.bf16.msra.mxu0 0
    %2701 = vmatprep.subr.bf16.mxu0 0
    %2702 = vmatpush1.bf16.msra.mxu0 0
    %2703 = vmatprep.subr.bf16.mxu0 0
    %2704 = vmatpush1.bf16.msra.mxu0 0
    %2705 = vmatprep.subr.bf16.mxu0 0
    %2706 = vmatpush1.bf16.msra.mxu0 0
    %2707 = vmatprep.subr.bf16.mxu0 0
    %2708 = vmatpush1.bf16.msra.mxu0 0
    %2709 = vmatprep.subr.bf16.mxu0 0
    %2710 = vmatpush1.bf16.msra.mxu0 0
    %2711 = vmatprep.subr.bf16.mxu0 0
    %2712 = vmatpush1.bf16.msra.mxu0 0
    %2713 = vmatprep.subr.bf16.mxu0 0
    %2714 = vmatpush1.bf16.msra.mxu0 %v2697
    %2715 = vmatprep.subr.bf16.mxu0 0
    %2716 = vmatpush2.bf16.msra.mxu0 0
    %2717 = vmatprep.subr.bf16.mxu0 0
    %2718 = vmatpush2.bf16.msra.mxu0 0
    %2719 = vmatprep.subr.bf16.mxu0 0
    %2720 = vmatpush2.bf16.msra.mxu0 0
    %2721 = vmatprep.subr.bf16.mxu0 0
    %2722 = vmatpush2.bf16.msra.mxu0 0
    %2723 = vmatprep.subr.bf16.mxu0 0
    %2724 = vmatpush2.bf16.msra.mxu0 0
    %2725 = vmatprep.subr.bf16.mxu0 0
    %2726 = vmatpush2.bf16.msra.mxu0 0
    %2727 = vmatprep.subr.bf16.mxu0 0
    %2728 = vmatpush2.bf16.msra.mxu0 0
    %2729 = vmatprep.subr.bf16.mxu0 0
    %2730 = vmatpush2.bf16.msra.mxu0 0
    %2731 = vmatprep.mubr.bf16.mxu0 0
    %2732 = vmatmul.mubr.bf16.gmra.mxu0 %v2694
    %v2733 = vpop.f32.mrf.mxu0
    %v2734 = vadd.f32 0.0, %v2733
    %v2735 = vpop.f32.mrf.mxu0
    %v2736 = vpop.f32.mrf.mxu0
    %v2737 = vadd.f32 0.0, %v2736
    %v2738 = vpop.f32.mrf.mxu0
    %2739 = vdwg.mxu0
    %v2740 = vadd.f32 %v2290, %v2734
    %v2741 = vadd.f32 %v2291, %v2737
    %s2742 = scalar_lea.vmem %s2, 96
    %v2743 = vld [vmem:[%s2742] sm:$0xf]
    %v2744 = vld [vmem:[%s2742 + $0x4] sm:$0xf]
    %v2745 = vld [vmem:[%s2742 + $0x8] sm:$0xf]
    %v2746 = vld [vmem:[%s2742 + $0xc] sm:$0xf]
    %v2751 = vunpack.c.l.b16 %v2743
    %v2752 = vunpack.c.l.b16 %v2744
    %v2753 = vunpack.c.l.b16 %v2745
    %v2754 = vunpack.c.l.b16 %v2746
    %v2755 = vpack.c.b16 %v2752, %v2751
    %v2756 = vpack.c.b16 %v2754, %v2753
    %2759 = vmatprep.subr.bf16.mxu0 0
    %2760 = vmatpush1.bf16.msra.mxu0 0
    %2761 = vmatprep.subr.bf16.mxu0 0
    %2762 = vmatpush1.bf16.msra.mxu0 0
    %2763 = vmatprep.subr.bf16.mxu0 0
    %2764 = vmatpush1.bf16.msra.mxu0 0
    %2765 = vmatprep.subr.bf16.mxu0 0
    %2766 = vmatpush1.bf16.msra.mxu0 0
    %2767 = vmatprep.subr.bf16.mxu0 0
    %2768 = vmatpush1.bf16.msra.mxu0 0
    %2769 = vmatprep.subr.bf16.mxu0 0
    %2770 = vmatpush1.bf16.msra.mxu0 0
    %2771 = vmatprep.subr.bf16.mxu0 0
    %2772 = vmatpush1.bf16.msra.mxu0 %v2756
    %2773 = vmatprep.subr.bf16.mxu0 0
    %2774 = vmatpush1.bf16.msra.mxu0 %v2755
    %2775 = vmatprep.subr.bf16.mxu0 0
    %2776 = vmatpush2.bf16.msra.mxu0 0
    %2777 = vmatprep.subr.bf16.mxu0 0
    %2778 = vmatpush2.bf16.msra.mxu0 0
    %2779 = vmatprep.subr.bf16.mxu0 0
    %2780 = vmatpush2.bf16.msra.mxu0 0
    %2781 = vmatprep.subr.bf16.mxu0 0
    %2782 = vmatpush2.bf16.msra.mxu0 0
    %2783 = vmatprep.subr.bf16.mxu0 0
    %2784 = vmatpush2.bf16.msra.mxu0 0
    %2785 = vmatprep.subr.bf16.mxu0 0
    %2786 = vmatpush2.bf16.msra.mxu0 0
    %2787 = vmatprep.subr.bf16.mxu0 0
    %2788 = vmatpush2.bf16.msra.mxu0 0
    %2789 = vmatprep.subr.bf16.mxu0 0
    %2790 = vmatpush2.bf16.msra.mxu0 0
    %2791 = vmatprep.mubr.bf16.mxu0 0
    %2792 = vmatmul.mubr.bf16.gmra.mxu0 %v55
    %v2793 = vpop.f32.mrf.mxu0
    %v2794 = vadd.f32 0.0, %v2793
    %v2795 = vpop.f32.mrf.mxu0
    %v2796 = vpop.f32.mrf.mxu0
    %v2797 = vadd.f32 0.0, %v2796
    %v2798 = vpop.f32.mrf.mxu0
    %2799 = vdwg.mxu0
    %s2800 = scalar_lea.vmem %s3, 96
    %v2801 = vld [vmem:[%s2800] sm:$0xf]
    %v2802 = vld [vmem:[%s2800 + $0x4] sm:$0xf]
    %v2803 = vld [vmem:[%s2800 + $0x8] sm:$0xf]
    %v2804 = vld [vmem:[%s2800 + $0xc] sm:$0xf]
    %v2809 = vunpack.c.l.b16 %v2801
    %v2810 = vunpack.c.l.b16 %v2802
    %v2811 = vunpack.c.l.b16 %v2803
    %v2812 = vunpack.c.l.b16 %v2804
    %v2813 = vpack.c.b16 %v2810, %v2809
    %v2814 = vpack.c.b16 %v2812, %v2811
    %2817 = vmatprep.subr.bf16.mxu0 0
    %2818 = vmatpush1.bf16.msra.mxu0 0
    %2819 = vmatprep.subr.bf16.mxu0 0
    %2820 = vmatpush1.bf16.msra.mxu0 0
    %2821 = vmatprep.subr.bf16.mxu0 0
    %2822 = vmatpush1.bf16.msra.mxu0 0
    %2823 = vmatprep.subr.bf16.mxu0 0
    %2824 = vmatpush1.bf16.msra.mxu0 0
    %2825 = vmatprep.subr.bf16.mxu0 0
    %2826 = vmatpush1.bf16.msra.mxu0 0
    %2827 = vmatprep.subr.bf16.mxu0 0
    %2828 = vmatpush1.bf16.msra.mxu0 0
    %2829 = vmatprep.subr.bf16.mxu0 0
    %2830 = vmatpush1.bf16.msra.mxu0 %v2814
    %2831 = vmatprep.subr.bf16.mxu0 0
    %2832 = vmatpush1.bf16.msra.mxu0 %v2813
    %2833 = vmatprep.subr.bf16.mxu0 0
    %2834 = vmatpush2.bf16.msra.mxu0 0
    %2835 = vmatprep.subr.bf16.mxu0 0
    %2836 = vmatpush2.bf16.msra.mxu0 0
    %2837 = vmatprep.subr.bf16.mxu0 0
    %2838 = vmatpush2.bf16.msra.mxu0 0
    %2839 = vmatprep.subr.bf16.mxu0 0
    %2840 = vmatpush2.bf16.msra.mxu0 0
    %2841 = vmatprep.subr.bf16.mxu0 0
    %2842 = vmatpush2.bf16.msra.mxu0 0
    %2843 = vmatprep.subr.bf16.mxu0 0
    %2844 = vmatpush2.bf16.msra.mxu0 0
    %2845 = vmatprep.subr.bf16.mxu0 0
    %2846 = vmatpush2.bf16.msra.mxu0 0
    %2847 = vmatprep.subr.bf16.mxu0 0
    %2848 = vmatpush2.bf16.msra.mxu0 0
    %2849 = vmatprep.mubr.bf16.mxu0 0
    %2850 = vmatmul.mubr.bf16.gmra.mxu0 %v115
    %v2851 = vpop.f32.mrf.mxu0
    %v2852 = vadd.f32 0.0, %v2851
    %v2853 = vpop.f32.mrf.mxu0
    %v2854 = vpop.f32.mrf.mxu0
    %v2855 = vadd.f32 0.0, %v2854
    %v2856 = vpop.f32.mrf.mxu0
    %2857 = vmatprep.mubr.bf16.mxu0 0
    %2858 = vmatmul.mubr.bf16.gmra.mxu0 %v118
    %v2859 = vpop.f32.mrf.mxu0
    %v2860 = vadd.f32 0.0, %v2859
    %v2861 = vpop.f32.mrf.mxu0
    %v2862 = vpop.f32.mrf.mxu0
    %v2863 = vadd.f32 0.0, %v2862
    %v2864 = vpop.f32.mrf.mxu0
    %2865 = vdwg.mxu0
    %s2866 = scalar_lea.vmem %s4, 96
    %v2867 = vld [vmem:[%s2866] sm:$0xf]
    %v2868 = vld [vmem:[%s2866 + $0x4] sm:$0xf]
    %v2869 = vld [vmem:[%s2866 + $0x8] sm:$0xf]
    %v2870 = vld [vmem:[%s2866 + $0xc] sm:$0xf]
    %v2875 = vunpack.c.l.b16 %v2867
    %v2876 = vunpack.c.l.b16 %v2868
    %v2877 = vunpack.c.l.b16 %v2869
    %v2878 = vunpack.c.l.b16 %v2870
    %v2879 = vpack.c.b16 %v2876, %v2875
    %v2880 = vpack.c.b16 %v2878, %v2877
    %2883 = vmatprep.subr.bf16.mxu0 0
    %2884 = vmatpush1.bf16.msra.mxu0 0
    %2885 = vmatprep.subr.bf16.mxu0 0
    %2886 = vmatpush1.bf16.msra.mxu0 0
    %2887 = vmatprep.subr.bf16.mxu0 0
    %2888 = vmatpush1.bf16.msra.mxu0 0
    %2889 = vmatprep.subr.bf16.mxu0 0
    %2890 = vmatpush1.bf16.msra.mxu0 0
    %2891 = vmatprep.subr.bf16.mxu0 0
    %2892 = vmatpush1.bf16.msra.mxu0 0
    %2893 = vmatprep.subr.bf16.mxu0 0
    %2894 = vmatpush1.bf16.msra.mxu0 0
    %2895 = vmatprep.subr.bf16.mxu0 0
    %2896 = vmatpush1.bf16.msra.mxu0 %v2880
    %2897 = vmatprep.subr.bf16.mxu0 0
    %2898 = vmatpush1.bf16.msra.mxu0 %v2879
    %2899 = vmatprep.subr.bf16.mxu0 0
    %2900 = vmatpush2.bf16.msra.mxu0 0
    %2901 = vmatprep.subr.bf16.mxu0 0
    %2902 = vmatpush2.bf16.msra.mxu0 0
    %2903 = vmatprep.subr.bf16.mxu0 0
    %2904 = vmatpush2.bf16.msra.mxu0 0
    %2905 = vmatprep.subr.bf16.mxu0 0
    %2906 = vmatpush2.bf16.msra.mxu0 0
    %2907 = vmatprep.subr.bf16.mxu0 0
    %2908 = vmatpush2.bf16.msra.mxu0 0
    %2909 = vmatprep.subr.bf16.mxu0 0
    %2910 = vmatpush2.bf16.msra.mxu0 0
    %2911 = vmatprep.subr.bf16.mxu0 0
    %2912 = vmatpush2.bf16.msra.mxu0 0
    %2913 = vmatprep.subr.bf16.mxu0 0
    %2914 = vmatpush2.bf16.msra.mxu0 0
    %2915 = vmatprep.mubr.bf16.mxu0 0
    %2916 = vmatmul.mubr.bf16.gmra.mxu0 %v115
    %v2917 = vpop.f32.mrf.mxu0
    %v2918 = vadd.f32 0.0, %v2917
    %v2919 = vpop.f32.mrf.mxu0
    %v2920 = vpop.f32.mrf.mxu0
    %v2921 = vadd.f32 0.0, %v2920
    %v2922 = vpop.f32.mrf.mxu0
    %2923 = vmatprep.mubr.bf16.mxu0 0
    %2924 = vmatmul.mubr.bf16.gmra.mxu0 %v118
    %v2925 = vpop.f32.mrf.mxu0
    %v2926 = vadd.f32 0.0, %v2925
    %v2927 = vpop.f32.mrf.mxu0
    %v2928 = vpop.f32.mrf.mxu0
    %v2929 = vadd.f32 0.0, %v2928
    %v2930 = vpop.f32.mrf.mxu0
    %2931 = vdwg.mxu0
    %v2932 = vpack.c.bf16 %v2794, %v2794
    %v2933 = vpack.c.bf16 %v2797, %v2797
    %v2934 = vpack.c.bf16 %v2855, %v2852
    %v2935 = vpack.c.bf16 %v2863, %v2860
    %v2936 = vpack.c.bf16 %v2921, %v2918
    %v2937 = vpack.c.bf16 %v2929, %v2926
    %v2939 = vsel %vm240, %v2932, 0
    %v2942 = vsel %vm240, %v2934, 0
    %2944 = vmatprep.subr.bf16.mxu0 0
    %2945 = vmatpush1.bf16.xpose.msra.mxu0 0
    %2946 = vmatprep.subr.bf16.mxu0 0
    %2947 = vmatpush1.bf16.xpose.msra.mxu0 0
    %2948 = vmatprep.subr.bf16.mxu0 0
    %2949 = vmatpush1.bf16.xpose.msra.mxu0 0
    %2950 = vmatprep.subr.bf16.mxu0 0
    %2951 = vmatpush1.bf16.xpose.msra.mxu0 0
    %2952 = vmatprep.subr.bf16.mxu0 0
    %2953 = vmatpush1.bf16.xpose.msra.mxu0 0
    %2954 = vmatprep.subr.bf16.mxu0 0
    %2955 = vmatpush1.bf16.xpose.msra.mxu0 0
    %2956 = vmatprep.subr.bf16.mxu0 0
    %2957 = vmatpush1.bf16.xpose.msra.mxu0 0
    %2958 = vmatprep.subr.bf16.mxu0 0
    %2959 = vmatpush1.bf16.xpose.msra.mxu0 %v2942
    %2960 = vmatprep.subr.bf16.mxu0 0
    %2961 = vmatpush2.bf16.xpose.msra.mxu0 0
    %2962 = vmatprep.subr.bf16.mxu0 0
    %2963 = vmatpush2.bf16.xpose.msra.mxu0 0
    %2964 = vmatprep.subr.bf16.mxu0 0
    %2965 = vmatpush2.bf16.xpose.msra.mxu0 0
    %2966 = vmatprep.subr.bf16.mxu0 0
    %2967 = vmatpush2.bf16.xpose.msra.mxu0 0
    %2968 = vmatprep.subr.bf16.mxu0 0
    %2969 = vmatpush2.bf16.xpose.msra.mxu0 0
    %2970 = vmatprep.subr.bf16.mxu0 0
    %2971 = vmatpush2.bf16.xpose.msra.mxu0 0
    %2972 = vmatprep.subr.bf16.mxu0 0
    %2973 = vmatpush2.bf16.xpose.msra.mxu0 0
    %2974 = vmatprep.subr.bf16.mxu0 0
    %2975 = vmatpush2.bf16.xpose.msra.mxu0 0
    %2976 = vmatprep.mubr.bf16.mxu0 0
    %2977 = vmatmul.mubr.bf16.gmra.mxu0 %v2939
    %v2978 = vpop.f32.mrf.mxu0
    %v2979 = vadd.f32 0.0, %v2978
    %v2980 = vpop.f32.mrf.mxu0
    %v2981 = vpop.f32.mrf.mxu0
    %v2982 = vpop.f32.mrf.mxu0
    %2983 = vdwg.mxu0
    %v2985 = vsel %vm240, %v2933, 0
    %v2988 = vsel %vm240, %v2935, 0
    %2990 = vmatprep.subr.bf16.mxu0 0
    %2991 = vmatpush1.bf16.xpose.msra.mxu0 0
    %2992 = vmatprep.subr.bf16.mxu0 0
    %2993 = vmatpush1.bf16.xpose.msra.mxu0 0
    %2994 = vmatprep.subr.bf16.mxu0 0
    %2995 = vmatpush1.bf16.xpose.msra.mxu0 0
    %2996 = vmatprep.subr.bf16.mxu0 0
    %2997 = vmatpush1.bf16.xpose.msra.mxu0 0
    %2998 = vmatprep.subr.bf16.mxu0 0
    %2999 = vmatpush1.bf16.xpose.msra.mxu0 0
    %3000 = vmatprep.subr.bf16.mxu0 0
    %3001 = vmatpush1.bf16.xpose.msra.mxu0 0
    %3002 = vmatprep.subr.bf16.mxu0 0
    %3003 = vmatpush1.bf16.xpose.msra.mxu0 0
    %3004 = vmatprep.subr.bf16.mxu0 0
    %3005 = vmatpush1.bf16.xpose.msra.mxu0 %v2988
    %3006 = vmatprep.subr.bf16.mxu0 0
    %3007 = vmatpush2.bf16.xpose.msra.mxu0 0
    %3008 = vmatprep.subr.bf16.mxu0 0
    %3009 = vmatpush2.bf16.xpose.msra.mxu0 0
    %3010 = vmatprep.subr.bf16.mxu0 0
    %3011 = vmatpush2.bf16.xpose.msra.mxu0 0
    %3012 = vmatprep.subr.bf16.mxu0 0
    %3013 = vmatpush2.bf16.xpose.msra.mxu0 0
    %3014 = vmatprep.subr.bf16.mxu0 0
    %3015 = vmatpush2.bf16.xpose.msra.mxu0 0
    %3016 = vmatprep.subr.bf16.mxu0 0
    %3017 = vmatpush2.bf16.xpose.msra.mxu0 0
    %3018 = vmatprep.subr.bf16.mxu0 0
    %3019 = vmatpush2.bf16.xpose.msra.mxu0 0
    %3020 = vmatprep.subr.bf16.mxu0 0
    %3021 = vmatpush2.bf16.xpose.msra.mxu0 0
    %3022 = vmatprep.mubr.bf16.mxu0 0
    %3023 = vmatmul.mubr.bf16.gmra.mxu0 %v2985
    %v3024 = vpop.f32.mrf.mxu0
    %v3025 = vadd.f32 0.0, %v3024
    %v3026 = vpop.f32.mrf.mxu0
    %v3027 = vpop.f32.mrf.mxu0
    %v3028 = vpop.f32.mrf.mxu0
    %3029 = vdwg.mxu0
    %v3030 = vsel %vm333, %v2979, -inf
    %3031 = vmax.xlane.f32.xlu0 %v3030
    %v3032 = vpop.xlane.xlu0 %3031
    %v3033 = vsel %vm333, %v3025, -inf
    %3034 = vmax.xlane.f32.xlu0 %v3033
    %v3035 = vpop.xlane.xlu0 %3034
    %v3036 = vsub.f32 %v2979, %v3032
    %v3037 = vsub.f32 %v3025, %v3035
    %v3038 = vmul.f32 %v3036, 1.442695
    %v3039 = vpow.pop %v3038
    %v3040 = vmul.f32 %v3037, 1.442695
    %v3041 = vpow.pop %v3040
    %v3042 = vsel %vm333, %v3039, 0.0
    %3043 = vadd.xlane.f32.xlu0 %v3042
    %v3044 = vpop.xlane.xlu0 %3043
    %v3045 = vsel %vm333, %v3041, 0.0
    %3046 = vadd.xlane.f32.xlu0 %v3045
    %v3047 = vpop.xlane.xlu0 %3046
    %v3048 = vrcp.pop %v3044
    %v3049 = vrcp.pop %v3047
    %v3050 = vmul.f32 %v3039, %v3048
    %v3051 = vmul.f32 %v3041, %v3049
    %v3052 = vpack.c.bf16 %v3050, %v3050
    %v3053 = vpack.c.bf16 %v3051, %v3051
    %v3055 = vsel %vm333, %v3052, 0
    %3057 = vmatprep.subr.bf16.mxu0 0
    %3058 = vmatpush1.bf16.msra.mxu0 0
    %3059 = vmatprep.subr.bf16.mxu0 0
    %3060 = vmatpush1.bf16.msra.mxu0 0
    %3061 = vmatprep.subr.bf16.mxu0 0
    %3062 = vmatpush1.bf16.msra.mxu0 0
    %3063 = vmatprep.subr.bf16.mxu0 0
    %3064 = vmatpush1.bf16.msra.mxu0 0
    %3065 = vmatprep.subr.bf16.mxu0 0
    %3066 = vmatpush1.bf16.msra.mxu0 0
    %3067 = vmatprep.subr.bf16.mxu0 0
    %3068 = vmatpush1.bf16.msra.mxu0 0
    %3069 = vmatprep.subr.bf16.mxu0 0
    %3070 = vmatpush1.bf16.msra.mxu0 0
    %3071 = vmatprep.subr.bf16.mxu0 0
    %3072 = vmatpush1.bf16.msra.mxu0 %v2936
    %3073 = vmatprep.subr.bf16.mxu0 0
    %3074 = vmatpush2.bf16.msra.mxu0 0
    %3075 = vmatprep.subr.bf16.mxu0 0
    %3076 = vmatpush2.bf16.msra.mxu0 0
    %3077 = vmatprep.subr.bf16.mxu0 0
    %3078 = vmatpush2.bf16.msra.mxu0 0
    %3079 = vmatprep.subr.bf16.mxu0 0
    %3080 = vmatpush2.bf16.msra.mxu0 0
    %3081 = vmatprep.subr.bf16.mxu0 0
    %3082 = vmatpush2.bf16.msra.mxu0 0
    %3083 = vmatprep.subr.bf16.mxu0 0
    %3084 = vmatpush2.bf16.msra.mxu0 0
    %3085 = vmatprep.subr.bf16.mxu0 0
    %3086 = vmatpush2.bf16.msra.mxu0 0
    %3087 = vmatprep.subr.bf16.mxu0 0
    %3088 = vmatpush2.bf16.msra.mxu0 0
    %3089 = vmatprep.mubr.bf16.mxu0 0
    %3090 = vmatmul.mubr.bf16.gmra.mxu0 %v3055
    %v3091 = vpop.f32.mrf.mxu0
    %v3092 = vadd.f32 0.0, %v3091
    %v3093 = vpop.f32.mrf.mxu0
    %v3094 = vpop.f32.mrf.mxu0
    %v3095 = vpop.f32.mrf.mxu0
    %3096 = vdwg.mxu0
    %v3098 = vsel %vm333, %v3053, 0
    %3100 = vmatprep.subr.bf16.mxu0 0
    %3101 = vmatpush1.bf16.msra.mxu0 0
    %3102 = vmatprep.subr.bf16.mxu0 0
    %3103 = vmatpush1.bf16.msra.mxu0 0
    %3104 = vmatprep.subr.bf16.mxu0 0
    %3105 = vmatpush1.bf16.msra.mxu0 0
    %3106 = vmatprep.subr.bf16.mxu0 0
    %3107 = vmatpush1.bf16.msra.mxu0 0
    %3108 = vmatprep.subr.bf16.mxu0 0
    %3109 = vmatpush1.bf16.msra.mxu0 0
    %3110 = vmatprep.subr.bf16.mxu0 0
    %3111 = vmatpush1.bf16.msra.mxu0 0
    %3112 = vmatprep.subr.bf16.mxu0 0
    %3113 = vmatpush1.bf16.msra.mxu0 0
    %3114 = vmatprep.subr.bf16.mxu0 0
    %3115 = vmatpush1.bf16.msra.mxu0 %v2937
    %3116 = vmatprep.subr.bf16.mxu0 0
    %3117 = vmatpush2.bf16.msra.mxu0 0
    %3118 = vmatprep.subr.bf16.mxu0 0
    %3119 = vmatpush2.bf16.msra.mxu0 0
    %3120 = vmatprep.subr.bf16.mxu0 0
    %3121 = vmatpush2.bf16.msra.mxu0 0
    %3122 = vmatprep.subr.bf16.mxu0 0
    %3123 = vmatpush2.bf16.msra.mxu0 0
    %3124 = vmatprep.subr.bf16.mxu0 0
    %3125 = vmatpush2.bf16.msra.mxu0 0
    %3126 = vmatprep.subr.bf16.mxu0 0
    %3127 = vmatpush2.bf16.msra.mxu0 0
    %3128 = vmatprep.subr.bf16.mxu0 0
    %3129 = vmatpush2.bf16.msra.mxu0 0
    %3130 = vmatprep.subr.bf16.mxu0 0
    %3131 = vmatpush2.bf16.msra.mxu0 0
    %3132 = vmatprep.mubr.bf16.mxu0 0
    %3133 = vmatmul.mubr.bf16.gmra.mxu0 %v3098
    %v3134 = vpop.f32.mrf.mxu0
    %v3135 = vadd.f32 0.0, %v3134
    %v3136 = vpop.f32.mrf.mxu0
    %v3137 = vpop.f32.mrf.mxu0
    %v3138 = vpop.f32.mrf.mxu0
    %3139 = vdwg.mxu0
    %v3140 = vpack.c.bf16 %v3135, %v3092
    %s3141 = scalar_lea.vmem %s5, 12
    %v3142 = vld [vmem:[%s3141] sm:$0x3]
    %v3144 = vsel %vm240, %v3140, 0
    %v3147 = vsel %vm850, %v3142, 0
    %3149 = vmatprep.subr.bf16.mxu0 0
    %3150 = vmatpush1.bf16.msra.mxu0 0
    %3151 = vmatprep.subr.bf16.mxu0 0
    %3152 = vmatpush1.bf16.msra.mxu0 0
    %3153 = vmatprep.subr.bf16.mxu0 0
    %3154 = vmatpush1.bf16.msra.mxu0 0
    %3155 = vmatprep.subr.bf16.mxu0 0
    %3156 = vmatpush1.bf16.msra.mxu0 0
    %3157 = vmatprep.subr.bf16.mxu0 0
    %3158 = vmatpush1.bf16.msra.mxu0 0
    %3159 = vmatprep.subr.bf16.mxu0 0
    %3160 = vmatpush1.bf16.msra.mxu0 0
    %3161 = vmatprep.subr.bf16.mxu0 0
    %3162 = vmatpush1.bf16.msra.mxu0 0
    %3163 = vmatprep.subr.bf16.mxu0 0
    %3164 = vmatpush1.bf16.msra.mxu0 %v3147
    %3165 = vmatprep.subr.bf16.mxu0 0
    %3166 = vmatpush2.bf16.msra.mxu0 0
    %3167 = vmatprep.subr.bf16.mxu0 0
    %3168 = vmatpush2.bf16.msra.mxu0 0
    %3169 = vmatprep.subr.bf16.mxu0 0
    %3170 = vmatpush2.bf16.msra.mxu0 0
    %3171 = vmatprep.subr.bf16.mxu0 0
    %3172 = vmatpush2.bf16.msra.mxu0 0
    %3173 = vmatprep.subr.bf16.mxu0 0
    %3174 = vmatpush2.bf16.msra.mxu0 0
    %3175 = vmatprep.subr.bf16.mxu0 0
    %3176 = vmatpush2.bf16.msra.mxu0 0
    %3177 = vmatprep.subr.bf16.mxu0 0
    %3178 = vmatpush2.bf16.msra.mxu0 0
    %3179 = vmatprep.subr.bf16.mxu0 0
    %3180 = vmatpush2.bf16.msra.mxu0 0
    %3181 = vmatprep.mubr.bf16.mxu0 0
    %3182 = vmatmul.mubr.bf16.gmra.mxu0 %v3144
    %v3183 = vpop.f32.mrf.mxu0
    %v3184 = vadd.f32 0.0, %v3183
    %v3185 = vpop.f32.mrf.mxu0
    %v3186 = vpop.f32.mrf.mxu0
    %v3187 = vadd.f32 0.0, %v3186
    %v3188 = vpop.f32.mrf.mxu0
    %3189 = vdwg.mxu0
    %v3190 = vadd.f32 %v2740, %v3184
    %v3191 = vadd.f32 %v2741, %v3187
    %s3192 = scalar_lea.vmem %s2, 112
    %v3193 = vld [vmem:[%s3192] sm:$0xf]
    %v3194 = vld [vmem:[%s3192 + $0x4] sm:$0xf]
    %v3195 = vld [vmem:[%s3192 + $0x8] sm:$0xf]
    %v3196 = vld [vmem:[%s3192 + $0xc] sm:$0xf]
    %v3201 = vunpack.c.l.b16 %v3193
    %v3202 = vunpack.c.l.b16 %v3194
    %v3203 = vunpack.c.l.b16 %v3195
    %v3204 = vunpack.c.l.b16 %v3196
    %v3205 = vpack.c.b16 %v3202, %v3201
    %v3206 = vpack.c.b16 %v3204, %v3203
    %3209 = vmatprep.subr.bf16.mxu0 0
    %3210 = vmatpush1.bf16.msra.mxu0 0
    %3211 = vmatprep.subr.bf16.mxu0 0
    %3212 = vmatpush1.bf16.msra.mxu0 0
    %3213 = vmatprep.subr.bf16.mxu0 0
    %3214 = vmatpush1.bf16.msra.mxu0 0
    %3215 = vmatprep.subr.bf16.mxu0 0
    %3216 = vmatpush1.bf16.msra.mxu0 0
    %3217 = vmatprep.subr.bf16.mxu0 0
    %3218 = vmatpush1.bf16.msra.mxu0 0
    %3219 = vmatprep.subr.bf16.mxu0 0
    %3220 = vmatpush1.bf16.msra.mxu0 0
    %3221 = vmatprep.subr.bf16.mxu0 0
    %3222 = vmatpush1.bf16.msra.mxu0 %v3206
    %3223 = vmatprep.subr.bf16.mxu0 0
    %3224 = vmatpush1.bf16.msra.mxu0 %v3205
    %3225 = vmatprep.subr.bf16.mxu0 0
    %3226 = vmatpush2.bf16.msra.mxu0 0
    %3227 = vmatprep.subr.bf16.mxu0 0
    %3228 = vmatpush2.bf16.msra.mxu0 0
    %3229 = vmatprep.subr.bf16.mxu0 0
    %3230 = vmatpush2.bf16.msra.mxu0 0
    %3231 = vmatprep.subr.bf16.mxu0 0
    %3232 = vmatpush2.bf16.msra.mxu0 0
    %3233 = vmatprep.subr.bf16.mxu0 0
    %3234 = vmatpush2.bf16.msra.mxu0 0
    %3235 = vmatprep.subr.bf16.mxu0 0
    %3236 = vmatpush2.bf16.msra.mxu0 0
    %3237 = vmatprep.subr.bf16.mxu0 0
    %3238 = vmatpush2.bf16.msra.mxu0 0
    %3239 = vmatprep.subr.bf16.mxu0 0
    %3240 = vmatpush2.bf16.msra.mxu0 0
    %3241 = vmatprep.mubr.bf16.mxu0 0
    %3242 = vmatmul.mubr.bf16.gmra.mxu0 %v55
    %v3243 = vpop.f32.mrf.mxu0
    %v3244 = vadd.f32 0.0, %v3243
    %v3245 = vpop.f32.mrf.mxu0
    %v3246 = vpop.f32.mrf.mxu0
    %v3247 = vadd.f32 0.0, %v3246
    %v3248 = vpop.f32.mrf.mxu0
    %3249 = vdwg.mxu0
    %s3250 = scalar_lea.vmem %s3, 112
    %v3251 = vld [vmem:[%s3250] sm:$0xf]
    %v3252 = vld [vmem:[%s3250 + $0x4] sm:$0xf]
    %v3253 = vld [vmem:[%s3250 + $0x8] sm:$0xf]
    %v3254 = vld [vmem:[%s3250 + $0xc] sm:$0xf]
    %v3259 = vunpack.c.l.b16 %v3251
    %v3260 = vunpack.c.l.b16 %v3252
    %v3261 = vunpack.c.l.b16 %v3253
    %v3262 = vunpack.c.l.b16 %v3254
    %v3263 = vpack.c.b16 %v3260, %v3259
    %v3264 = vpack.c.b16 %v3262, %v3261
    %3267 = vmatprep.subr.bf16.mxu0 0
    %3268 = vmatpush1.bf16.msra.mxu0 0
    %3269 = vmatprep.subr.bf16.mxu0 0
    %3270 = vmatpush1.bf16.msra.mxu0 0
    %3271 = vmatprep.subr.bf16.mxu0 0
    %3272 = vmatpush1.bf16.msra.mxu0 0
    %3273 = vmatprep.subr.bf16.mxu0 0
    %3274 = vmatpush1.bf16.msra.mxu0 0
    %3275 = vmatprep.subr.bf16.mxu0 0
    %3276 = vmatpush1.bf16.msra.mxu0 0
    %3277 = vmatprep.subr.bf16.mxu0 0
    %3278 = vmatpush1.bf16.msra.mxu0 0
    %3279 = vmatprep.subr.bf16.mxu0 0
    %3280 = vmatpush1.bf16.msra.mxu0 %v3264
    %3281 = vmatprep.subr.bf16.mxu0 0
    %3282 = vmatpush1.bf16.msra.mxu0 %v3263
    %3283 = vmatprep.subr.bf16.mxu0 0
    %3284 = vmatpush2.bf16.msra.mxu0 0
    %3285 = vmatprep.subr.bf16.mxu0 0
    %3286 = vmatpush2.bf16.msra.mxu0 0
    %3287 = vmatprep.subr.bf16.mxu0 0
    %3288 = vmatpush2.bf16.msra.mxu0 0
    %3289 = vmatprep.subr.bf16.mxu0 0
    %3290 = vmatpush2.bf16.msra.mxu0 0
    %3291 = vmatprep.subr.bf16.mxu0 0
    %3292 = vmatpush2.bf16.msra.mxu0 0
    %3293 = vmatprep.subr.bf16.mxu0 0
    %3294 = vmatpush2.bf16.msra.mxu0 0
    %3295 = vmatprep.subr.bf16.mxu0 0
    %3296 = vmatpush2.bf16.msra.mxu0 0
    %3297 = vmatprep.subr.bf16.mxu0 0
    %3298 = vmatpush2.bf16.msra.mxu0 0
    %3299 = vmatprep.mubr.bf16.mxu0 0
    %3300 = vmatmul.mubr.bf16.gmra.mxu0 %v115
    %v3301 = vpop.f32.mrf.mxu0
    %v3302 = vadd.f32 0.0, %v3301
    %v3303 = vpop.f32.mrf.mxu0
    %v3304 = vpop.f32.mrf.mxu0
    %v3305 = vadd.f32 0.0, %v3304
    %v3306 = vpop.f32.mrf.mxu0
    %3307 = vmatprep.mubr.bf16.mxu0 0
    %3308 = vmatmul.mubr.bf16.gmra.mxu0 %v118
    %v3309 = vpop.f32.mrf.mxu0
    %v3310 = vadd.f32 0.0, %v3309
    %v3311 = vpop.f32.mrf.mxu0
    %v3312 = vpop.f32.mrf.mxu0
    %v3313 = vadd.f32 0.0, %v3312
    %v3314 = vpop.f32.mrf.mxu0
    %3315 = vdwg.mxu0
    %s3316 = scalar_lea.vmem %s4, 112
    %v3317 = vld [vmem:[%s3316] sm:$0xf]
    %v3318 = vld [vmem:[%s3316 + $0x4] sm:$0xf]
    %v3319 = vld [vmem:[%s3316 + $0x8] sm:$0xf]
    %v3320 = vld [vmem:[%s3316 + $0xc] sm:$0xf]
    %v3325 = vunpack.c.l.b16 %v3317
    %v3326 = vunpack.c.l.b16 %v3318
    %v3327 = vunpack.c.l.b16 %v3319
    %v3328 = vunpack.c.l.b16 %v3320
    %v3329 = vpack.c.b16 %v3326, %v3325
    %v3330 = vpack.c.b16 %v3328, %v3327
    %3333 = vmatprep.subr.bf16.mxu0 0
    %3334 = vmatpush1.bf16.msra.mxu0 0
    %3335 = vmatprep.subr.bf16.mxu0 0
    %3336 = vmatpush1.bf16.msra.mxu0 0
    %3337 = vmatprep.subr.bf16.mxu0 0
    %3338 = vmatpush1.bf16.msra.mxu0 0
    %3339 = vmatprep.subr.bf16.mxu0 0
    %3340 = vmatpush1.bf16.msra.mxu0 0
    %3341 = vmatprep.subr.bf16.mxu0 0
    %3342 = vmatpush1.bf16.msra.mxu0 0
    %3343 = vmatprep.subr.bf16.mxu0 0
    %3344 = vmatpush1.bf16.msra.mxu0 0
    %3345 = vmatprep.subr.bf16.mxu0 0
    %3346 = vmatpush1.bf16.msra.mxu0 %v3330
    %3347 = vmatprep.subr.bf16.mxu0 0
    %3348 = vmatpush1.bf16.msra.mxu0 %v3329
    %3349 = vmatprep.subr.bf16.mxu0 0
    %3350 = vmatpush2.bf16.msra.mxu0 0
    %3351 = vmatprep.subr.bf16.mxu0 0
    %3352 = vmatpush2.bf16.msra.mxu0 0
    %3353 = vmatprep.subr.bf16.mxu0 0
    %3354 = vmatpush2.bf16.msra.mxu0 0
    %3355 = vmatprep.subr.bf16.mxu0 0
    %3356 = vmatpush2.bf16.msra.mxu0 0
    %3357 = vmatprep.subr.bf16.mxu0 0
    %3358 = vmatpush2.bf16.msra.mxu0 0
    %3359 = vmatprep.subr.bf16.mxu0 0
    %3360 = vmatpush2.bf16.msra.mxu0 0
    %3361 = vmatprep.subr.bf16.mxu0 0
    %3362 = vmatpush2.bf16.msra.mxu0 0
    %3363 = vmatprep.subr.bf16.mxu0 0
    %3364 = vmatpush2.bf16.msra.mxu0 0
    %3365 = vmatprep.mubr.bf16.mxu0 0
    %3366 = vmatmul.mubr.bf16.gmra.mxu0 %v115
    %v3367 = vpop.f32.mrf.mxu0
    %v3368 = vadd.f32 0.0, %v3367
    %v3369 = vpop.f32.mrf.mxu0
    %v3370 = vpop.f32.mrf.mxu0
    %v3371 = vadd.f32 0.0, %v3370
    %v3372 = vpop.f32.mrf.mxu0
    %3373 = vmatprep.mubr.bf16.mxu0 0
    %3374 = vmatmul.mubr.bf16.gmra.mxu0 %v118
    %v3375 = vpop.f32.mrf.mxu0
    %v3376 = vadd.f32 0.0, %v3375
    %v3377 = vpop.f32.mrf.mxu0
    %v3378 = vpop.f32.mrf.mxu0
    %v3379 = vadd.f32 0.0, %v3378
    %v3380 = vpop.f32.mrf.mxu0
    %3381 = vdwg.mxu0
    %v3382 = vpack.c.bf16 %v3244, %v3244
    %v3383 = vpack.c.bf16 %v3247, %v3247
    %v3384 = vpack.c.bf16 %v3305, %v3302
    %v3385 = vpack.c.bf16 %v3313, %v3310
    %v3386 = vpack.c.bf16 %v3371, %v3368
    %v3387 = vpack.c.bf16 %v3379, %v3376
    %v3389 = vsel %vm240, %v3382, 0
    %v3392 = vsel %vm240, %v3384, 0
    %3394 = vmatprep.subr.bf16.mxu0 0
    %3395 = vmatpush1.bf16.xpose.msra.mxu0 0
    %3396 = vmatprep.subr.bf16.mxu0 0
    %3397 = vmatpush1.bf16.xpose.msra.mxu0 0
    %3398 = vmatprep.subr.bf16.mxu0 0
    %3399 = vmatpush1.bf16.xpose.msra.mxu0 0
    %3400 = vmatprep.subr.bf16.mxu0 0
    %3401 = vmatpush1.bf16.xpose.msra.mxu0 0
    %3402 = vmatprep.subr.bf16.mxu0 0
    %3403 = vmatpush1.bf16.xpose.msra.mxu0 0
    %3404 = vmatprep.subr.bf16.mxu0 0
    %3405 = vmatpush1.bf16.xpose.msra.mxu0 0
    %3406 = vmatprep.subr.bf16.mxu0 0
    %3407 = vmatpush1.bf16.xpose.msra.mxu0 0
    %3408 = vmatprep.subr.bf16.mxu0 0
    %3409 = vmatpush1.bf16.xpose.msra.mxu0 %v3392
    %3410 = vmatprep.subr.bf16.mxu0 0
    %3411 = vmatpush2.bf16.xpose.msra.mxu0 0
    %3412 = vmatprep.subr.bf16.mxu0 0
    %3413 = vmatpush2.bf16.xpose.msra.mxu0 0
    %3414 = vmatprep.subr.bf16.mxu0 0
    %3415 = vmatpush2.bf16.xpose.msra.mxu0 0
    %3416 = vmatprep.subr.bf16.mxu0 0
    %3417 = vmatpush2.bf16.xpose.msra.mxu0 0
    %3418 = vmatprep.subr.bf16.mxu0 0
    %3419 = vmatpush2.bf16.xpose.msra.mxu0 0
    %3420 = vmatprep.subr.bf16.mxu0 0
    %3421 = vmatpush2.bf16.xpose.msra.mxu0 0
    %3422 = vmatprep.subr.bf16.mxu0 0
    %3423 = vmatpush2.bf16.xpose.msra.mxu0 0
    %3424 = vmatprep.subr.bf16.mxu0 0
    %3425 = vmatpush2.bf16.xpose.msra.mxu0 0
    %3426 = vmatprep.mubr.bf16.mxu0 0
    %3427 = vmatmul.mubr.bf16.gmra.mxu0 %v3389
    %v3428 = vpop.f32.mrf.mxu0
    %v3429 = vadd.f32 0.0, %v3428
    %v3430 = vpop.f32.mrf.mxu0
    %v3431 = vpop.f32.mrf.mxu0
    %v3432 = vpop.f32.mrf.mxu0
    %3433 = vdwg.mxu0
    %v3435 = vsel %vm240, %v3383, 0
    %v3438 = vsel %vm240, %v3385, 0
    %3440 = vmatprep.subr.bf16.mxu0 0
    %3441 = vmatpush1.bf16.xpose.msra.mxu0 0
    %3442 = vmatprep.subr.bf16.mxu0 0
    %3443 = vmatpush1.bf16.xpose.msra.mxu0 0
    %3444 = vmatprep.subr.bf16.mxu0 0
    %3445 = vmatpush1.bf16.xpose.msra.mxu0 0
    %3446 = vmatprep.subr.bf16.mxu0 0
    %3447 = vmatpush1.bf16.xpose.msra.mxu0 0
    %3448 = vmatprep.subr.bf16.mxu0 0
    %3449 = vmatpush1.bf16.xpose.msra.mxu0 0
    %3450 = vmatprep.subr.bf16.mxu0 0
    %3451 = vmatpush1.bf16.xpose.msra.mxu0 0
    %3452 = vmatprep.subr.bf16.mxu0 0
    %3453 = vmatpush1.bf16.xpose.msra.mxu0 0
    %3454 = vmatprep.subr.bf16.mxu0 0
    %3455 = vmatpush1.bf16.xpose.msra.mxu0 %v3438
    %3456 = vmatprep.subr.bf16.mxu0 0
    %3457 = vmatpush2.bf16.xpose.msra.mxu0 0
    %3458 = vmatprep.subr.bf16.mxu0 0
    %3459 = vmatpush2.bf16.xpose.msra.mxu0 0
    %3460 = vmatprep.subr.bf16.mxu0 0
    %3461 = vmatpush2.bf16.xpose.msra.mxu0 0
    %3462 = vmatprep.subr.bf16.mxu0 0
    %3463 = vmatpush2.bf16.xpose.msra.mxu0 0
    %3464 = vmatprep.subr.bf16.mxu0 0
    %3465 = vmatpush2.bf16.xpose.msra.mxu0 0
    %3466 = vmatprep.subr.bf16.mxu0 0
    %3467 = vmatpush2.bf16.xpose.msra.mxu0 0
    %3468 = vmatprep.subr.bf16.mxu0 0
    %3469 = vmatpush2.bf16.xpose.msra.mxu0 0
    %3470 = vmatprep.subr.bf16.mxu0 0
    %3471 = vmatpush2.bf16.xpose.msra.mxu0 0
    %3472 = vmatprep.mubr.bf16.mxu0 0
    %3473 = vmatmul.mubr.bf16.gmra.mxu0 %v3435
    %v3474 = vpop.f32.mrf.mxu0
    %v3475 = vadd.f32 0.0, %v3474
    %v3476 = vpop.f32.mrf.mxu0
    %v3477 = vpop.f32.mrf.mxu0
    %v3478 = vpop.f32.mrf.mxu0
    %3479 = vdwg.mxu0
    %v3480 = vsel %vm333, %v3429, -inf
    %3481 = vmax.xlane.f32.xlu0 %v3480
    %v3482 = vpop.xlane.xlu0 %3481
    %v3483 = vsel %vm333, %v3475, -inf
    %3484 = vmax.xlane.f32.xlu0 %v3483
    %v3485 = vpop.xlane.xlu0 %3484
    %v3486 = vsub.f32 %v3429, %v3482
    %v3487 = vsub.f32 %v3475, %v3485
    %v3488 = vmul.f32 %v3486, 1.442695
    %v3489 = vpow.pop %v3488
    %v3490 = vmul.f32 %v3487, 1.442695
    %v3491 = vpow.pop %v3490
    %v3492 = vsel %vm333, %v3489, 0.0
    %3493 = vadd.xlane.f32.xlu0 %v3492
    %v3494 = vpop.xlane.xlu0 %3493
    %v3495 = vsel %vm333, %v3491, 0.0
    %3496 = vadd.xlane.f32.xlu0 %v3495
    %v3497 = vpop.xlane.xlu0 %3496
    %v3498 = vrcp.pop %v3494
    %v3499 = vrcp.pop %v3497
    %v3500 = vmul.f32 %v3489, %v3498
    %v3501 = vmul.f32 %v3491, %v3499
    %v3502 = vpack.c.bf16 %v3500, %v3500
    %v3503 = vpack.c.bf16 %v3501, %v3501
    %v3505 = vsel %vm333, %v3502, 0
    %3507 = vmatprep.subr.bf16.mxu0 0
    %3508 = vmatpush1.bf16.msra.mxu0 0
    %3509 = vmatprep.subr.bf16.mxu0 0
    %3510 = vmatpush1.bf16.msra.mxu0 0
    %3511 = vmatprep.subr.bf16.mxu0 0
    %3512 = vmatpush1.bf16.msra.mxu0 0
    %3513 = vmatprep.subr.bf16.mxu0 0
    %3514 = vmatpush1.bf16.msra.mxu0 0
    %3515 = vmatprep.subr.bf16.mxu0 0
    %3516 = vmatpush1.bf16.msra.mxu0 0
    %3517 = vmatprep.subr.bf16.mxu0 0
    %3518 = vmatpush1.bf16.msra.mxu0 0
    %3519 = vmatprep.subr.bf16.mxu0 0
    %3520 = vmatpush1.bf16.msra.mxu0 0
    %3521 = vmatprep.subr.bf16.mxu0 0
    %3522 = vmatpush1.bf16.msra.mxu0 %v3386
    %3523 = vmatprep.subr.bf16.mxu0 0
    %3524 = vmatpush2.bf16.msra.mxu0 0
    %3525 = vmatprep.subr.bf16.mxu0 0
    %3526 = vmatpush2.bf16.msra.mxu0 0
    %3527 = vmatprep.subr.bf16.mxu0 0
    %3528 = vmatpush2.bf16.msra.mxu0 0
    %3529 = vmatprep.subr.bf16.mxu0 0
    %3530 = vmatpush2.bf16.msra.mxu0 0
    %3531 = vmatprep.subr.bf16.mxu0 0
    %3532 = vmatpush2.bf16.msra.mxu0 0
    %3533 = vmatprep.subr.bf16.mxu0 0
    %3534 = vmatpush2.bf16.msra.mxu0 0
    %3535 = vmatprep.subr.bf16.mxu0 0
    %3536 = vmatpush2.bf16.msra.mxu0 0
    %3537 = vmatprep.subr.bf16.mxu0 0
    %3538 = vmatpush2.bf16.msra.mxu0 0
    %3539 = vmatprep.mubr.bf16.mxu0 0
    %3540 = vmatmul.mubr.bf16.gmra.mxu0 %v3505
    %v3541 = vpop.f32.mrf.mxu0
    %v3542 = vadd.f32 0.0, %v3541
    %v3543 = vpop.f32.mrf.mxu0
    %v3544 = vpop.f32.mrf.mxu0
    %v3545 = vpop.f32.mrf.mxu0
    %3546 = vdwg.mxu0
    %v3548 = vsel %vm333, %v3503, 0
    %3550 = vmatprep.subr.bf16.mxu0 0
    %3551 = vmatpush1.bf16.msra.mxu0 0
    %3552 = vmatprep.subr.bf16.mxu0 0
    %3553 = vmatpush1.bf16.msra.mxu0 0
    %3554 = vmatprep.subr.bf16.mxu0 0
    %3555 = vmatpush1.bf16.msra.mxu0 0
    %3556 = vmatprep.subr.bf16.mxu0 0
    %3557 = vmatpush1.bf16.msra.mxu0 0
    %3558 = vmatprep.subr.bf16.mxu0 0
    %3559 = vmatpush1.bf16.msra.mxu0 0
    %3560 = vmatprep.subr.bf16.mxu0 0
    %3561 = vmatpush1.bf16.msra.mxu0 0
    %3562 = vmatprep.subr.bf16.mxu0 0
    %3563 = vmatpush1.bf16.msra.mxu0 0
    %3564 = vmatprep.subr.bf16.mxu0 0
    %3565 = vmatpush1.bf16.msra.mxu0 %v3387
    %3566 = vmatprep.subr.bf16.mxu0 0
    %3567 = vmatpush2.bf16.msra.mxu0 0
    %3568 = vmatprep.subr.bf16.mxu0 0
    %3569 = vmatpush2.bf16.msra.mxu0 0
    %3570 = vmatprep.subr.bf16.mxu0 0
    %3571 = vmatpush2.bf16.msra.mxu0 0
    %3572 = vmatprep.subr.bf16.mxu0 0
    %3573 = vmatpush2.bf16.msra.mxu0 0
    %3574 = vmatprep.subr.bf16.mxu0 0
    %3575 = vmatpush2.bf16.msra.mxu0 0
    %3576 = vmatprep.subr.bf16.mxu0 0
    %3577 = vmatpush2.bf16.msra.mxu0 0
    %3578 = vmatprep.subr.bf16.mxu0 0
    %3579 = vmatpush2.bf16.msra.mxu0 0
    %3580 = vmatprep.subr.bf16.mxu0 0
    %3581 = vmatpush2.bf16.msra.mxu0 0
    %3582 = vmatprep.mubr.bf16.mxu0 0
    %3583 = vmatmul.mubr.bf16.gmra.mxu0 %v3548
    %v3584 = vpop.f32.mrf.mxu0
    %v3585 = vadd.f32 0.0, %v3584
    %v3586 = vpop.f32.mrf.mxu0
    %v3587 = vpop.f32.mrf.mxu0
    %v3588 = vpop.f32.mrf.mxu0
    %3589 = vdwg.mxu0
    %v3590 = vpack.c.bf16 %v3585, %v3542
    %s3591 = scalar_lea.vmem %s5, 14
    %v3592 = vld [vmem:[%s3591] sm:$0x3]
    %v3594 = vsel %vm240, %v3590, 0
    %v3597 = vsel %vm850, %v3592, 0
    %3599 = vmatprep.subr.bf16.mxu0 0
    %3600 = vmatpush1.bf16.msra.mxu0 0
    %3601 = vmatprep.subr.bf16.mxu0 0
    %3602 = vmatpush1.bf16.msra.mxu0 0
    %3603 = vmatprep.subr.bf16.mxu0 0
    %3604 = vmatpush1.bf16.msra.mxu0 0
    %3605 = vmatprep.subr.bf16.mxu0 0
    %3606 = vmatpush1.bf16.msra.mxu0 0
    %3607 = vmatprep.subr.bf16.mxu0 0
    %3608 = vmatpush1.bf16.msra.mxu0 0
    %3609 = vmatprep.subr.bf16.mxu0 0
    %3610 = vmatpush1.bf16.msra.mxu0 0
    %3611 = vmatprep.subr.bf16.mxu0 0
    %3612 = vmatpush1.bf16.msra.mxu0 0
    %3613 = vmatprep.subr.bf16.mxu0 0
    %3614 = vmatpush1.bf16.msra.mxu0 %v3597
    %3615 = vmatprep.subr.bf16.mxu0 0
    %3616 = vmatpush2.bf16.msra.mxu0 0
    %3617 = vmatprep.subr.bf16.mxu0 0
    %3618 = vmatpush2.bf16.msra.mxu0 0
    %3619 = vmatprep.subr.bf16.mxu0 0
    %3620 = vmatpush2.bf16.msra.mxu0 0
    %3621 = vmatprep.subr.bf16.mxu0 0
    %3622 = vmatpush2.bf16.msra.mxu0 0
    %3623 = vmatprep.subr.bf16.mxu0 0
    %3624 = vmatpush2.bf16.msra.mxu0 0
    %3625 = vmatprep.subr.bf16.mxu0 0
    %3626 = vmatpush2.bf16.msra.mxu0 0
    %3627 = vmatprep.subr.bf16.mxu0 0
    %3628 = vmatpush2.bf16.msra.mxu0 0
    %3629 = vmatprep.subr.bf16.mxu0 0
    %3630 = vmatpush2.bf16.msra.mxu0 0
    %3631 = vmatprep.mubr.bf16.mxu0 0
    %3632 = vmatmul.mubr.bf16.gmra.mxu0 %v3594
    %v3633 = vpop.f32.mrf.mxu0
    %v3634 = vadd.f32 0.0, %v3633
    %v3635 = vpop.f32.mrf.mxu0
    %v3636 = vpop.f32.mrf.mxu0
    %v3637 = vadd.f32 0.0, %v3636
    %v3638 = vpop.f32.mrf.mxu0
    %3639 = vdwg.mxu0
    %v3640 = vadd.f32 %v3190, %v3634
    %v3641 = vadd.f32 %v3191, %v3637
    %v3642 = vld [vmem:[%s6] sm:$0x1]
    %v3644 = vlaneseq
    %v3645 = vshrl.u32 %v3644, 7
    %v3646 = vsub.s32 0, %v3645
    %v3647 = vrot.slane %v3642, %v3646
    %v3649 = vadd.f32 %v3640, %v3647
    %v3650 = vadd.f32 %v3641, %v3647
    %3651 = vst.msk [vmem:[#allocation2] sm:$0xff] %vm53, %v3649
    %3652 = vst.msk [vmem:[#allocation2 + $0x8] sm:$0xff] %vm53, %v3650
    // Predicated region
    $region30: #{tpu_custom_call.1} parent=1 // pred_check
      _
    $region31: #{tpu_custom_call.1} parent=1 // pred_check_branch
      %3654 = sbr.rel (0) target = $region33
    $region32: #{tpu_custom_call.1} parent=1 // pred_region
      %s3656 = ssub.s32 256, 256
      %3657 = vsyncadd [#allocation3], %s3656
      %s3658 = sshll.u32 [#allocation2], 4
      %s3659 = int_to_ptr.vmem [resolvable:$true] %s3658
      %3664 = dma.vmem_to_hbm [thread:$0]  %s3659, 256, %s7, [#allocation3], 128, 128, 8
    $region33: #{tpu_custom_call.1} parent=1 // pred_fallthru
      _
    // Predicated region
    $region34: #{tpu_custom_call.1} parent=1 // pred_check
      _
    $region35: #{tpu_custom_call.1} parent=1 // pred_check_branch
      %3666 = sbr.rel (0) target = $region37
    $region36: #{tpu_custom_call.1} parent=1 // pred_region
      %3667 = dma.done [#allocation3], 256
    $region37: #{tpu_custom_call.1} parent=1 // pred_fallthru
      _
    %3668 = vsyncpa [#allocation3], 1

</llo_original>
